<compile_context>
chip_gen: v7x
topology: tpu7x:2x2x1
jax: 0.10.0
libtpu: 0.0.40
codegen_flags: <defaults>
</compile_context>

<pallas_src>
import jax
import jax.numpy as jnp
import numpy as np
from jax.experimental import pallas as pl
from jax.experimental.pallas import tpu as pltpu

GEM_EPS = 1e-6          # GeM eps
NORM_EPS = 1e-12        # F.normalize eps
LEAKY_SLOPE = 0.1


def _sim_head_kernel(p_ref, x_ref, w1_ref, w2_ref, o_ref):
    """One batch sample per grid step.

    p_ref:  SMEM (1,) f32        GeM exponent.
    x_ref:  VMEM (1, C, HW) bf16 backbone features; C on sublanes, HW on lanes.
    w1_ref: VMEM (C, hidden) bf16  = torch Linear1.weight.T
    w2_ref: VMEM (hidden, out) bf16 = torch Linear2.weight.T
    o_ref:  VMEM (1, 1, out) f32  normalized embedding for this sample.
    """
    p = p_ref[0]
    inv_p = 1.0 / p

    # GeM: clamp(min=eps) -> x**p -> mean over spatial -> (...)**(1/p).
    # bf16 is storage/DMA format only; all math is f32.
    x = x_ref[...].astype(jnp.float32)                     # (1, C, HW)
    xc = jnp.maximum(x, GEM_EPS)
    # TODO(synk): if p is frozen at inference (p == 3), specialize to xc*xc*xc
    # (VPU muls) instead of exp/log (EUP) over the full feature map.
    xp = jnp.exp(p * jnp.log(xc))                          # x**p (xc >= eps > 0)
    pooled = jnp.mean(xp, axis=-1)                         # (1, C) lane-axis reduce
    gem = jnp.exp(inv_p * jnp.log(pooled))                 # pooled**(1/p)

    # Head: Linear -> LeakyReLU(0.1) -> Linear, f32 accumulate on the MXU.
    w1 = w1_ref[...].astype(jnp.float32)
    w2 = w2_ref[...].astype(jnp.float32)
    h = jnp.dot(gem, w1, preferred_element_type=jnp.float32)     # (1, hidden)
    h = jnp.where(h > 0, h, LEAKY_SLOPE * h)
    out = jnp.dot(h, w2, preferred_element_type=jnp.float32)     # (1, out)

    # F.normalize(p=2, dim=1): rsqrt + mul (equivalent to clamp(norm, eps) / ).
    sum_sq = jnp.sum(out * out, axis=-1, keepdims=True)
    inv_norm = jax.lax.rsqrt(jnp.maximum(sum_sq, NORM_EPS * NORM_EPS))
    o_ref[...] = (out * inv_norm).reshape(o_ref.shape).astype(o_ref.dtype)


def sim_model_head(features_nchw, p, w1_t, w2_t):
    """features_nchw: (N, C, H, W) backbone output (NCHW, as in PyTorch).
    p: (1,) GeM exponent.  w1_t: (C, hidden) = W1.T.  w2_t: (hidden, out) = W2.T.
    Returns (N, out) L2-normalized embeddings (f32)."""
    n, c, h, w = features_nchw.shape
    hw = h * w
    hidden = w1_t.shape[1]
    out_dim = w2_t.shape[1]

    # Free reshape of contiguous NCHW -> (N, C, H*W); no transpose pass in HBM.
    # bf16 casts halve the HBM->VMEM DMA (no-ops if inputs are already bf16).
    x = features_nchw.reshape(n, c, hw).astype(jnp.bfloat16)
    w1 = w1_t.astype(jnp.bfloat16)
    w2 = w2_t.astype(jnp.bfloat16)
    p = p.astype(jnp.float32)

    out3 = pl.pallas_call(
        _sim_head_kernel,
        out_shape=jax.ShapeDtypeStruct((n, 1, out_dim), jnp.float32),
        grid=(n,),
        in_specs=[
            pl.BlockSpec(memory_space=pltpu.SMEM),                  # p (scalar)
            pl.BlockSpec((1, c, hw), lambda i: (i, 0, 0)),          # features
            pl.BlockSpec((c, hidden), lambda i: (0, 0)),            # w1 (resident)
            pl.BlockSpec((hidden, out_dim), lambda i: (0, 0)),      # w2 (resident)
        ],
        out_specs=pl.BlockSpec((1, 1, out_dim), lambda i: (i, 0, 0)),
        compiler_params=pltpu.CompilerParams(
            dimension_semantics=("parallel",)),                     # v7x: 2 TCs
    )(p, x, w1, w2)
    return out3.reshape(n, out_dim)


def _reference(features_nchw, p, w1_t, w2_t):
    """Pure-JAX reference with the same bf16 storage quantization, f32 math."""
    n, c, h, w = features_nchw.shape
    x = features_nchw.reshape(n, c, h * w).astype(jnp.bfloat16).astype(jnp.float32)
    w1 = w1_t.astype(jnp.bfloat16).astype(jnp.float32)
    w2 = w2_t.astype(jnp.bfloat16).astype(jnp.float32)
    pv = p.astype(jnp.float32)[0]
    xp = jnp.power(jnp.maximum(x, GEM_EPS), pv)
    gem = jnp.power(jnp.mean(xp, axis=-1), 1.0 / pv)       # (N, C)
    hdn = gem @ w1
    hdn = jnp.where(hdn > 0, hdn, LEAKY_SLOPE * hdn)
    out = hdn @ w2
    norm = jnp.sqrt(jnp.sum(out * out, axis=1, keepdims=True))
    return out / jnp.maximum(norm, NORM_EPS)


if __name__ == "__main__":
    # Shapes implied by the module:
    #   backbone_output_dim = 1024, hidden_dim = 256, output_dim = 128,
    #   densenet121 7x7 feature map, batch = 2.
    N, C, H, W = 2, 1024, 7, 7
    HIDDEN, OUT = 256, 128

    key = jax.random.PRNGKey(0)
    k_feat, k_w1, k_w2 = jax.random.split(key, 3)

    # Backbone features are post-ReLU in densenet -> non-negative-ish; use abs.
    feats = jnp.abs(jax.random.normal(k_feat, (N, C, H, W), dtype=jnp.float32))

    # Deterministic head weights (torch Linear weight is (out, in); pass .T).
    w1_t = (jax.random.normal(k_w1, (C, HIDDEN), dtype=jnp.float32)
            * (1.0 / np.sqrt(C)))
    w2_t = (jax.random.normal(k_w2, (HIDDEN, OUT), dtype=jnp.float32)
            * (1.0 / np.sqrt(HIDDEN)))
    p = jnp.array([3.0], dtype=jnp.float32)                # GeM p parameter

    out = sim_model_head(feats, p, w1_t, w2_t)
    out = jax.block_until_ready(out)

    ref = jax.block_until_ready(_reference(feats, p, w1_t, w2_t))
    np.testing.assert_allclose(np.asarray(out), np.asarray(ref),
                               rtol=1e-4, atol=1e-4)
    assert out.shape == (N, OUT)

    print("KERNEL_OK")
</pallas_src>

<mosaic_0001>
module attributes {stable_mosaic.version = 11 : i64} {
  func.func @_sim_head_kernel(%arg0: i32, %arg1: memref<1xf32, #tpu.memory_space<smem>>, %arg2: memref<1x1024x49xbf16, #tpu.memory_space<vmem>>, %arg3: memref<1024x256xbf16, #tpu.memory_space<vmem>>, %arg4: memref<256x128xbf16, #tpu.memory_space<vmem>>, %arg5: memref<1x1x128xf32, #tpu.memory_space<vmem>>) attributes {dimension_semantics = [#tpu.dimension_semantics<parallel>], iteration_bounds = array<i64: 2>, scalar_prefetch = 0 : i64, scratch_operands = 0 : i64, tpu.core_type = #tpu.core_type<tc>, window_params = [{transform_indices = @transform_0, window_bounds = array<i64: 1>}, {transform_indices = @transform_1, window_bounds = array<i64: 1, 1024, 49>}, {pipeline_mode = #tpu.pipeline_mode<synchronous>, transform_indices = @transform_2, window_bounds = array<i64: 1024, 256>}, {pipeline_mode = #tpu.pipeline_mode<synchronous>, transform_indices = @transform_3, window_bounds = array<i64: 256, 128>}, {transform_indices = @transform_4, window_bounds = array<i64: 1, 1, 128>}]} {
    %c0 = arith.constant 0 : index
    %0 = memref.load %arg1[%c0] : memref<1xf32, #tpu.memory_space<smem>>
    %cst = arith.constant 1.000000e+00 : f32
    %1 = arith.divf %cst, %0 : f32
    %c0_0 = arith.constant 0 : index
    %c0_1 = arith.constant 0 : index
    %c0_2 = arith.constant 0 : index
    %2 = vector.load %arg2[%c0_0, %c0_1, %c0_2] : memref<1x1024x49xbf16, #tpu.memory_space<vmem>>, vector<1x1024x49xbf16>
    %3 = arith.extf %2 : vector<1x1024x49xbf16> to vector<1x1024x49xf32>
    %cst_3 = arith.constant 9.99999997E-7 : f32
    %4 = vector.broadcast %cst_3 : f32 to vector<1x1024x49xf32>
    %5 = arith.maximumf %3, %4 : vector<1x1024x49xf32>
    %6 = math.log %5 : vector<1x1024x49xf32>
    %7 = vector.broadcast %0 : f32 to vector<1x1024x49xf32>
    %8 = arith.mulf %7, %6 : vector<1x1024x49xf32>
    %9 = math.exp %8 : vector<1x1024x49xf32>
    %cst_4 = arith.constant dense<0.000000e+00> : vector<1x1024xf32>
    %10 = vector.multi_reduction <add>, %9, %cst_4 [2] : vector<1x1024x49xf32> to vector<1x1024xf32>
    %cst_5 = arith.constant 4.900000e+01 : f32
    %11 = vector.broadcast %cst_5 : f32 to vector<1x1024xf32>
    %12 = arith.divf %10, %11 : vector<1x1024xf32>
    %13 = math.log %12 : vector<1x1024xf32>
    %14 = vector.broadcast %1 : f32 to vector<1x1024xf32>
    %15 = arith.mulf %14, %13 : vector<1x1024xf32>
    %16 = math.exp %15 : vector<1x1024xf32>
    %c0_6 = arith.constant 0 : index
    %c0_7 = arith.constant 0 : index
    %17 = vector.load %arg3[%c0_6, %c0_7] : memref<1024x256xbf16, #tpu.memory_space<vmem>>, vector<1024x256xbf16>
    %18 = arith.extf %17 : vector<1024x256xbf16> to vector<1024x256xf32>
    %c0_8 = arith.constant 0 : index
    %c0_9 = arith.constant 0 : index
    %19 = vector.load %arg4[%c0_8, %c0_9] : memref<256x128xbf16, #tpu.memory_space<vmem>>, vector<256x128xbf16>
    %20 = arith.extf %19 : vector<256x128xbf16> to vector<256x128xf32>
    %cst_10 = arith.constant dense<0.000000e+00> : vector<1x256xf32>
    %21 = tpu.matmul %16, %18, %cst_10 {dimension_numbers = #tpu.dot_dimension_numbers<[1], [0], [0], [1], [0, 0, 1, 1], [], []>} : vector<1x1024xf32>, vector<1024x256xf32>, vector<1x256xf32> -> vector<1x256xf32>
    %cst_11 = arith.constant 0.000000e+00 : f32
    %22 = vector.broadcast %cst_11 : f32 to vector<1x256xf32>
    %23 = arith.cmpf ogt, %21, %22 : vector<1x256xf32>
    %cst_12 = arith.constant 1.000000e-01 : f32
    %24 = vector.broadcast %cst_12 : f32 to vector<1x256xf32>
    %25 = arith.mulf %24, %21 : vector<1x256xf32>
    %26 = arith.select %23, %21, %25 : vector<1x256xi1>, vector<1x256xf32>
    %cst_13 = arith.constant dense<0.000000e+00> : vector<1x128xf32>
    %27 = tpu.matmul %26, %20, %cst_13 {dimension_numbers = #tpu.dot_dimension_numbers<[1], [0], [0], [1], [0, 0, 1, 1], [], []>} : vector<1x256xf32>, vector<256x128xf32>, vector<1x128xf32> -> vector<1x128xf32>
    %28 = arith.mulf %27, %27 : vector<1x128xf32>
    %cst_14 = arith.constant dense<0.000000e+00> : vector<1xf32>
    %29 = vector.multi_reduction <add>, %28, %cst_14 [1] : vector<1x128xf32> to vector<1xf32>
    %30 = vector.shape_cast %29 : vector<1xf32> to vector<1x1xf32>
    %cst_15 = arith.constant 1.000000e-24 : f32
    %31 = vector.broadcast %cst_15 : f32 to vector<1x1xf32>
    %32 = arith.maximumf %30, %31 : vector<1x1xf32>
    %33 = math.rsqrt %32 : vector<1x1xf32>
    %34 = vector.broadcast %33 : vector<1x1xf32> to vector<1x128xf32>
    %35 = arith.mulf %27, %34 : vector<1x128xf32>
    %36 = vector.shape_cast %35 : vector<1x128xf32> to vector<1x1x128xf32>
    %c0_16 = arith.constant 0 : index
    %c0_17 = arith.constant 0 : index
    %c0_18 = arith.constant 0 : index
    %37 = vector.load %arg5[%c0_16, %c0_17, %c0_18] : memref<1x1x128xf32, #tpu.memory_space<vmem>>, vector<1x1x128xf32>
    tpu.vector_store %arg5[%c0_16, %c0_17, %c0_18], %36 {strides = array<i32>} : memref<1x1x128xf32, #tpu.memory_space<vmem>>, vector<1x1x128xf32>,
    return
  }
  func.func @transform_0(%arg0: i32) -> i32 {
    %c0_i32 = arith.constant 0 : i32
    %c0_i32_0 = arith.constant 0 : i32
    return %c0_i32 : i32
  }
  func.func @transform_1(%arg0: i32) -> (i32, i32, i32) {
    %c0_i32 = arith.constant 0 : i32
    %c0_i32_0 = arith.constant 0 : i32
    %c0_i32_1 = arith.constant 0 : i32
    return %arg0, %c0_i32, %c0_i32_0 : i32, i32, i32
  }
  func.func @transform_2(%arg0: i32) -> (i32, i32) {
    %c0_i32 = arith.constant 0 : i32
    %c0_i32_0 = arith.constant 0 : i32
    %c0_i32_1 = arith.constant 0 : i32
    return %c0_i32, %c0_i32_0 : i32, i32
  }
  func.func @transform_3(%arg0: i32) -> (i32, i32) {
    %c0_i32 = arith.constant 0 : i32
    %c0_i32_0 = arith.constant 0 : i32
    %c0_i32_1 = arith.constant 0 : i32
    return %c0_i32, %c0_i32_0 : i32, i32
  }
  func.func @transform_4(%arg0: i32) -> (i32, i32, i32) {
    %c0_i32 = arith.constant 0 : i32
    %c0_i32_0 = arith.constant 0 : i32
    %c0_i32_1 = arith.constant 0 : i32
    return %arg0, %c0_i32, %c0_i32_0 : i32, i32, i32
  }
}

</mosaic_0001>

<llo_original>
// kernel: tpu_custom_call.1
$region0: #{tpu_custom_call.1}
  #allocation0 [shape = 'u32[]', space=smem, size = 0x4, offset = 0x4, fixed_abs, tag = 'smem constant byte address 0x4 - core index']
  #allocation1 [shape = 'u32[144,128]{1,0:T(1,128)}', space=vmem, size = 0x12000, scoped, tag = 'internal scratch']
  #allocation2 [shape = 'f32[1]{0:T(128)S(6)}', space=smem, size = 0x200, scoped, tag = 'scoped memory for tpu_custom_call.1']
  %s0 = inlined_call_operand.<no memory space> [shape: f32[1], index: 0, kind: input, shape index: {}]
  %s1 = inlined_call_operand.vmem [shape: bf16[2,1024,49], index: 1, kind: input, shape index: {}]
  %s2 = inlined_call_operand.vmem [shape: bf16[1024,256], index: 2, kind: input, shape index: {}]
  %s3 = inlined_call_operand.vmem [shape: bf16[256,128], index: 3, kind: input, shape index: {}]
  %s4 = inlined_call_operand.hbm [shape: f32[2,1,128], index: 4, kind: output, shape index: {}]
  %s5 = sld [smem:[#allocation0]]
  $region49: #{tpu_custom_call.1} parent=0
    _
  %s7 = ssub.s32 1, %s5
  %s8 = scalar_select 0, %s7, %s5
  %9 = sst [smem:[#allocation2]] %s0
  $region1: #{tpu_custom_call.1} parent=0
    #allocation3 [shape = 'u8[1024]{0}', space=vmem, size = 0x400, scoped, tag = 'output window, operand 0']
    #allocation4 [shape = 's32[2]{0}', space=sflag, size = 0x8, scoped, tag = 'scoped memory for tpu_custom_call.1']
    %10 = vsyncpa [#allocation4], 0
    %s11 = scalar_lea.sflag [#allocation4], 1
    %12 = vsyncpa %s11, 0
    loop: start=0, step=1, limit=4
    $region2: #{tpu_custom_call.1} parent=1 // loop_pre_header
      _
    $region3: #{tpu_custom_call.1} parent=1 // loop_header
      %s14 = sphi 0, %s18
      %p15 = scmp.ge.s32.totalorder %s14, 4
      %s22 = sphi 0, %s22
      %s24 = sphi 0, %s22
      %s25 = sphi 0, %s24
      %s39 = sphi 0, %s25
      %s45 = sphi 0, %s47
      %s48 = sphi 0, %s45
      %s49 = sphi 0, %s48
      %s65 = sphi 0, %s49
      %s69 = sphi 0, %s69
      %s71 = sphi 0, %s69
      %s72 = sphi 0, %s71
      %s86 = sphi 0, %s72
      %s90 = sphi 0, %s90
      %s92 = sphi 0, %s90
      %s93 = sphi 0, %s92
      %s107 = sphi 0, %s93
      %s113 = sphi 0, %s115
      %s116 = sphi 0, %s113
      %s117 = sphi 0, %s116
      %s133 = sphi 0, %s117
    $region4: #{tpu_custom_call.1} parent=1 // loop_header_branch
      %17 = sbr.rel (%p15) target = $region8
    $region5: #{tpu_custom_call.1} parent=1 // loop_body
      %s19 = ssub.s32 %s14, 1
      %s20 = ssub.s32 %s14, 2
      %s21 = sadd.s32 %s14, 1
      %s23 = sadd.s32 %s22, 1
      %p26 = scmp.eq.s32.totalorder %s14, 1
      %p27 = scmp.ne.s32.totalorder %s22, %s24
      %p28 = scmp.eq.s32.totalorder %s14, 0
      %p29 = por %p27, %p28
      %p30 = scmp.ne.s32.totalorder %s22, %s24
      %p31 = scmp.eq.s32.totalorder %s19, 1
      %p32 = por %p30, %p31
      %p33 = scmp.ne.s32.totalorder %s24, %s25
      %p34 = scmp.eq.s32.totalorder %s19, 0
      %p35 = por %p33, %p34
      %p36 = scmp.ne.s32.totalorder %s24, %s25
      %p37 = scmp.eq.s32.totalorder %s20, 1
      %p38 = por %p36, %p37
      %p40 = scmp.ne.s32.totalorder %s25, %s39
      %p41 = scmp.eq.s32.totalorder %s20, 0
      %p42 = por %p40, %p41
      %s43 = ssub.s32 %s14, %s21
      %p44 = scmp.eq.s32.totalorder %s43, 0
      %s46 = sadd.s32 %s45, 1
      %s47 = scalar_select %p44, %s45, %s46
      %p50 = pneg %p44
      %p51 = scmp.eq.s32.totalorder %s14, 1
      %p52 = por %p50, %p51
      %p53 = scmp.ne.s32.totalorder %s45, %s48
      %p54 = scmp.eq.s32.totalorder %s14, 0
      %p55 = por %p53, %p54
      %p56 = scmp.ne.s32.totalorder %s45, %s48
      %p57 = scmp.eq.s32.totalorder %s19, 1
      %p58 = por %p56, %p57
      %p59 = scmp.ne.s32.totalorder %s48, %s49
      %p60 = scmp.eq.s32.totalorder %s19, 0
      %p61 = por %p59, %p60
      %p62 = scmp.ne.s32.totalorder %s48, %s49
      %p63 = scmp.eq.s32.totalorder %s20, 1
      %p64 = por %p62, %p63
      %p66 = scmp.ne.s32.totalorder %s49, %s65
      %p67 = scmp.eq.s32.totalorder %s20, 0
      %p68 = por %p66, %p67
      %s70 = sadd.s32 %s69, 1
      %p73 = scmp.eq.s32.totalorder %s14, 1
      %p74 = scmp.ne.s32.totalorder %s69, %s71
      %p75 = scmp.eq.s32.totalorder %s14, 0
      %p76 = por %p74, %p75
      %p77 = scmp.ne.s32.totalorder %s69, %s71
      %p78 = scmp.eq.s32.totalorder %s19, 1
      %p79 = por %p77, %p78
      %p80 = scmp.ne.s32.totalorder %s71, %s72
      %p81 = scmp.eq.s32.totalorder %s19, 0
      %p82 = por %p80, %p81
      %p83 = scmp.ne.s32.totalorder %s71, %s72
      %p84 = scmp.eq.s32.totalorder %s20, 1
      %p85 = por %p83, %p84
      %p87 = scmp.ne.s32.totalorder %s72, %s86
      %p88 = scmp.eq.s32.totalorder %s20, 0
      %p89 = por %p87, %p88
      %s91 = sadd.s32 %s90, 1
      %p94 = scmp.eq.s32.totalorder %s14, 1
      %p95 = scmp.ne.s32.totalorder %s90, %s92
      %p96 = scmp.eq.s32.totalorder %s14, 0
      %p97 = por %p95, %p96
      %p98 = scmp.ne.s32.totalorder %s90, %s92
      %p99 = scmp.eq.s32.totalorder %s19, 1
      %p100 = por %p98, %p99
      %p101 = scmp.ne.s32.totalorder %s92, %s93
      %p102 = scmp.eq.s32.totalorder %s19, 0
      %p103 = por %p101, %p102
      %p104 = scmp.ne.s32.totalorder %s92, %s93
      %p105 = scmp.eq.s32.totalorder %s20, 1
      %p106 = por %p104, %p105
      %p108 = scmp.ne.s32.totalorder %s93, %s107
      %p109 = scmp.eq.s32.totalorder %s20, 0
      %p110 = por %p108, %p109
      %s111 = ssub.s32 %s14, %s21
      %p112 = scmp.eq.s32.totalorder %s111, 0
      %s114 = sadd.s32 %s113, 1
      %s115 = scalar_select %p112, %s113, %s114
      %p118 = pneg %p112
      %p119 = scmp.eq.s32.totalorder %s14, 1
      %p120 = por %p118, %p119
      %p121 = scmp.ne.s32.totalorder %s113, %s116
      %p122 = scmp.eq.s32.totalorder %s14, 0
      %p123 = por %p121, %p122
      %p124 = scmp.ne.s32.totalorder %s113, %s116
      %p125 = scmp.eq.s32.totalorder %s19, 1
      %p126 = por %p124, %p125
      %p127 = scmp.ne.s32.totalorder %s116, %s117
      %p128 = scmp.eq.s32.totalorder %s19, 0
      %p129 = por %p127, %p128
      %p130 = scmp.ne.s32.totalorder %s116, %s117
      %p131 = scmp.eq.s32.totalorder %s20, 1
      %p132 = por %p130, %p131
      %p134 = scmp.ne.s32.totalorder %s117, %s133
      %p135 = scmp.eq.s32.totalorder %s20, 0
      %p136 = por %p134, %p135
      %p137 = scmp.le.s32.totalorder 1, %s14
      %p138 = scmp.lt.s32.totalorder %s14, 3
      %p139 = pnand %p137, %p138
      %p140 = pneg %p139
      // Predicated region
      $region9: #{tpu_custom_call.1} parent=5 // pred_check
        _
      $region10: #{tpu_custom_call.1} parent=5 // pred_check_branch
        %142 = sbr.rel (%p139) target = $region12
      $region11: #{tpu_custom_call.1} parent=5 // pred_region
        %s143 = ssub.s32 %s14, 1
        // Predicated region
        $region13: #{tpu_custom_call.1} parent=11 // pred_check
          %p144 = pneg %p35
        $region14: #{tpu_custom_call.1} parent=11 // pred_check_branch
          %146 = sbr.rel (%p144) target = $region16
        $region15: #{tpu_custom_call.1} parent=11 // pred_region
          _
        $region16: #{tpu_custom_call.1} parent=11 // pred_fallthru
          _
        // Predicated region
        $region17: #{tpu_custom_call.1} parent=11 // pred_check
          %p147 = pneg %p82
        $region18: #{tpu_custom_call.1} parent=11 // pred_check_branch
          %149 = sbr.rel (%p147) target = $region20
        $region19: #{tpu_custom_call.1} parent=11 // pred_region
          _
        $region20: #{tpu_custom_call.1} parent=11 // pred_fallthru
          _
        // Predicated region
        $region21: #{tpu_custom_call.1} parent=11 // pred_check
          %p150 = pneg %p103
        $region22: #{tpu_custom_call.1} parent=11 // pred_check_branch
          %152 = sbr.rel (%p150) target = $region24
        $region23: #{tpu_custom_call.1} parent=11 // pred_region
          _
        $region24: #{tpu_custom_call.1} parent=11 // pred_fallthru
          _
      $region12: #{tpu_custom_call.1} parent=5 // pred_fallthru
        _
      %p153 = scmp.lt.s32.totalorder %s14, 2
      // Predicated region
      $region25: #{tpu_custom_call.1} parent=5 // pred_check
        %p154 = pneg %p153
      $region26: #{tpu_custom_call.1} parent=5 // pred_check_branch
        %156 = sbr.rel (%p154) target = $region28
      $region27: #{tpu_custom_call.1} parent=5 // pred_region
        // Predicated region
        $region29: #{tpu_custom_call.1} parent=27 // pred_check
          %p157 = pneg %p55
        $region30: #{tpu_custom_call.1} parent=27 // pred_check_branch
          %159 = sbr.rel (%p157) target = $region32
        $region31: #{tpu_custom_call.1} parent=27 // pred_region
          %p160 = scmp.lt.s32.totalorder %s14, 1
          %s161 = scalar_select %p160, %s14, 1
          %s162 = smul.addr %s161, 128
          %s163 = smul.addr %s162, 4
          %s164 = scalar_lea.vmem %s1, %s163
        $region32: #{tpu_custom_call.1} parent=27 // pred_fallthru
          _
      $region28: #{tpu_custom_call.1} parent=5 // pred_fallthru
        _
      %p165 = scmp.le.s32.totalorder 1, %s14
      %p166 = scmp.lt.s32.totalorder %s14, 3
      %p167 = pnand %p165, %p166
      %p168 = pneg %p167
      // Predicated region
      $region33: #{tpu_custom_call.1} parent=5 // pred_check
        _
      $region34: #{tpu_custom_call.1} parent=5 // pred_check_branch
        %170 = sbr.rel (%p167) target = $region36
      $region35: #{tpu_custom_call.1} parent=5 // pred_region
        %s171 = ssub.s32 %s14, 1
        %p172 = pneg %p35
        %p173 = pneg %p32
        %p174 = scmp.lt.s32.totalorder %s19, 1
        %s175 = scalar_select %p174, %s19, 1
        %s176 = smul.addr %s175, 128
        %s177 = smul.addr %s176, 4
        %s178 = scalar_lea.vmem %s1, %s177
        %p179 = pneg %p61
        %p180 = pneg %p58
        %p181 = pneg %p82
        %p182 = pneg %p79
        %p183 = pneg %p103
        %p184 = pneg %p100
        %p185 = pneg %p129
        %p186 = pneg %p126
        %s187 = sand.u32 %s116, 1
        %s188 = scalar_lea.sflag [#allocation4], %s187
        %s189 = sand.u32 %s116, 1
        %s190 = scalar_lea.vmem [#allocation3], %s189
        %p191 = scmp.lt.s32.totalorder %s19, 1
        %s192 = scalar_select %p191, %s19, 1
        %s193 = smul.addr %s192, 128
        %s194 = smul.addr %s193, 4
        %s195 = scalar_lea.vmem %s1, %s194
        %s196 = sld [smem:[#allocation2]]
        %v197 = vstv %s196
        %v198 = vrcp.pop %v197
        %s199 = vtos %v198
        %v200 = vld [vmem:[%s195] sm:$0xf]
        %v201 = vld [vmem:[%s195 + $0x4] sm:$0xf]
        %v202 = vld [vmem:[%s195 + $0x8] sm:$0xf]
        %v203 = vld [vmem:[%s195 + $0xc] sm:$0xf]
        %v204 = vld [vmem:[%s195 + $0x10] sm:$0xf]
        %v205 = vld [vmem:[%s195 + $0x14] sm:$0xf]
        %v206 = vld [vmem:[%s195 + $0x18] sm:$0xf]
        %v207 = vld [vmem:[%s195 + $0x1c] sm:$0xf]
        %v208 = vld [vmem:[%s195 + $0x20] sm:$0xf]
        %v209 = vld [vmem:[%s195 + $0x24] sm:$0xf]
        %v210 = vld [vmem:[%s195 + $0x28] sm:$0xf]
        %v211 = vld [vmem:[%s195 + $0x2c] sm:$0xf]
        %v212 = vld [vmem:[%s195 + $0x30] sm:$0xf]
        %v213 = vld [vmem:[%s195 + $0x34] sm:$0xf]
        %v214 = vld [vmem:[%s195 + $0x38] sm:$0xf]
        %v215 = vld [vmem:[%s195 + $0x3c] sm:$0xf]
        %v216 = vld [vmem:[%s195 + $0x40] sm:$0xf]
        %v217 = vld [vmem:[%s195 + $0x44] sm:$0xf]
        %v218 = vld [vmem:[%s195 + $0x48] sm:$0xf]
        %v219 = vld [vmem:[%s195 + $0x4c] sm:$0xf]
        %v220 = vld [vmem:[%s195 + $0x50] sm:$0xf]
        %v221 = vld [vmem:[%s195 + $0x54] sm:$0xf]
        %v222 = vld [vmem:[%s195 + $0x58] sm:$0xf]
        %v223 = vld [vmem:[%s195 + $0x5c] sm:$0xf]
        %v224 = vld [vmem:[%s195 + $0x60] sm:$0xf]
        %v225 = vld [vmem:[%s195 + $0x64] sm:$0xf]
        %v226 = vld [vmem:[%s195 + $0x68] sm:$0xf]
        %v227 = vld [vmem:[%s195 + $0x6c] sm:$0xf]
        %v228 = vld [vmem:[%s195 + $0x70] sm:$0xf]
        %v229 = vld [vmem:[%s195 + $0x74] sm:$0xf]
        %v230 = vld [vmem:[%s195 + $0x78] sm:$0xf]
        %v231 = vld [vmem:[%s195 + $0x7c] sm:$0xf]
        %v232 = vld [vmem:[%s195 + $0x80] sm:$0xf]
        %v233 = vld [vmem:[%s195 + $0x84] sm:$0xf]
        %v234 = vld [vmem:[%s195 + $0x88] sm:$0xf]
        %v235 = vld [vmem:[%s195 + $0x8c] sm:$0xf]
        %v236 = vld [vmem:[%s195 + $0x90] sm:$0xf]
        %v237 = vld [vmem:[%s195 + $0x94] sm:$0xf]
        %v238 = vld [vmem:[%s195 + $0x98] sm:$0xf]
        %v239 = vld [vmem:[%s195 + $0x9c] sm:$0xf]
        %v240 = vld [vmem:[%s195 + $0xa0] sm:$0xf]
        %v241 = vld [vmem:[%s195 + $0xa4] sm:$0xf]
        %v242 = vld [vmem:[%s195 + $0xa8] sm:$0xf]
        %v243 = vld [vmem:[%s195 + $0xac] sm:$0xf]
        %v244 = vld [vmem:[%s195 + $0xb0] sm:$0xf]
        %v245 = vld [vmem:[%s195 + $0xb4] sm:$0xf]
        %v246 = vld [vmem:[%s195 + $0xb8] sm:$0xf]
        %v247 = vld [vmem:[%s195 + $0xbc] sm:$0xf]
        %v248 = vld [vmem:[%s195 + $0xc0] sm:$0xf]
        %v249 = vld [vmem:[%s195 + $0xc4] sm:$0xf]
        %v250 = vld [vmem:[%s195 + $0xc8] sm:$0xf]
        %v251 = vld [vmem:[%s195 + $0xcc] sm:$0xf]
        %v252 = vld [vmem:[%s195 + $0xd0] sm:$0xf]
        %v253 = vld [vmem:[%s195 + $0xd4] sm:$0xf]
        %v254 = vld [vmem:[%s195 + $0xd8] sm:$0xf]
        %v255 = vld [vmem:[%s195 + $0xdc] sm:$0xf]
        %v256 = vld [vmem:[%s195 + $0xe0] sm:$0xf]
        %v257 = vld [vmem:[%s195 + $0xe4] sm:$0xf]
        %v258 = vld [vmem:[%s195 + $0xe8] sm:$0xf]
        %v259 = vld [vmem:[%s195 + $0xec] sm:$0xf]
        %v260 = vld [vmem:[%s195 + $0xf0] sm:$0xf]
        %v261 = vld [vmem:[%s195 + $0xf4] sm:$0xf]
        %v262 = vld [vmem:[%s195 + $0xf8] sm:$0xf]
        %v263 = vld [vmem:[%s195 + $0xfc] sm:$0xf]
        %v264 = vld [vmem:[%s195 + $0x100] sm:$0xf]
        %v265 = vld [vmem:[%s195 + $0x104] sm:$0xf]
        %v266 = vld [vmem:[%s195 + $0x108] sm:$0xf]
        %v267 = vld [vmem:[%s195 + $0x10c] sm:$0xf]
        %v268 = vld [vmem:[%s195 + $0x110] sm:$0xf]
        %v269 = vld [vmem:[%s195 + $0x114] sm:$0xf]
        %v270 = vld [vmem:[%s195 + $0x118] sm:$0xf]
        %v271 = vld [vmem:[%s195 + $0x11c] sm:$0xf]
        %v272 = vld [vmem:[%s195 + $0x120] sm:$0xf]
        %v273 = vld [vmem:[%s195 + $0x124] sm:$0xf]
        %v274 = vld [vmem:[%s195 + $0x128] sm:$0xf]
        %v275 = vld [vmem:[%s195 + $0x12c] sm:$0xf]
        %v276 = vld [vmem:[%s195 + $0x130] sm:$0xf]
        %v277 = vld [vmem:[%s195 + $0x134] sm:$0xf]
        %v278 = vld [vmem:[%s195 + $0x138] sm:$0xf]
        %v279 = vld [vmem:[%s195 + $0x13c] sm:$0xf]
        %v280 = vld [vmem:[%s195 + $0x140] sm:$0xf]
        %v281 = vld [vmem:[%s195 + $0x144] sm:$0xf]
        %v282 = vld [vmem:[%s195 + $0x148] sm:$0xf]
        %v283 = vld [vmem:[%s195 + $0x14c] sm:$0xf]
        %v284 = vld [vmem:[%s195 + $0x150] sm:$0xf]
        %v285 = vld [vmem:[%s195 + $0x154] sm:$0xf]
        %v286 = vld [vmem:[%s195 + $0x158] sm:$0xf]
        %v287 = vld [vmem:[%s195 + $0x15c] sm:$0xf]
        %v288 = vld [vmem:[%s195 + $0x160] sm:$0xf]
        %v289 = vld [vmem:[%s195 + $0x164] sm:$0xf]
        %v290 = vld [vmem:[%s195 + $0x168] sm:$0xf]
        %v291 = vld [vmem:[%s195 + $0x16c] sm:$0xf]
        %v292 = vld [vmem:[%s195 + $0x170] sm:$0xf]
        %v293 = vld [vmem:[%s195 + $0x174] sm:$0xf]
        %v294 = vld [vmem:[%s195 + $0x178] sm:$0xf]
        %v295 = vld [vmem:[%s195 + $0x17c] sm:$0xf]
        %v296 = vld [vmem:[%s195 + $0x180] sm:$0xf]
        %v297 = vld [vmem:[%s195 + $0x184] sm:$0xf]
        %v298 = vld [vmem:[%s195 + $0x188] sm:$0xf]
        %v299 = vld [vmem:[%s195 + $0x18c] sm:$0xf]
        %v300 = vld [vmem:[%s195 + $0x190] sm:$0xf]
        %v301 = vld [vmem:[%s195 + $0x194] sm:$0xf]
        %v302 = vld [vmem:[%s195 + $0x198] sm:$0xf]
        %v303 = vld [vmem:[%s195 + $0x19c] sm:$0xf]
        %v304 = vld [vmem:[%s195 + $0x1a0] sm:$0xf]
        %v305 = vld [vmem:[%s195 + $0x1a4] sm:$0xf]
        %v306 = vld [vmem:[%s195 + $0x1a8] sm:$0xf]
        %v307 = vld [vmem:[%s195 + $0x1ac] sm:$0xf]
        %v308 = vld [vmem:[%s195 + $0x1b0] sm:$0xf]
        %v309 = vld [vmem:[%s195 + $0x1b4] sm:$0xf]
        %v310 = vld [vmem:[%s195 + $0x1b8] sm:$0xf]
        %v311 = vld [vmem:[%s195 + $0x1bc] sm:$0xf]
        %v312 = vld [vmem:[%s195 + $0x1c0] sm:$0xf]
        %v313 = vld [vmem:[%s195 + $0x1c4] sm:$0xf]
        %v314 = vld [vmem:[%s195 + $0x1c8] sm:$0xf]
        %v315 = vld [vmem:[%s195 + $0x1cc] sm:$0xf]
        %v316 = vld [vmem:[%s195 + $0x1d0] sm:$0xf]
        %v317 = vld [vmem:[%s195 + $0x1d4] sm:$0xf]
        %v318 = vld [vmem:[%s195 + $0x1d8] sm:$0xf]
        %v319 = vld [vmem:[%s195 + $0x1dc] sm:$0xf]
        %v320 = vld [vmem:[%s195 + $0x1e0] sm:$0xf]
        %v321 = vld [vmem:[%s195 + $0x1e4] sm:$0xf]
        %v322 = vld [vmem:[%s195 + $0x1e8] sm:$0xf]
        %v323 = vld [vmem:[%s195 + $0x1ec] sm:$0xf]
        %v324 = vld [vmem:[%s195 + $0x1f0] sm:$0xf]
        %v325 = vld [vmem:[%s195 + $0x1f4] sm:$0xf]
        %v326 = vld [vmem:[%s195 + $0x1f8] sm:$0xf]
        %v327 = vld [vmem:[%s195 + $0x1fc] sm:$0xf]
        %v328 = vunpack.c.l.bf16 %v200
        %v329 = vunpack.c.l.bf16 %v201
        %v330 = vunpack.c.l.bf16 %v202
        %v331 = vunpack.c.l.bf16 %v203
        %v332 = vunpack.c.l.bf16 %v204
        %v333 = vunpack.c.l.bf16 %v205
        %v334 = vunpack.c.l.bf16 %v206
        %v335 = vunpack.c.l.bf16 %v207
        %v336 = vunpack.c.l.bf16 %v208
        %v337 = vunpack.c.l.bf16 %v209
        %v338 = vunpack.c.l.bf16 %v210
        %v339 = vunpack.c.l.bf16 %v211
        %v340 = vunpack.c.l.bf16 %v212
        %v341 = vunpack.c.l.bf16 %v213
        %v342 = vunpack.c.l.bf16 %v214
        %v343 = vunpack.c.l.bf16 %v215
        %v344 = vunpack.c.l.bf16 %v216
        %v345 = vunpack.c.l.bf16 %v217
        %v346 = vunpack.c.l.bf16 %v218
        %v347 = vunpack.c.l.bf16 %v219
        %v348 = vunpack.c.l.bf16 %v220
        %v349 = vunpack.c.l.bf16 %v221
        %v350 = vunpack.c.l.bf16 %v222
        %v351 = vunpack.c.l.bf16 %v223
        %v352 = vunpack.c.l.bf16 %v224
        %v353 = vunpack.c.l.bf16 %v225
        %v354 = vunpack.c.l.bf16 %v226
        %v355 = vunpack.c.l.bf16 %v227
        %v356 = vunpack.c.l.bf16 %v228
        %v357 = vunpack.c.l.bf16 %v229
        %v358 = vunpack.c.l.bf16 %v230
        %v359 = vunpack.c.l.bf16 %v231
        %v360 = vunpack.c.l.bf16 %v232
        %v361 = vunpack.c.l.bf16 %v233
        %v362 = vunpack.c.l.bf16 %v234
        %v363 = vunpack.c.l.bf16 %v235
        %v364 = vunpack.c.l.bf16 %v236
        %v365 = vunpack.c.l.bf16 %v237
        %v366 = vunpack.c.l.bf16 %v238
        %v367 = vunpack.c.l.bf16 %v239
        %v368 = vunpack.c.l.bf16 %v240
        %v369 = vunpack.c.l.bf16 %v241
        %v370 = vunpack.c.l.bf16 %v242
        %v371 = vunpack.c.l.bf16 %v243
        %v372 = vunpack.c.l.bf16 %v244
        %v373 = vunpack.c.l.bf16 %v245
        %v374 = vunpack.c.l.bf16 %v246
        %v375 = vunpack.c.l.bf16 %v247
        %v376 = vunpack.c.l.bf16 %v248
        %v377 = vunpack.c.l.bf16 %v249
        %v378 = vunpack.c.l.bf16 %v250
        %v379 = vunpack.c.l.bf16 %v251
        %v380 = vunpack.c.l.bf16 %v252
        %v381 = vunpack.c.l.bf16 %v253
        %v382 = vunpack.c.l.bf16 %v254
        %v383 = vunpack.c.l.bf16 %v255
        %v384 = vunpack.c.l.bf16 %v256
        %v385 = vunpack.c.l.bf16 %v257
        %v386 = vunpack.c.l.bf16 %v258
        %v387 = vunpack.c.l.bf16 %v259
        %v388 = vunpack.c.l.bf16 %v260
        %v389 = vunpack.c.l.bf16 %v261
        %v390 = vunpack.c.l.bf16 %v262
        %v391 = vunpack.c.l.bf16 %v263
        %v392 = vunpack.c.l.bf16 %v264
        %v393 = vunpack.c.l.bf16 %v265
        %v394 = vunpack.c.l.bf16 %v266
        %v395 = vunpack.c.l.bf16 %v267
        %v396 = vunpack.c.l.bf16 %v268
        %v397 = vunpack.c.l.bf16 %v269
        %v398 = vunpack.c.l.bf16 %v270
        %v399 = vunpack.c.l.bf16 %v271
        %v400 = vunpack.c.l.bf16 %v272
        %v401 = vunpack.c.l.bf16 %v273
        %v402 = vunpack.c.l.bf16 %v274
        %v403 = vunpack.c.l.bf16 %v275
        %v404 = vunpack.c.l.bf16 %v276
        %v405 = vunpack.c.l.bf16 %v277
        %v406 = vunpack.c.l.bf16 %v278
        %v407 = vunpack.c.l.bf16 %v279
        %v408 = vunpack.c.l.bf16 %v280
        %v409 = vunpack.c.l.bf16 %v281
        %v410 = vunpack.c.l.bf16 %v282
        %v411 = vunpack.c.l.bf16 %v283
        %v412 = vunpack.c.l.bf16 %v284
        %v413 = vunpack.c.l.bf16 %v285
        %v414 = vunpack.c.l.bf16 %v286
        %v415 = vunpack.c.l.bf16 %v287
        %v416 = vunpack.c.l.bf16 %v288
        %v417 = vunpack.c.l.bf16 %v289
        %v418 = vunpack.c.l.bf16 %v290
        %v419 = vunpack.c.l.bf16 %v291
        %v420 = vunpack.c.l.bf16 %v292
        %v421 = vunpack.c.l.bf16 %v293
        %v422 = vunpack.c.l.bf16 %v294
        %v423 = vunpack.c.l.bf16 %v295
        %v424 = vunpack.c.l.bf16 %v296
        %v425 = vunpack.c.l.bf16 %v297
        %v426 = vunpack.c.l.bf16 %v298
        %v427 = vunpack.c.l.bf16 %v299
        %v428 = vunpack.c.l.bf16 %v300
        %v429 = vunpack.c.l.bf16 %v301
        %v430 = vunpack.c.l.bf16 %v302
        %v431 = vunpack.c.l.bf16 %v303
        %v432 = vunpack.c.l.bf16 %v304
        %v433 = vunpack.c.l.bf16 %v305
        %v434 = vunpack.c.l.bf16 %v306
        %v435 = vunpack.c.l.bf16 %v307
        %v436 = vunpack.c.l.bf16 %v308
        %v437 = vunpack.c.l.bf16 %v309
        %v438 = vunpack.c.l.bf16 %v310
        %v439 = vunpack.c.l.bf16 %v311
        %v440 = vunpack.c.l.bf16 %v312
        %v441 = vunpack.c.l.bf16 %v313
        %v442 = vunpack.c.l.bf16 %v314
        %v443 = vunpack.c.l.bf16 %v315
        %v444 = vunpack.c.l.bf16 %v316
        %v445 = vunpack.c.l.bf16 %v317
        %v446 = vunpack.c.l.bf16 %v318
        %v447 = vunpack.c.l.bf16 %v319
        %v448 = vunpack.c.l.bf16 %v320
        %v449 = vunpack.c.l.bf16 %v321
        %v450 = vunpack.c.l.bf16 %v322
        %v451 = vunpack.c.l.bf16 %v323
        %v452 = vunpack.c.l.bf16 %v324
        %v453 = vunpack.c.l.bf16 %v325
        %v454 = vunpack.c.l.bf16 %v326
        %v455 = vunpack.c.l.bf16 %v327
        %v456 = vmax.f32 %v328, 1e-06
        %v457 = vmax.f32 %v329, 1e-06
        %v458 = vmax.f32 %v330, 1e-06
        %v459 = vmax.f32 %v331, 1e-06
        %v460 = vmax.f32 %v332, 1e-06
        %v461 = vmax.f32 %v333, 1e-06
        %v462 = vmax.f32 %v334, 1e-06
        %v463 = vmax.f32 %v335, 1e-06
        %v464 = vmax.f32 %v336, 1e-06
        %v465 = vmax.f32 %v337, 1e-06
        %v466 = vmax.f32 %v338, 1e-06
        %v467 = vmax.f32 %v339, 1e-06
        %v468 = vmax.f32 %v340, 1e-06
        %v469 = vmax.f32 %v341, 1e-06
        %v470 = vmax.f32 %v342, 1e-06
        %v471 = vmax.f32 %v343, 1e-06
        %v472 = vmax.f32 %v344, 1e-06
        %v473 = vmax.f32 %v345, 1e-06
        %v474 = vmax.f32 %v346, 1e-06
        %v475 = vmax.f32 %v347, 1e-06
        %v476 = vmax.f32 %v348, 1e-06
        %v477 = vmax.f32 %v349, 1e-06
        %v478 = vmax.f32 %v350, 1e-06
        %v479 = vmax.f32 %v351, 1e-06
        %v480 = vmax.f32 %v352, 1e-06
        %v481 = vmax.f32 %v353, 1e-06
        %v482 = vmax.f32 %v354, 1e-06
        %v483 = vmax.f32 %v355, 1e-06
        %v484 = vmax.f32 %v356, 1e-06
        %v485 = vmax.f32 %v357, 1e-06
        %v486 = vmax.f32 %v358, 1e-06
        %v487 = vmax.f32 %v359, 1e-06
        %v488 = vmax.f32 %v360, 1e-06
        %v489 = vmax.f32 %v361, 1e-06
        %v490 = vmax.f32 %v362, 1e-06
        %v491 = vmax.f32 %v363, 1e-06
        %v492 = vmax.f32 %v364, 1e-06
        %v493 = vmax.f32 %v365, 1e-06
        %v494 = vmax.f32 %v366, 1e-06
        %v495 = vmax.f32 %v367, 1e-06
        %v496 = vmax.f32 %v368, 1e-06
        %v497 = vmax.f32 %v369, 1e-06
        %v498 = vmax.f32 %v370, 1e-06
        %v499 = vmax.f32 %v371, 1e-06
        %v500 = vmax.f32 %v372, 1e-06
        %v501 = vmax.f32 %v373, 1e-06
        %v502 = vmax.f32 %v374, 1e-06
        %v503 = vmax.f32 %v375, 1e-06
        %v504 = vmax.f32 %v376, 1e-06
        %v505 = vmax.f32 %v377, 1e-06
        %v506 = vmax.f32 %v378, 1e-06
        %v507 = vmax.f32 %v379, 1e-06
        %v508 = vmax.f32 %v380, 1e-06
        %v509 = vmax.f32 %v381, 1e-06
        %v510 = vmax.f32 %v382, 1e-06
        %v511 = vmax.f32 %v383, 1e-06
        %v512 = vmax.f32 %v384, 1e-06
        %v513 = vmax.f32 %v385, 1e-06
        %v514 = vmax.f32 %v386, 1e-06
        %v515 = vmax.f32 %v387, 1e-06
        %v516 = vmax.f32 %v388, 1e-06
        %v517 = vmax.f32 %v389, 1e-06
        %v518 = vmax.f32 %v390, 1e-06
        %v519 = vmax.f32 %v391, 1e-06
        %v520 = vmax.f32 %v392, 1e-06
        %v521 = vmax.f32 %v393, 1e-06
        %v522 = vmax.f32 %v394, 1e-06
        %v523 = vmax.f32 %v395, 1e-06
        %v524 = vmax.f32 %v396, 1e-06
        %v525 = vmax.f32 %v397, 1e-06
        %v526 = vmax.f32 %v398, 1e-06
        %v527 = vmax.f32 %v399, 1e-06
        %v528 = vmax.f32 %v400, 1e-06
        %v529 = vmax.f32 %v401, 1e-06
        %v530 = vmax.f32 %v402, 1e-06
        %v531 = vmax.f32 %v403, 1e-06
        %v532 = vmax.f32 %v404, 1e-06
        %v533 = vmax.f32 %v405, 1e-06
        %v534 = vmax.f32 %v406, 1e-06
        %v535 = vmax.f32 %v407, 1e-06
        %v536 = vmax.f32 %v408, 1e-06
        %v537 = vmax.f32 %v409, 1e-06
        %v538 = vmax.f32 %v410, 1e-06
        %v539 = vmax.f32 %v411, 1e-06
        %v540 = vmax.f32 %v412, 1e-06
        %v541 = vmax.f32 %v413, 1e-06
        %v542 = vmax.f32 %v414, 1e-06
        %v543 = vmax.f32 %v415, 1e-06
        %v544 = vmax.f32 %v416, 1e-06
        %v545 = vmax.f32 %v417, 1e-06
        %v546 = vmax.f32 %v418, 1e-06
        %v547 = vmax.f32 %v419, 1e-06
        %v548 = vmax.f32 %v420, 1e-06
        %v549 = vmax.f32 %v421, 1e-06
        %v550 = vmax.f32 %v422, 1e-06
        %v551 = vmax.f32 %v423, 1e-06
        %v552 = vmax.f32 %v424, 1e-06
        %v553 = vmax.f32 %v425, 1e-06
        %v554 = vmax.f32 %v426, 1e-06
        %v555 = vmax.f32 %v427, 1e-06
        %v556 = vmax.f32 %v428, 1e-06
        %v557 = vmax.f32 %v429, 1e-06
        %v558 = vmax.f32 %v430, 1e-06
        %v559 = vmax.f32 %v431, 1e-06
        %v560 = vmax.f32 %v432, 1e-06
        %v561 = vmax.f32 %v433, 1e-06
        %v562 = vmax.f32 %v434, 1e-06
        %v563 = vmax.f32 %v435, 1e-06
        %v564 = vmax.f32 %v436, 1e-06
        %v565 = vmax.f32 %v437, 1e-06
        %v566 = vmax.f32 %v438, 1e-06
        %v567 = vmax.f32 %v439, 1e-06
        %v568 = vmax.f32 %v440, 1e-06
        %v569 = vmax.f32 %v441, 1e-06
        %v570 = vmax.f32 %v442, 1e-06
        %v571 = vmax.f32 %v443, 1e-06
        %v572 = vmax.f32 %v444, 1e-06
        %v573 = vmax.f32 %v445, 1e-06
        %v574 = vmax.f32 %v446, 1e-06
        %v575 = vmax.f32 %v447, 1e-06
        %v576 = vmax.f32 %v448, 1e-06
        %v577 = vmax.f32 %v449, 1e-06
        %v578 = vmax.f32 %v450, 1e-06
        %v579 = vmax.f32 %v451, 1e-06
        %v580 = vmax.f32 %v452, 1e-06
        %v581 = vmax.f32 %v453, 1e-06
        %v582 = vmax.f32 %v454, 1e-06
        %v583 = vmax.f32 %v455, 1e-06
        %v584 = vlog2.pop %v456
        %v585 = vmul.f32 %v584, 0.6931472
        %v586 = vlog2.pop %v457
        %v587 = vmul.f32 %v586, 0.6931472
        %v588 = vlog2.pop %v458
        %v589 = vmul.f32 %v588, 0.6931472
        %v590 = vlog2.pop %v459
        %v591 = vmul.f32 %v590, 0.6931472
        %v592 = vlog2.pop %v460
        %v593 = vmul.f32 %v592, 0.6931472
        %v594 = vlog2.pop %v461
        %v595 = vmul.f32 %v594, 0.6931472
        %v596 = vlog2.pop %v462
        %v597 = vmul.f32 %v596, 0.6931472
        %v598 = vlog2.pop %v463
        %v599 = vmul.f32 %v598, 0.6931472
        %v600 = vlog2.pop %v464
        %v601 = vmul.f32 %v600, 0.6931472
        %v602 = vlog2.pop %v465
        %v603 = vmul.f32 %v602, 0.6931472
        %v604 = vlog2.pop %v466
        %v605 = vmul.f32 %v604, 0.6931472
        %v606 = vlog2.pop %v467
        %v607 = vmul.f32 %v606, 0.6931472
        %v608 = vlog2.pop %v468
        %v609 = vmul.f32 %v608, 0.6931472
        %v610 = vlog2.pop %v469
        %v611 = vmul.f32 %v610, 0.6931472
        %v612 = vlog2.pop %v470
        %v613 = vmul.f32 %v612, 0.6931472
        %v614 = vlog2.pop %v471
        %v615 = vmul.f32 %v614, 0.6931472
        %v616 = vlog2.pop %v472
        %v617 = vmul.f32 %v616, 0.6931472
        %v618 = vlog2.pop %v473
        %v619 = vmul.f32 %v618, 0.6931472
        %v620 = vlog2.pop %v474
        %v621 = vmul.f32 %v620, 0.6931472
        %v622 = vlog2.pop %v475
        %v623 = vmul.f32 %v622, 0.6931472
        %v624 = vlog2.pop %v476
        %v625 = vmul.f32 %v624, 0.6931472
        %v626 = vlog2.pop %v477
        %v627 = vmul.f32 %v626, 0.6931472
        %v628 = vlog2.pop %v478
        %v629 = vmul.f32 %v628, 0.6931472
        %v630 = vlog2.pop %v479
        %v631 = vmul.f32 %v630, 0.6931472
        %v632 = vlog2.pop %v480
        %v633 = vmul.f32 %v632, 0.6931472
        %v634 = vlog2.pop %v481
        %v635 = vmul.f32 %v634, 0.6931472
        %v636 = vlog2.pop %v482
        %v637 = vmul.f32 %v636, 0.6931472
        %v638 = vlog2.pop %v483
        %v639 = vmul.f32 %v638, 0.6931472
        %v640 = vlog2.pop %v484
        %v641 = vmul.f32 %v640, 0.6931472
        %v642 = vlog2.pop %v485
        %v643 = vmul.f32 %v642, 0.6931472
        %v644 = vlog2.pop %v486
        %v645 = vmul.f32 %v644, 0.6931472
        %v646 = vlog2.pop %v487
        %v647 = vmul.f32 %v646, 0.6931472
        %v648 = vlog2.pop %v488
        %v649 = vmul.f32 %v648, 0.6931472
        %v650 = vlog2.pop %v489
        %v651 = vmul.f32 %v650, 0.6931472
        %v652 = vlog2.pop %v490
        %v653 = vmul.f32 %v652, 0.6931472
        %v654 = vlog2.pop %v491
        %v655 = vmul.f32 %v654, 0.6931472
        %v656 = vlog2.pop %v492
        %v657 = vmul.f32 %v656, 0.6931472
        %v658 = vlog2.pop %v493
        %v659 = vmul.f32 %v658, 0.6931472
        %v660 = vlog2.pop %v494
        %v661 = vmul.f32 %v660, 0.6931472
        %v662 = vlog2.pop %v495
        %v663 = vmul.f32 %v662, 0.6931472
        %v664 = vlog2.pop %v496
        %v665 = vmul.f32 %v664, 0.6931472
        %v666 = vlog2.pop %v497
        %v667 = vmul.f32 %v666, 0.6931472
        %v668 = vlog2.pop %v498
        %v669 = vmul.f32 %v668, 0.6931472
        %v670 = vlog2.pop %v499
        %v671 = vmul.f32 %v670, 0.6931472
        %v672 = vlog2.pop %v500
        %v673 = vmul.f32 %v672, 0.6931472
        %v674 = vlog2.pop %v501
        %v675 = vmul.f32 %v674, 0.6931472
        %v676 = vlog2.pop %v502
        %v677 = vmul.f32 %v676, 0.6931472
        %v678 = vlog2.pop %v503
        %v679 = vmul.f32 %v678, 0.6931472
        %v680 = vlog2.pop %v504
        %v681 = vmul.f32 %v680, 0.6931472
        %v682 = vlog2.pop %v505
        %v683 = vmul.f32 %v682, 0.6931472
        %v684 = vlog2.pop %v506
        %v685 = vmul.f32 %v684, 0.6931472
        %v686 = vlog2.pop %v507
        %v687 = vmul.f32 %v686, 0.6931472
        %v688 = vlog2.pop %v508
        %v689 = vmul.f32 %v688, 0.6931472
        %v690 = vlog2.pop %v509
        %v691 = vmul.f32 %v690, 0.6931472
        %v692 = vlog2.pop %v510
        %v693 = vmul.f32 %v692, 0.6931472
        %v694 = vlog2.pop %v511
        %v695 = vmul.f32 %v694, 0.6931472
        %v696 = vlog2.pop %v512
        %v697 = vmul.f32 %v696, 0.6931472
        %v698 = vlog2.pop %v513
        %v699 = vmul.f32 %v698, 0.6931472
        %v700 = vlog2.pop %v514
        %v701 = vmul.f32 %v700, 0.6931472
        %v702 = vlog2.pop %v515
        %v703 = vmul.f32 %v702, 0.6931472
        %v704 = vlog2.pop %v516
        %v705 = vmul.f32 %v704, 0.6931472
        %v706 = vlog2.pop %v517
        %v707 = vmul.f32 %v706, 0.6931472
        %v708 = vlog2.pop %v518
        %v709 = vmul.f32 %v708, 0.6931472
        %v710 = vlog2.pop %v519
        %v711 = vmul.f32 %v710, 0.6931472
        %v712 = vlog2.pop %v520
        %v713 = vmul.f32 %v712, 0.6931472
        %v714 = vlog2.pop %v521
        %v715 = vmul.f32 %v714, 0.6931472
        %v716 = vlog2.pop %v522
        %v717 = vmul.f32 %v716, 0.6931472
        %v718 = vlog2.pop %v523
        %v719 = vmul.f32 %v718, 0.6931472
        %v720 = vlog2.pop %v524
        %v721 = vmul.f32 %v720, 0.6931472
        %v722 = vlog2.pop %v525
        %v723 = vmul.f32 %v722, 0.6931472
        %v724 = vlog2.pop %v526
        %v725 = vmul.f32 %v724, 0.6931472
        %v726 = vlog2.pop %v527
        %v727 = vmul.f32 %v726, 0.6931472
        %v728 = vlog2.pop %v528
        %v729 = vmul.f32 %v728, 0.6931472
        %v730 = vlog2.pop %v529
        %v731 = vmul.f32 %v730, 0.6931472
        %v732 = vlog2.pop %v530
        %v733 = vmul.f32 %v732, 0.6931472
        %v734 = vlog2.pop %v531
        %v735 = vmul.f32 %v734, 0.6931472
        %v736 = vlog2.pop %v532
        %v737 = vmul.f32 %v736, 0.6931472
        %v738 = vlog2.pop %v533
        %v739 = vmul.f32 %v738, 0.6931472
        %v740 = vlog2.pop %v534
        %v741 = vmul.f32 %v740, 0.6931472
        %v742 = vlog2.pop %v535
        %v743 = vmul.f32 %v742, 0.6931472
        %v744 = vlog2.pop %v536
        %v745 = vmul.f32 %v744, 0.6931472
        %v746 = vlog2.pop %v537
        %v747 = vmul.f32 %v746, 0.6931472
        %v748 = vlog2.pop %v538
        %v749 = vmul.f32 %v748, 0.6931472
        %v750 = vlog2.pop %v539
        %v751 = vmul.f32 %v750, 0.6931472
        %v752 = vlog2.pop %v540
        %v753 = vmul.f32 %v752, 0.6931472
        %v754 = vlog2.pop %v541
        %v755 = vmul.f32 %v754, 0.6931472
        %v756 = vlog2.pop %v542
        %v757 = vmul.f32 %v756, 0.6931472
        %v758 = vlog2.pop %v543
        %v759 = vmul.f32 %v758, 0.6931472
        %v760 = vlog2.pop %v544
        %v761 = vmul.f32 %v760, 0.6931472
        %v762 = vlog2.pop %v545
        %v763 = vmul.f32 %v762, 0.6931472
        %v764 = vlog2.pop %v546
        %v765 = vmul.f32 %v764, 0.6931472
        %v766 = vlog2.pop %v547
        %v767 = vmul.f32 %v766, 0.6931472
        %v768 = vlog2.pop %v548
        %v769 = vmul.f32 %v768, 0.6931472
        %v770 = vlog2.pop %v549
        %v771 = vmul.f32 %v770, 0.6931472
        %v772 = vlog2.pop %v550
        %v773 = vmul.f32 %v772, 0.6931472
        %v774 = vlog2.pop %v551
        %v775 = vmul.f32 %v774, 0.6931472
        %v776 = vlog2.pop %v552
        %v777 = vmul.f32 %v776, 0.6931472
        %v778 = vlog2.pop %v553
        %v779 = vmul.f32 %v778, 0.6931472
        %v780 = vlog2.pop %v554
        %v781 = vmul.f32 %v780, 0.6931472
        %v782 = vlog2.pop %v555
        %v783 = vmul.f32 %v782, 0.6931472
        %v784 = vlog2.pop %v556
        %v785 = vmul.f32 %v784, 0.6931472
        %v786 = vlog2.pop %v557
        %v787 = vmul.f32 %v786, 0.6931472
        %v788 = vlog2.pop %v558
        %v789 = vmul.f32 %v788, 0.6931472
        %v790 = vlog2.pop %v559
        %v791 = vmul.f32 %v790, 0.6931472
        %v792 = vlog2.pop %v560
        %v793 = vmul.f32 %v792, 0.6931472
        %v794 = vlog2.pop %v561
        %v795 = vmul.f32 %v794, 0.6931472
        %v796 = vlog2.pop %v562
        %v797 = vmul.f32 %v796, 0.6931472
        %v798 = vlog2.pop %v563
        %v799 = vmul.f32 %v798, 0.6931472
        %v800 = vlog2.pop %v564
        %v801 = vmul.f32 %v800, 0.6931472
        %v802 = vlog2.pop %v565
        %v803 = vmul.f32 %v802, 0.6931472
        %v804 = vlog2.pop %v566
        %v805 = vmul.f32 %v804, 0.6931472
        %v806 = vlog2.pop %v567
        %v807 = vmul.f32 %v806, 0.6931472
        %v808 = vlog2.pop %v568
        %v809 = vmul.f32 %v808, 0.6931472
        %v810 = vlog2.pop %v569
        %v811 = vmul.f32 %v810, 0.6931472
        %v812 = vlog2.pop %v570
        %v813 = vmul.f32 %v812, 0.6931472
        %v814 = vlog2.pop %v571
        %v815 = vmul.f32 %v814, 0.6931472
        %v816 = vlog2.pop %v572
        %v817 = vmul.f32 %v816, 0.6931472
        %v818 = vlog2.pop %v573
        %v819 = vmul.f32 %v818, 0.6931472
        %v820 = vlog2.pop %v574
        %v821 = vmul.f32 %v820, 0.6931472
        %v822 = vlog2.pop %v575
        %v823 = vmul.f32 %v822, 0.6931472
        %v824 = vlog2.pop %v576
        %v825 = vmul.f32 %v824, 0.6931472
        %v826 = vlog2.pop %v577
        %v827 = vmul.f32 %v826, 0.6931472
        %v828 = vlog2.pop %v578
        %v829 = vmul.f32 %v828, 0.6931472
        %v830 = vlog2.pop %v579
        %v831 = vmul.f32 %v830, 0.6931472
        %v832 = vlog2.pop %v580
        %v833 = vmul.f32 %v832, 0.6931472
        %v834 = vlog2.pop %v581
        %v835 = vmul.f32 %v834, 0.6931472
        %v836 = vlog2.pop %v582
        %v837 = vmul.f32 %v836, 0.6931472
        %v838 = vlog2.pop %v583
        %v839 = vmul.f32 %v838, 0.6931472
        %v840 = vstv %s196
        %v841 = vmul.f32 %v840, %v585
        %v842 = vmul.f32 %v840, %v587
        %v843 = vmul.f32 %v840, %v589
        %v844 = vmul.f32 %v840, %v591
        %v845 = vmul.f32 %v840, %v593
        %v846 = vmul.f32 %v840, %v595
        %v847 = vmul.f32 %v840, %v597
        %v848 = vmul.f32 %v840, %v599
        %v849 = vmul.f32 %v840, %v601
        %v850 = vmul.f32 %v840, %v603
        %v851 = vmul.f32 %v840, %v605
        %v852 = vmul.f32 %v840, %v607
        %v853 = vmul.f32 %v840, %v609
        %v854 = vmul.f32 %v840, %v611
        %v855 = vmul.f32 %v840, %v613
        %v856 = vmul.f32 %v840, %v615
        %v857 = vmul.f32 %v840, %v617
        %v858 = vmul.f32 %v840, %v619
        %v859 = vmul.f32 %v840, %v621
        %v860 = vmul.f32 %v840, %v623
        %v861 = vmul.f32 %v840, %v625
        %v862 = vmul.f32 %v840, %v627
        %v863 = vmul.f32 %v840, %v629
        %v864 = vmul.f32 %v840, %v631
        %v865 = vmul.f32 %v840, %v633
        %v866 = vmul.f32 %v840, %v635
        %v867 = vmul.f32 %v840, %v637
        %v868 = vmul.f32 %v840, %v639
        %v869 = vmul.f32 %v840, %v641
        %v870 = vmul.f32 %v840, %v643
        %v871 = vmul.f32 %v840, %v645
        %v872 = vmul.f32 %v840, %v647
        %v873 = vmul.f32 %v840, %v649
        %v874 = vmul.f32 %v840, %v651
        %v875 = vmul.f32 %v840, %v653
        %v876 = vmul.f32 %v840, %v655
        %v877 = vmul.f32 %v840, %v657
        %v878 = vmul.f32 %v840, %v659
        %v879 = vmul.f32 %v840, %v661
        %v880 = vmul.f32 %v840, %v663
        %v881 = vmul.f32 %v840, %v665
        %v882 = vmul.f32 %v840, %v667
        %v883 = vmul.f32 %v840, %v669
        %v884 = vmul.f32 %v840, %v671
        %v885 = vmul.f32 %v840, %v673
        %v886 = vmul.f32 %v840, %v675
        %v887 = vmul.f32 %v840, %v677
        %v888 = vmul.f32 %v840, %v679
        %v889 = vmul.f32 %v840, %v681
        %v890 = vmul.f32 %v840, %v683
        %v891 = vmul.f32 %v840, %v685
        %v892 = vmul.f32 %v840, %v687
        %v893 = vmul.f32 %v840, %v689
        %v894 = vmul.f32 %v840, %v691
        %v895 = vmul.f32 %v840, %v693
        %v896 = vmul.f32 %v840, %v695
        %v897 = vmul.f32 %v840, %v697
        %v898 = vmul.f32 %v840, %v699
        %v899 = vmul.f32 %v840, %v701
        %v900 = vmul.f32 %v840, %v703
        %v901 = vmul.f32 %v840, %v705
        %v902 = vmul.f32 %v840, %v707
        %v903 = vmul.f32 %v840, %v709
        %v904 = vmul.f32 %v840, %v711
        %v905 = vmul.f32 %v840, %v713
        %v906 = vmul.f32 %v840, %v715
        %v907 = vmul.f32 %v840, %v717
        %v908 = vmul.f32 %v840, %v719
        %v909 = vmul.f32 %v840, %v721
        %v910 = vmul.f32 %v840, %v723
        %v911 = vmul.f32 %v840, %v725
        %v912 = vmul.f32 %v840, %v727
        %v913 = vmul.f32 %v840, %v729
        %v914 = vmul.f32 %v840, %v731
        %v915 = vmul.f32 %v840, %v733
        %v916 = vmul.f32 %v840, %v735
        %v917 = vmul.f32 %v840, %v737
        %v918 = vmul.f32 %v840, %v739
        %v919 = vmul.f32 %v840, %v741
        %v920 = vmul.f32 %v840, %v743
        %v921 = vmul.f32 %v840, %v745
        %v922 = vmul.f32 %v840, %v747
        %v923 = vmul.f32 %v840, %v749
        %v924 = vmul.f32 %v840, %v751
        %v925 = vmul.f32 %v840, %v753
        %v926 = vmul.f32 %v840, %v755
        %v927 = vmul.f32 %v840, %v757
        %v928 = vmul.f32 %v840, %v759
        %v929 = vmul.f32 %v840, %v761
        %v930 = vmul.f32 %v840, %v763
        %v931 = vmul.f32 %v840, %v765
        %v932 = vmul.f32 %v840, %v767
        %v933 = vmul.f32 %v840, %v769
        %v934 = vmul.f32 %v840, %v771
        %v935 = vmul.f32 %v840, %v773
        %v936 = vmul.f32 %v840, %v775
        %v937 = vmul.f32 %v840, %v777
        %v938 = vmul.f32 %v840, %v779
        %v939 = vmul.f32 %v840, %v781
        %v940 = vmul.f32 %v840, %v783
        %v941 = vmul.f32 %v840, %v785
        %v942 = vmul.f32 %v840, %v787
        %v943 = vmul.f32 %v840, %v789
        %v944 = vmul.f32 %v840, %v791
        %v945 = vmul.f32 %v840, %v793
        %v946 = vmul.f32 %v840, %v795
        %v947 = vmul.f32 %v840, %v797
        %v948 = vmul.f32 %v840, %v799
        %v949 = vmul.f32 %v840, %v801
        %v950 = vmul.f32 %v840, %v803
        %v951 = vmul.f32 %v840, %v805
        %v952 = vmul.f32 %v840, %v807
        %v953 = vmul.f32 %v840, %v809
        %v954 = vmul.f32 %v840, %v811
        %v955 = vmul.f32 %v840, %v813
        %v956 = vmul.f32 %v840, %v815
        %v957 = vmul.f32 %v840, %v817
        %v958 = vmul.f32 %v840, %v819
        %v959 = vmul.f32 %v840, %v821
        %v960 = vmul.f32 %v840, %v823
        %v961 = vmul.f32 %v840, %v825
        %v962 = vmul.f32 %v840, %v827
        %v963 = vmul.f32 %v840, %v829
        %v964 = vmul.f32 %v840, %v831
        %v965 = vmul.f32 %v840, %v833
        %v966 = vmul.f32 %v840, %v835
        %v967 = vmul.f32 %v840, %v837
        %v968 = vmul.f32 %v840, %v839
        %v969 = vmul.f32 %v841, 1.442695
        %v970 = vpow.pop %v969
        %v971 = vmul.f32 %v842, 1.442695
        %v972 = vpow.pop %v971
        %v973 = vmul.f32 %v843, 1.442695
        %v974 = vpow.pop %v973
        %v975 = vmul.f32 %v844, 1.442695
        %v976 = vpow.pop %v975
        %v977 = vmul.f32 %v845, 1.442695
        %v978 = vpow.pop %v977
        %v979 = vmul.f32 %v846, 1.442695
        %v980 = vpow.pop %v979
        %v981 = vmul.f32 %v847, 1.442695
        %v982 = vpow.pop %v981
        %v983 = vmul.f32 %v848, 1.442695
        %v984 = vpow.pop %v983
        %v985 = vmul.f32 %v849, 1.442695
        %v986 = vpow.pop %v985
        %v987 = vmul.f32 %v850, 1.442695
        %v988 = vpow.pop %v987
        %v989 = vmul.f32 %v851, 1.442695
        %v990 = vpow.pop %v989
        %v991 = vmul.f32 %v852, 1.442695
        %v992 = vpow.pop %v991
        %v993 = vmul.f32 %v853, 1.442695
        %v994 = vpow.pop %v993
        %v995 = vmul.f32 %v854, 1.442695
        %v996 = vpow.pop %v995
        %v997 = vmul.f32 %v855, 1.442695
        %v998 = vpow.pop %v997
        %v999 = vmul.f32 %v856, 1.442695
        %v1000 = vpow.pop %v999
        %v1001 = vmul.f32 %v857, 1.442695
        %v1002 = vpow.pop %v1001
        %v1003 = vmul.f32 %v858, 1.442695
        %v1004 = vpow.pop %v1003
        %v1005 = vmul.f32 %v859, 1.442695
        %v1006 = vpow.pop %v1005
        %v1007 = vmul.f32 %v860, 1.442695
        %v1008 = vpow.pop %v1007
        %v1009 = vmul.f32 %v861, 1.442695
        %v1010 = vpow.pop %v1009
        %v1011 = vmul.f32 %v862, 1.442695
        %v1012 = vpow.pop %v1011
        %v1013 = vmul.f32 %v863, 1.442695
        %v1014 = vpow.pop %v1013
        %v1015 = vmul.f32 %v864, 1.442695
        %v1016 = vpow.pop %v1015
        %v1017 = vmul.f32 %v865, 1.442695
        %v1018 = vpow.pop %v1017
        %v1019 = vmul.f32 %v866, 1.442695
        %v1020 = vpow.pop %v1019
        %v1021 = vmul.f32 %v867, 1.442695
        %v1022 = vpow.pop %v1021
        %v1023 = vmul.f32 %v868, 1.442695
        %v1024 = vpow.pop %v1023
        %v1025 = vmul.f32 %v869, 1.442695
        %v1026 = vpow.pop %v1025
        %v1027 = vmul.f32 %v870, 1.442695
        %v1028 = vpow.pop %v1027
        %v1029 = vmul.f32 %v871, 1.442695
        %v1030 = vpow.pop %v1029
        %v1031 = vmul.f32 %v872, 1.442695
        %v1032 = vpow.pop %v1031
        %v1033 = vmul.f32 %v873, 1.442695
        %v1034 = vpow.pop %v1033
        %v1035 = vmul.f32 %v874, 1.442695
        %v1036 = vpow.pop %v1035
        %v1037 = vmul.f32 %v875, 1.442695
        %v1038 = vpow.pop %v1037
        %v1039 = vmul.f32 %v876, 1.442695
        %v1040 = vpow.pop %v1039
        %v1041 = vmul.f32 %v877, 1.442695
        %v1042 = vpow.pop %v1041
        %v1043 = vmul.f32 %v878, 1.442695
        %v1044 = vpow.pop %v1043
        %v1045 = vmul.f32 %v879, 1.442695
        %v1046 = vpow.pop %v1045
        %v1047 = vmul.f32 %v880, 1.442695
        %v1048 = vpow.pop %v1047
        %v1049 = vmul.f32 %v881, 1.442695
        %v1050 = vpow.pop %v1049
        %v1051 = vmul.f32 %v882, 1.442695
        %v1052 = vpow.pop %v1051
        %v1053 = vmul.f32 %v883, 1.442695
        %v1054 = vpow.pop %v1053
        %v1055 = vmul.f32 %v884, 1.442695
        %v1056 = vpow.pop %v1055
        %v1057 = vmul.f32 %v885, 1.442695
        %v1058 = vpow.pop %v1057
        %v1059 = vmul.f32 %v886, 1.442695
        %v1060 = vpow.pop %v1059
        %v1061 = vmul.f32 %v887, 1.442695
        %v1062 = vpow.pop %v1061
        %v1063 = vmul.f32 %v888, 1.442695
        %v1064 = vpow.pop %v1063
        %v1065 = vmul.f32 %v889, 1.442695
        %v1066 = vpow.pop %v1065
        %v1067 = vmul.f32 %v890, 1.442695
        %v1068 = vpow.pop %v1067
        %v1069 = vmul.f32 %v891, 1.442695
        %v1070 = vpow.pop %v1069
        %v1071 = vmul.f32 %v892, 1.442695
        %v1072 = vpow.pop %v1071
        %v1073 = vmul.f32 %v893, 1.442695
        %v1074 = vpow.pop %v1073
        %v1075 = vmul.f32 %v894, 1.442695
        %v1076 = vpow.pop %v1075
        %v1077 = vmul.f32 %v895, 1.442695
        %v1078 = vpow.pop %v1077
        %v1079 = vmul.f32 %v896, 1.442695
        %v1080 = vpow.pop %v1079
        %v1081 = vmul.f32 %v897, 1.442695
        %v1082 = vpow.pop %v1081
        %v1083 = vmul.f32 %v898, 1.442695
        %v1084 = vpow.pop %v1083
        %v1085 = vmul.f32 %v899, 1.442695
        %v1086 = vpow.pop %v1085
        %v1087 = vmul.f32 %v900, 1.442695
        %v1088 = vpow.pop %v1087
        %v1089 = vmul.f32 %v901, 1.442695
        %v1090 = vpow.pop %v1089
        %v1091 = vmul.f32 %v902, 1.442695
        %v1092 = vpow.pop %v1091
        %v1093 = vmul.f32 %v903, 1.442695
        %v1094 = vpow.pop %v1093
        %v1095 = vmul.f32 %v904, 1.442695
        %v1096 = vpow.pop %v1095
        %v1097 = vmul.f32 %v905, 1.442695
        %v1098 = vpow.pop %v1097
        %v1099 = vmul.f32 %v906, 1.442695
        %v1100 = vpow.pop %v1099
        %v1101 = vmul.f32 %v907, 1.442695
        %v1102 = vpow.pop %v1101
        %v1103 = vmul.f32 %v908, 1.442695
        %v1104 = vpow.pop %v1103
        %v1105 = vmul.f32 %v909, 1.442695
        %v1106 = vpow.pop %v1105
        %v1107 = vmul.f32 %v910, 1.442695
        %v1108 = vpow.pop %v1107
        %v1109 = vmul.f32 %v911, 1.442695
        %v1110 = vpow.pop %v1109
        %v1111 = vmul.f32 %v912, 1.442695
        %v1112 = vpow.pop %v1111
        %v1113 = vmul.f32 %v913, 1.442695
        %v1114 = vpow.pop %v1113
        %v1115 = vmul.f32 %v914, 1.442695
        %v1116 = vpow.pop %v1115
        %v1117 = vmul.f32 %v915, 1.442695
        %v1118 = vpow.pop %v1117
        %v1119 = vmul.f32 %v916, 1.442695
        %v1120 = vpow.pop %v1119
        %v1121 = vmul.f32 %v917, 1.442695
        %v1122 = vpow.pop %v1121
        %v1123 = vmul.f32 %v918, 1.442695
        %v1124 = vpow.pop %v1123
        %v1125 = vmul.f32 %v919, 1.442695
        %v1126 = vpow.pop %v1125
        %v1127 = vmul.f32 %v920, 1.442695
        %v1128 = vpow.pop %v1127
        %v1129 = vmul.f32 %v921, 1.442695
        %v1130 = vpow.pop %v1129
        %v1131 = vmul.f32 %v922, 1.442695
        %v1132 = vpow.pop %v1131
        %v1133 = vmul.f32 %v923, 1.442695
        %v1134 = vpow.pop %v1133
        %v1135 = vmul.f32 %v924, 1.442695
        %v1136 = vpow.pop %v1135
        %v1137 = vmul.f32 %v925, 1.442695
        %v1138 = vpow.pop %v1137
        %v1139 = vmul.f32 %v926, 1.442695
        %v1140 = vpow.pop %v1139
        %v1141 = vmul.f32 %v927, 1.442695
        %v1142 = vpow.pop %v1141
        %v1143 = vmul.f32 %v928, 1.442695
        %v1144 = vpow.pop %v1143
        %v1145 = vmul.f32 %v929, 1.442695
        %v1146 = vpow.pop %v1145
        %v1147 = vmul.f32 %v930, 1.442695
        %v1148 = vpow.pop %v1147
        %v1149 = vmul.f32 %v931, 1.442695
        %v1150 = vpow.pop %v1149
        %v1151 = vmul.f32 %v932, 1.442695
        %v1152 = vpow.pop %v1151
        %v1153 = vmul.f32 %v933, 1.442695
        %v1154 = vpow.pop %v1153
        %v1155 = vmul.f32 %v934, 1.442695
        %v1156 = vpow.pop %v1155
        %v1157 = vmul.f32 %v935, 1.442695
        %v1158 = vpow.pop %v1157
        %v1159 = vmul.f32 %v936, 1.442695
        %v1160 = vpow.pop %v1159
        %v1161 = vmul.f32 %v937, 1.442695
        %v1162 = vpow.pop %v1161
        %v1163 = vmul.f32 %v938, 1.442695
        %v1164 = vpow.pop %v1163
        %v1165 = vmul.f32 %v939, 1.442695
        %v1166 = vpow.pop %v1165
        %v1167 = vmul.f32 %v940, 1.442695
        %v1168 = vpow.pop %v1167
        %v1169 = vmul.f32 %v941, 1.442695
        %v1170 = vpow.pop %v1169
        %v1171 = vmul.f32 %v942, 1.442695
        %v1172 = vpow.pop %v1171
        %v1173 = vmul.f32 %v943, 1.442695
        %v1174 = vpow.pop %v1173
        %v1175 = vmul.f32 %v944, 1.442695
        %v1176 = vpow.pop %v1175
        %v1177 = vmul.f32 %v945, 1.442695
        %v1178 = vpow.pop %v1177
        %v1179 = vmul.f32 %v946, 1.442695
        %v1180 = vpow.pop %v1179
        %v1181 = vmul.f32 %v947, 1.442695
        %v1182 = vpow.pop %v1181
        %v1183 = vmul.f32 %v948, 1.442695
        %v1184 = vpow.pop %v1183
        %v1185 = vmul.f32 %v949, 1.442695
        %v1186 = vpow.pop %v1185
        %v1187 = vmul.f32 %v950, 1.442695
        %v1188 = vpow.pop %v1187
        %v1189 = vmul.f32 %v951, 1.442695
        %v1190 = vpow.pop %v1189
        %v1191 = vmul.f32 %v952, 1.442695
        %v1192 = vpow.pop %v1191
        %v1193 = vmul.f32 %v953, 1.442695
        %v1194 = vpow.pop %v1193
        %v1195 = vmul.f32 %v954, 1.442695
        %v1196 = vpow.pop %v1195
        %v1197 = vmul.f32 %v955, 1.442695
        %v1198 = vpow.pop %v1197
        %v1199 = vmul.f32 %v956, 1.442695
        %v1200 = vpow.pop %v1199
        %v1201 = vmul.f32 %v957, 1.442695
        %v1202 = vpow.pop %v1201
        %v1203 = vmul.f32 %v958, 1.442695
        %v1204 = vpow.pop %v1203
        %v1205 = vmul.f32 %v959, 1.442695
        %v1206 = vpow.pop %v1205
        %v1207 = vmul.f32 %v960, 1.442695
        %v1208 = vpow.pop %v1207
        %v1209 = vmul.f32 %v961, 1.442695
        %v1210 = vpow.pop %v1209
        %v1211 = vmul.f32 %v962, 1.442695
        %v1212 = vpow.pop %v1211
        %v1213 = vmul.f32 %v963, 1.442695
        %v1214 = vpow.pop %v1213
        %v1215 = vmul.f32 %v964, 1.442695
        %v1216 = vpow.pop %v1215
        %v1217 = vmul.f32 %v965, 1.442695
        %v1218 = vpow.pop %v1217
        %v1219 = vmul.f32 %v966, 1.442695
        %v1220 = vpow.pop %v1219
        %v1221 = vmul.f32 %v967, 1.442695
        %v1222 = vpow.pop %v1221
        %v1223 = vmul.f32 %v968, 1.442695
        %v1224 = vpow.pop %v1223
        %vm1225 = vcmask 400384
        %v1226 = vsel %vm1225, %v970, 0.0
        %1227 = vadd.xlane.f32.xlu0 %v1226
        %v1228 = vpop.xlane.xlu0 %1227
        %v1229 = vsel %vm1225, %v972, 0.0
        %1230 = vadd.xlane.f32.xlu0 %v1229
        %v1231 = vpop.xlane.xlu0 %1230
        %v1232 = vsel %vm1225, %v974, 0.0
        %1233 = vadd.xlane.f32.xlu0 %v1232
        %v1234 = vpop.xlane.xlu0 %1233
        %v1235 = vsel %vm1225, %v976, 0.0
        %1236 = vadd.xlane.f32.xlu0 %v1235
        %v1237 = vpop.xlane.xlu0 %1236
        %v1238 = vsel %vm1225, %v978, 0.0
        %1239 = vadd.xlane.f32.xlu0 %v1238
        %v1240 = vpop.xlane.xlu0 %1239
        %v1241 = vsel %vm1225, %v980, 0.0
        %1242 = vadd.xlane.f32.xlu0 %v1241
        %v1243 = vpop.xlane.xlu0 %1242
        %v1244 = vsel %vm1225, %v982, 0.0
        %1245 = vadd.xlane.f32.xlu0 %v1244
        %v1246 = vpop.xlane.xlu0 %1245
        %v1247 = vsel %vm1225, %v984, 0.0
        %1248 = vadd.xlane.f32.xlu0 %v1247
        %v1249 = vpop.xlane.xlu0 %1248
        %v1250 = vsel %vm1225, %v986, 0.0
        %1251 = vadd.xlane.f32.xlu0 %v1250
        %v1252 = vpop.xlane.xlu0 %1251
        %v1253 = vsel %vm1225, %v988, 0.0
        %1254 = vadd.xlane.f32.xlu0 %v1253
        %v1255 = vpop.xlane.xlu0 %1254
        %v1256 = vsel %vm1225, %v990, 0.0
        %1257 = vadd.xlane.f32.xlu0 %v1256
        %v1258 = vpop.xlane.xlu0 %1257
        %v1259 = vsel %vm1225, %v992, 0.0
        %1260 = vadd.xlane.f32.xlu0 %v1259
        %v1261 = vpop.xlane.xlu0 %1260
        %v1262 = vsel %vm1225, %v994, 0.0
        %1263 = vadd.xlane.f32.xlu0 %v1262
        %v1264 = vpop.xlane.xlu0 %1263
        %v1265 = vsel %vm1225, %v996, 0.0
        %1266 = vadd.xlane.f32.xlu0 %v1265
        %v1267 = vpop.xlane.xlu0 %1266
        %v1268 = vsel %vm1225, %v998, 0.0
        %1269 = vadd.xlane.f32.xlu0 %v1268
        %v1270 = vpop.xlane.xlu0 %1269
        %v1271 = vsel %vm1225, %v1000, 0.0
        %1272 = vadd.xlane.f32.xlu0 %v1271
        %v1273 = vpop.xlane.xlu0 %1272
        %v1274 = vsel %vm1225, %v1002, 0.0
        %1275 = vadd.xlane.f32.xlu0 %v1274
        %v1276 = vpop.xlane.xlu0 %1275
        %v1277 = vsel %vm1225, %v1004, 0.0
        %1278 = vadd.xlane.f32.xlu0 %v1277
        %v1279 = vpop.xlane.xlu0 %1278
        %v1280 = vsel %vm1225, %v1006, 0.0
        %1281 = vadd.xlane.f32.xlu0 %v1280
        %v1282 = vpop.xlane.xlu0 %1281
        %v1283 = vsel %vm1225, %v1008, 0.0
        %1284 = vadd.xlane.f32.xlu0 %v1283
        %v1285 = vpop.xlane.xlu0 %1284
        %v1286 = vsel %vm1225, %v1010, 0.0
        %1287 = vadd.xlane.f32.xlu0 %v1286
        %v1288 = vpop.xlane.xlu0 %1287
        %v1289 = vsel %vm1225, %v1012, 0.0
        %1290 = vadd.xlane.f32.xlu0 %v1289
        %v1291 = vpop.xlane.xlu0 %1290
        %v1292 = vsel %vm1225, %v1014, 0.0
        %1293 = vadd.xlane.f32.xlu0 %v1292
        %v1294 = vpop.xlane.xlu0 %1293
        %v1295 = vsel %vm1225, %v1016, 0.0
        %1296 = vadd.xlane.f32.xlu0 %v1295
        %v1297 = vpop.xlane.xlu0 %1296
        %v1298 = vsel %vm1225, %v1018, 0.0
        %1299 = vadd.xlane.f32.xlu0 %v1298
        %v1300 = vpop.xlane.xlu0 %1299
        %v1301 = vsel %vm1225, %v1020, 0.0
        %1302 = vadd.xlane.f32.xlu0 %v1301
        %v1303 = vpop.xlane.xlu0 %1302
        %v1304 = vsel %vm1225, %v1022, 0.0
        %1305 = vadd.xlane.f32.xlu0 %v1304
        %v1306 = vpop.xlane.xlu0 %1305
        %v1307 = vsel %vm1225, %v1024, 0.0
        %1308 = vadd.xlane.f32.xlu0 %v1307
        %v1309 = vpop.xlane.xlu0 %1308
        %v1310 = vsel %vm1225, %v1026, 0.0
        %1311 = vadd.xlane.f32.xlu0 %v1310
        %v1312 = vpop.xlane.xlu0 %1311
        %v1313 = vsel %vm1225, %v1028, 0.0
        %1314 = vadd.xlane.f32.xlu0 %v1313
        %v1315 = vpop.xlane.xlu0 %1314
        %v1316 = vsel %vm1225, %v1030, 0.0
        %1317 = vadd.xlane.f32.xlu0 %v1316
        %v1318 = vpop.xlane.xlu0 %1317
        %v1319 = vsel %vm1225, %v1032, 0.0
        %1320 = vadd.xlane.f32.xlu0 %v1319
        %v1321 = vpop.xlane.xlu0 %1320
        %v1322 = vsel %vm1225, %v1034, 0.0
        %1323 = vadd.xlane.f32.xlu0 %v1322
        %v1324 = vpop.xlane.xlu0 %1323
        %v1325 = vsel %vm1225, %v1036, 0.0
        %1326 = vadd.xlane.f32.xlu0 %v1325
        %v1327 = vpop.xlane.xlu0 %1326
        %v1328 = vsel %vm1225, %v1038, 0.0
        %1329 = vadd.xlane.f32.xlu0 %v1328
        %v1330 = vpop.xlane.xlu0 %1329
        %v1331 = vsel %vm1225, %v1040, 0.0
        %1332 = vadd.xlane.f32.xlu0 %v1331
        %v1333 = vpop.xlane.xlu0 %1332
        %v1334 = vsel %vm1225, %v1042, 0.0
        %1335 = vadd.xlane.f32.xlu0 %v1334
        %v1336 = vpop.xlane.xlu0 %1335
        %v1337 = vsel %vm1225, %v1044, 0.0
        %1338 = vadd.xlane.f32.xlu0 %v1337
        %v1339 = vpop.xlane.xlu0 %1338
        %v1340 = vsel %vm1225, %v1046, 0.0
        %1341 = vadd.xlane.f32.xlu0 %v1340
        %v1342 = vpop.xlane.xlu0 %1341
        %v1343 = vsel %vm1225, %v1048, 0.0
        %1344 = vadd.xlane.f32.xlu0 %v1343
        %v1345 = vpop.xlane.xlu0 %1344
        %v1346 = vsel %vm1225, %v1050, 0.0
        %1347 = vadd.xlane.f32.xlu0 %v1346
        %v1348 = vpop.xlane.xlu0 %1347
        %v1349 = vsel %vm1225, %v1052, 0.0
        %1350 = vadd.xlane.f32.xlu0 %v1349
        %v1351 = vpop.xlane.xlu0 %1350
        %v1352 = vsel %vm1225, %v1054, 0.0
        %1353 = vadd.xlane.f32.xlu0 %v1352
        %v1354 = vpop.xlane.xlu0 %1353
        %v1355 = vsel %vm1225, %v1056, 0.0
        %1356 = vadd.xlane.f32.xlu0 %v1355
        %v1357 = vpop.xlane.xlu0 %1356
        %v1358 = vsel %vm1225, %v1058, 0.0
        %1359 = vadd.xlane.f32.xlu0 %v1358
        %v1360 = vpop.xlane.xlu0 %1359
        %v1361 = vsel %vm1225, %v1060, 0.0
        %1362 = vadd.xlane.f32.xlu0 %v1361
        %v1363 = vpop.xlane.xlu0 %1362
        %v1364 = vsel %vm1225, %v1062, 0.0
        %1365 = vadd.xlane.f32.xlu0 %v1364
        %v1366 = vpop.xlane.xlu0 %1365
        %v1367 = vsel %vm1225, %v1064, 0.0
        %1368 = vadd.xlane.f32.xlu0 %v1367
        %v1369 = vpop.xlane.xlu0 %1368
        %v1370 = vsel %vm1225, %v1066, 0.0
        %1371 = vadd.xlane.f32.xlu0 %v1370
        %v1372 = vpop.xlane.xlu0 %1371
        %v1373 = vsel %vm1225, %v1068, 0.0
        %1374 = vadd.xlane.f32.xlu0 %v1373
        %v1375 = vpop.xlane.xlu0 %1374
        %v1376 = vsel %vm1225, %v1070, 0.0
        %1377 = vadd.xlane.f32.xlu0 %v1376
        %v1378 = vpop.xlane.xlu0 %1377
        %v1379 = vsel %vm1225, %v1072, 0.0
        %1380 = vadd.xlane.f32.xlu0 %v1379
        %v1381 = vpop.xlane.xlu0 %1380
        %v1382 = vsel %vm1225, %v1074, 0.0
        %1383 = vadd.xlane.f32.xlu0 %v1382
        %v1384 = vpop.xlane.xlu0 %1383
        %v1385 = vsel %vm1225, %v1076, 0.0
        %1386 = vadd.xlane.f32.xlu0 %v1385
        %v1387 = vpop.xlane.xlu0 %1386
        %v1388 = vsel %vm1225, %v1078, 0.0
        %1389 = vadd.xlane.f32.xlu0 %v1388
        %v1390 = vpop.xlane.xlu0 %1389
        %v1391 = vsel %vm1225, %v1080, 0.0
        %1392 = vadd.xlane.f32.xlu0 %v1391
        %v1393 = vpop.xlane.xlu0 %1392
        %v1394 = vsel %vm1225, %v1082, 0.0
        %1395 = vadd.xlane.f32.xlu0 %v1394
        %v1396 = vpop.xlane.xlu0 %1395
        %v1397 = vsel %vm1225, %v1084, 0.0
        %1398 = vadd.xlane.f32.xlu0 %v1397
        %v1399 = vpop.xlane.xlu0 %1398
        %v1400 = vsel %vm1225, %v1086, 0.0
        %1401 = vadd.xlane.f32.xlu0 %v1400
        %v1402 = vpop.xlane.xlu0 %1401
        %v1403 = vsel %vm1225, %v1088, 0.0
        %1404 = vadd.xlane.f32.xlu0 %v1403
        %v1405 = vpop.xlane.xlu0 %1404
        %v1406 = vsel %vm1225, %v1090, 0.0
        %1407 = vadd.xlane.f32.xlu0 %v1406
        %v1408 = vpop.xlane.xlu0 %1407
        %v1409 = vsel %vm1225, %v1092, 0.0
        %1410 = vadd.xlane.f32.xlu0 %v1409
        %v1411 = vpop.xlane.xlu0 %1410
        %v1412 = vsel %vm1225, %v1094, 0.0
        %1413 = vadd.xlane.f32.xlu0 %v1412
        %v1414 = vpop.xlane.xlu0 %1413
        %v1415 = vsel %vm1225, %v1096, 0.0
        %1416 = vadd.xlane.f32.xlu0 %v1415
        %v1417 = vpop.xlane.xlu0 %1416
        %v1418 = vsel %vm1225, %v1098, 0.0
        %1419 = vadd.xlane.f32.xlu0 %v1418
        %v1420 = vpop.xlane.xlu0 %1419
        %v1421 = vsel %vm1225, %v1100, 0.0
        %1422 = vadd.xlane.f32.xlu0 %v1421
        %v1423 = vpop.xlane.xlu0 %1422
        %v1424 = vsel %vm1225, %v1102, 0.0
        %1425 = vadd.xlane.f32.xlu0 %v1424
        %v1426 = vpop.xlane.xlu0 %1425
        %v1427 = vsel %vm1225, %v1104, 0.0
        %1428 = vadd.xlane.f32.xlu0 %v1427
        %v1429 = vpop.xlane.xlu0 %1428
        %v1430 = vsel %vm1225, %v1106, 0.0
        %1431 = vadd.xlane.f32.xlu0 %v1430
        %v1432 = vpop.xlane.xlu0 %1431
        %v1433 = vsel %vm1225, %v1108, 0.0
        %1434 = vadd.xlane.f32.xlu0 %v1433
        %v1435 = vpop.xlane.xlu0 %1434
        %v1436 = vsel %vm1225, %v1110, 0.0
        %1437 = vadd.xlane.f32.xlu0 %v1436
        %v1438 = vpop.xlane.xlu0 %1437
        %v1439 = vsel %vm1225, %v1112, 0.0
        %1440 = vadd.xlane.f32.xlu0 %v1439
        %v1441 = vpop.xlane.xlu0 %1440
        %v1442 = vsel %vm1225, %v1114, 0.0
        %1443 = vadd.xlane.f32.xlu0 %v1442
        %v1444 = vpop.xlane.xlu0 %1443
        %v1445 = vsel %vm1225, %v1116, 0.0
        %1446 = vadd.xlane.f32.xlu0 %v1445
        %v1447 = vpop.xlane.xlu0 %1446
        %v1448 = vsel %vm1225, %v1118, 0.0
        %1449 = vadd.xlane.f32.xlu0 %v1448
        %v1450 = vpop.xlane.xlu0 %1449
        %v1451 = vsel %vm1225, %v1120, 0.0
        %1452 = vadd.xlane.f32.xlu0 %v1451
        %v1453 = vpop.xlane.xlu0 %1452
        %v1454 = vsel %vm1225, %v1122, 0.0
        %1455 = vadd.xlane.f32.xlu0 %v1454
        %v1456 = vpop.xlane.xlu0 %1455
        %v1457 = vsel %vm1225, %v1124, 0.0
        %1458 = vadd.xlane.f32.xlu0 %v1457
        %v1459 = vpop.xlane.xlu0 %1458
        %v1460 = vsel %vm1225, %v1126, 0.0
        %1461 = vadd.xlane.f32.xlu0 %v1460
        %v1462 = vpop.xlane.xlu0 %1461
        %v1463 = vsel %vm1225, %v1128, 0.0
        %1464 = vadd.xlane.f32.xlu0 %v1463
        %v1465 = vpop.xlane.xlu0 %1464
        %v1466 = vsel %vm1225, %v1130, 0.0
        %1467 = vadd.xlane.f32.xlu0 %v1466
        %v1468 = vpop.xlane.xlu0 %1467
        %v1469 = vsel %vm1225, %v1132, 0.0
        %1470 = vadd.xlane.f32.xlu0 %v1469
        %v1471 = vpop.xlane.xlu0 %1470
        %v1472 = vsel %vm1225, %v1134, 0.0
        %1473 = vadd.xlane.f32.xlu0 %v1472
        %v1474 = vpop.xlane.xlu0 %1473
        %v1475 = vsel %vm1225, %v1136, 0.0
        %1476 = vadd.xlane.f32.xlu0 %v1475
        %v1477 = vpop.xlane.xlu0 %1476
        %v1478 = vsel %vm1225, %v1138, 0.0
        %1479 = vadd.xlane.f32.xlu0 %v1478
        %v1480 = vpop.xlane.xlu0 %1479
        %v1481 = vsel %vm1225, %v1140, 0.0
        %1482 = vadd.xlane.f32.xlu0 %v1481
        %v1483 = vpop.xlane.xlu0 %1482
        %v1484 = vsel %vm1225, %v1142, 0.0
        %1485 = vadd.xlane.f32.xlu0 %v1484
        %v1486 = vpop.xlane.xlu0 %1485
        %v1487 = vsel %vm1225, %v1144, 0.0
        %1488 = vadd.xlane.f32.xlu0 %v1487
        %v1489 = vpop.xlane.xlu0 %1488
        %v1490 = vsel %vm1225, %v1146, 0.0
        %1491 = vadd.xlane.f32.xlu0 %v1490
        %v1492 = vpop.xlane.xlu0 %1491
        %v1493 = vsel %vm1225, %v1148, 0.0
        %1494 = vadd.xlane.f32.xlu0 %v1493
        %v1495 = vpop.xlane.xlu0 %1494
        %v1496 = vsel %vm1225, %v1150, 0.0
        %1497 = vadd.xlane.f32.xlu0 %v1496
        %v1498 = vpop.xlane.xlu0 %1497
        %v1499 = vsel %vm1225, %v1152, 0.0
        %1500 = vadd.xlane.f32.xlu0 %v1499
        %v1501 = vpop.xlane.xlu0 %1500
        %v1502 = vsel %vm1225, %v1154, 0.0
        %1503 = vadd.xlane.f32.xlu0 %v1502
        %v1504 = vpop.xlane.xlu0 %1503
        %v1505 = vsel %vm1225, %v1156, 0.0
        %1506 = vadd.xlane.f32.xlu0 %v1505
        %v1507 = vpop.xlane.xlu0 %1506
        %v1508 = vsel %vm1225, %v1158, 0.0
        %1509 = vadd.xlane.f32.xlu0 %v1508
        %v1510 = vpop.xlane.xlu0 %1509
        %v1511 = vsel %vm1225, %v1160, 0.0
        %1512 = vadd.xlane.f32.xlu0 %v1511
        %v1513 = vpop.xlane.xlu0 %1512
        %v1514 = vsel %vm1225, %v1162, 0.0
        %1515 = vadd.xlane.f32.xlu0 %v1514
        %v1516 = vpop.xlane.xlu0 %1515
        %v1517 = vsel %vm1225, %v1164, 0.0
        %1518 = vadd.xlane.f32.xlu0 %v1517
        %v1519 = vpop.xlane.xlu0 %1518
        %v1520 = vsel %vm1225, %v1166, 0.0
        %1521 = vadd.xlane.f32.xlu0 %v1520
        %v1522 = vpop.xlane.xlu0 %1521
        %v1523 = vsel %vm1225, %v1168, 0.0
        %1524 = vadd.xlane.f32.xlu0 %v1523
        %v1525 = vpop.xlane.xlu0 %1524
        %v1526 = vsel %vm1225, %v1170, 0.0
        %1527 = vadd.xlane.f32.xlu0 %v1526
        %v1528 = vpop.xlane.xlu0 %1527
        %v1529 = vsel %vm1225, %v1172, 0.0
        %1530 = vadd.xlane.f32.xlu0 %v1529
        %v1531 = vpop.xlane.xlu0 %1530
        %v1532 = vsel %vm1225, %v1174, 0.0
        %1533 = vadd.xlane.f32.xlu0 %v1532
        %v1534 = vpop.xlane.xlu0 %1533
        %v1535 = vsel %vm1225, %v1176, 0.0
        %1536 = vadd.xlane.f32.xlu0 %v1535
        %v1537 = vpop.xlane.xlu0 %1536
        %v1538 = vsel %vm1225, %v1178, 0.0
        %1539 = vadd.xlane.f32.xlu0 %v1538
        %v1540 = vpop.xlane.xlu0 %1539
        %v1541 = vsel %vm1225, %v1180, 0.0
        %1542 = vadd.xlane.f32.xlu0 %v1541
        %v1543 = vpop.xlane.xlu0 %1542
        %v1544 = vsel %vm1225, %v1182, 0.0
        %1545 = vadd.xlane.f32.xlu0 %v1544
        %v1546 = vpop.xlane.xlu0 %1545
        %v1547 = vsel %vm1225, %v1184, 0.0
        %1548 = vadd.xlane.f32.xlu0 %v1547
        %v1549 = vpop.xlane.xlu0 %1548
        %v1550 = vsel %vm1225, %v1186, 0.0
        %1551 = vadd.xlane.f32.xlu0 %v1550
        %v1552 = vpop.xlane.xlu0 %1551
        %v1553 = vsel %vm1225, %v1188, 0.0
        %1554 = vadd.xlane.f32.xlu0 %v1553
        %v1555 = vpop.xlane.xlu0 %1554
        %v1556 = vsel %vm1225, %v1190, 0.0
        %1557 = vadd.xlane.f32.xlu0 %v1556
        %v1558 = vpop.xlane.xlu0 %1557
        %v1559 = vsel %vm1225, %v1192, 0.0
        %1560 = vadd.xlane.f32.xlu0 %v1559
        %v1561 = vpop.xlane.xlu0 %1560
        %v1562 = vsel %vm1225, %v1194, 0.0
        %1563 = vadd.xlane.f32.xlu0 %v1562
        %v1564 = vpop.xlane.xlu0 %1563
        %v1565 = vsel %vm1225, %v1196, 0.0
        %1566 = vadd.xlane.f32.xlu0 %v1565
        %v1567 = vpop.xlane.xlu0 %1566
        %v1568 = vsel %vm1225, %v1198, 0.0
        %1569 = vadd.xlane.f32.xlu0 %v1568
        %v1570 = vpop.xlane.xlu0 %1569
        %v1571 = vsel %vm1225, %v1200, 0.0
        %1572 = vadd.xlane.f32.xlu0 %v1571
        %v1573 = vpop.xlane.xlu0 %1572
        %v1574 = vsel %vm1225, %v1202, 0.0
        %1575 = vadd.xlane.f32.xlu0 %v1574
        %v1576 = vpop.xlane.xlu0 %1575
        %v1577 = vsel %vm1225, %v1204, 0.0
        %1578 = vadd.xlane.f32.xlu0 %v1577
        %v1579 = vpop.xlane.xlu0 %1578
        %v1580 = vsel %vm1225, %v1206, 0.0
        %1581 = vadd.xlane.f32.xlu0 %v1580
        %v1582 = vpop.xlane.xlu0 %1581
        %v1583 = vsel %vm1225, %v1208, 0.0
        %1584 = vadd.xlane.f32.xlu0 %v1583
        %v1585 = vpop.xlane.xlu0 %1584
        %v1586 = vsel %vm1225, %v1210, 0.0
        %1587 = vadd.xlane.f32.xlu0 %v1586
        %v1588 = vpop.xlane.xlu0 %1587
        %v1589 = vsel %vm1225, %v1212, 0.0
        %1590 = vadd.xlane.f32.xlu0 %v1589
        %v1591 = vpop.xlane.xlu0 %1590
        %v1592 = vsel %vm1225, %v1214, 0.0
        %1593 = vadd.xlane.f32.xlu0 %v1592
        %v1594 = vpop.xlane.xlu0 %1593
        %v1595 = vsel %vm1225, %v1216, 0.0
        %1596 = vadd.xlane.f32.xlu0 %v1595
        %v1597 = vpop.xlane.xlu0 %1596
        %v1598 = vsel %vm1225, %v1218, 0.0
        %1599 = vadd.xlane.f32.xlu0 %v1598
        %v1600 = vpop.xlane.xlu0 %1599
        %v1601 = vsel %vm1225, %v1220, 0.0
        %1602 = vadd.xlane.f32.xlu0 %v1601
        %v1603 = vpop.xlane.xlu0 %1602
        %v1604 = vsel %vm1225, %v1222, 0.0
        %1605 = vadd.xlane.f32.xlu0 %v1604
        %v1606 = vpop.xlane.xlu0 %1605
        %v1607 = vsel %vm1225, %v1224, 0.0
        %1608 = vadd.xlane.f32.xlu0 %v1607
        %v1609 = vpop.xlane.xlu0 %1608
        %v1610 = vrcp.pop 49.0
        %v1611 = vmul.f32 %v1228, %v1610
        %v1612 = vmul.f32 %v1231, %v1610
        %v1613 = vmul.f32 %v1234, %v1610
        %v1614 = vmul.f32 %v1237, %v1610
        %v1615 = vmul.f32 %v1240, %v1610
        %v1616 = vmul.f32 %v1243, %v1610
        %v1617 = vmul.f32 %v1246, %v1610
        %v1618 = vmul.f32 %v1249, %v1610
        %v1619 = vmul.f32 %v1252, %v1610
        %v1620 = vmul.f32 %v1255, %v1610
        %v1621 = vmul.f32 %v1258, %v1610
        %v1622 = vmul.f32 %v1261, %v1610
        %v1623 = vmul.f32 %v1264, %v1610
        %v1624 = vmul.f32 %v1267, %v1610
        %v1625 = vmul.f32 %v1270, %v1610
        %v1626 = vmul.f32 %v1273, %v1610
        %v1627 = vmul.f32 %v1276, %v1610
        %v1628 = vmul.f32 %v1279, %v1610
        %v1629 = vmul.f32 %v1282, %v1610
        %v1630 = vmul.f32 %v1285, %v1610
        %v1631 = vmul.f32 %v1288, %v1610
        %v1632 = vmul.f32 %v1291, %v1610
        %v1633 = vmul.f32 %v1294, %v1610
        %v1634 = vmul.f32 %v1297, %v1610
        %v1635 = vmul.f32 %v1300, %v1610
        %v1636 = vmul.f32 %v1303, %v1610
        %v1637 = vmul.f32 %v1306, %v1610
        %v1638 = vmul.f32 %v1309, %v1610
        %v1639 = vmul.f32 %v1312, %v1610
        %v1640 = vmul.f32 %v1315, %v1610
        %v1641 = vmul.f32 %v1318, %v1610
        %v1642 = vmul.f32 %v1321, %v1610
        %v1643 = vmul.f32 %v1324, %v1610
        %v1644 = vmul.f32 %v1327, %v1610
        %v1645 = vmul.f32 %v1330, %v1610
        %v1646 = vmul.f32 %v1333, %v1610
        %v1647 = vmul.f32 %v1336, %v1610
        %v1648 = vmul.f32 %v1339, %v1610
        %v1649 = vmul.f32 %v1342, %v1610
        %v1650 = vmul.f32 %v1345, %v1610
        %v1651 = vmul.f32 %v1348, %v1610
        %v1652 = vmul.f32 %v1351, %v1610
        %v1653 = vmul.f32 %v1354, %v1610
        %v1654 = vmul.f32 %v1357, %v1610
        %v1655 = vmul.f32 %v1360, %v1610
        %v1656 = vmul.f32 %v1363, %v1610
        %v1657 = vmul.f32 %v1366, %v1610
        %v1658 = vmul.f32 %v1369, %v1610
        %v1659 = vmul.f32 %v1372, %v1610
        %v1660 = vmul.f32 %v1375, %v1610
        %v1661 = vmul.f32 %v1378, %v1610
        %v1662 = vmul.f32 %v1381, %v1610
        %v1663 = vmul.f32 %v1384, %v1610
        %v1664 = vmul.f32 %v1387, %v1610
        %v1665 = vmul.f32 %v1390, %v1610
        %v1666 = vmul.f32 %v1393, %v1610
        %v1667 = vmul.f32 %v1396, %v1610
        %v1668 = vmul.f32 %v1399, %v1610
        %v1669 = vmul.f32 %v1402, %v1610
        %v1670 = vmul.f32 %v1405, %v1610
        %v1671 = vmul.f32 %v1408, %v1610
        %v1672 = vmul.f32 %v1411, %v1610
        %v1673 = vmul.f32 %v1414, %v1610
        %v1674 = vmul.f32 %v1417, %v1610
        %v1675 = vmul.f32 %v1420, %v1610
        %v1676 = vmul.f32 %v1423, %v1610
        %v1677 = vmul.f32 %v1426, %v1610
        %v1678 = vmul.f32 %v1429, %v1610
        %v1679 = vmul.f32 %v1432, %v1610
        %v1680 = vmul.f32 %v1435, %v1610
        %v1681 = vmul.f32 %v1438, %v1610
        %v1682 = vmul.f32 %v1441, %v1610
        %v1683 = vmul.f32 %v1444, %v1610
        %v1684 = vmul.f32 %v1447, %v1610
        %v1685 = vmul.f32 %v1450, %v1610
        %v1686 = vmul.f32 %v1453, %v1610
        %v1687 = vmul.f32 %v1456, %v1610
        %v1688 = vmul.f32 %v1459, %v1610
        %v1689 = vmul.f32 %v1462, %v1610
        %v1690 = vmul.f32 %v1465, %v1610
        %v1691 = vmul.f32 %v1468, %v1610
        %v1692 = vmul.f32 %v1471, %v1610
        %v1693 = vmul.f32 %v1474, %v1610
        %v1694 = vmul.f32 %v1477, %v1610
        %v1695 = vmul.f32 %v1480, %v1610
        %v1696 = vmul.f32 %v1483, %v1610
        %v1697 = vmul.f32 %v1486, %v1610
        %v1698 = vmul.f32 %v1489, %v1610
        %v1699 = vmul.f32 %v1492, %v1610
        %v1700 = vmul.f32 %v1495, %v1610
        %v1701 = vmul.f32 %v1498, %v1610
        %v1702 = vmul.f32 %v1501, %v1610
        %v1703 = vmul.f32 %v1504, %v1610
        %v1704 = vmul.f32 %v1507, %v1610
        %v1705 = vmul.f32 %v1510, %v1610
        %v1706 = vmul.f32 %v1513, %v1610
        %v1707 = vmul.f32 %v1516, %v1610
        %v1708 = vmul.f32 %v1519, %v1610
        %v1709 = vmul.f32 %v1522, %v1610
        %v1710 = vmul.f32 %v1525, %v1610
        %v1711 = vmul.f32 %v1528, %v1610
        %v1712 = vmul.f32 %v1531, %v1610
        %v1713 = vmul.f32 %v1534, %v1610
        %v1714 = vmul.f32 %v1537, %v1610
        %v1715 = vmul.f32 %v1540, %v1610
        %v1716 = vmul.f32 %v1543, %v1610
        %v1717 = vmul.f32 %v1546, %v1610
        %v1718 = vmul.f32 %v1549, %v1610
        %v1719 = vmul.f32 %v1552, %v1610
        %v1720 = vmul.f32 %v1555, %v1610
        %v1721 = vmul.f32 %v1558, %v1610
        %v1722 = vmul.f32 %v1561, %v1610
        %v1723 = vmul.f32 %v1564, %v1610
        %v1724 = vmul.f32 %v1567, %v1610
        %v1725 = vmul.f32 %v1570, %v1610
        %v1726 = vmul.f32 %v1573, %v1610
        %v1727 = vmul.f32 %v1576, %v1610
        %v1728 = vmul.f32 %v1579, %v1610
        %v1729 = vmul.f32 %v1582, %v1610
        %v1730 = vmul.f32 %v1585, %v1610
        %v1731 = vmul.f32 %v1588, %v1610
        %v1732 = vmul.f32 %v1591, %v1610
        %v1733 = vmul.f32 %v1594, %v1610
        %v1734 = vmul.f32 %v1597, %v1610
        %v1735 = vmul.f32 %v1600, %v1610
        %v1736 = vmul.f32 %v1603, %v1610
        %v1737 = vmul.f32 %v1606, %v1610
        %v1738 = vmul.f32 %v1609, %v1610
        %v1739 = vlog2.pop %v1611
        %v1740 = vmul.f32 %v1739, 0.6931472
        %v1741 = vlog2.pop %v1612
        %v1742 = vmul.f32 %v1741, 0.6931472
        %v1743 = vlog2.pop %v1613
        %v1744 = vmul.f32 %v1743, 0.6931472
        %v1745 = vlog2.pop %v1614
        %v1746 = vmul.f32 %v1745, 0.6931472
        %v1747 = vlog2.pop %v1615
        %v1748 = vmul.f32 %v1747, 0.6931472
        %v1749 = vlog2.pop %v1616
        %v1750 = vmul.f32 %v1749, 0.6931472
        %v1751 = vlog2.pop %v1617
        %v1752 = vmul.f32 %v1751, 0.6931472
        %v1753 = vlog2.pop %v1618
        %v1754 = vmul.f32 %v1753, 0.6931472
        %v1755 = vlog2.pop %v1619
        %v1756 = vmul.f32 %v1755, 0.6931472
        %v1757 = vlog2.pop %v1620
        %v1758 = vmul.f32 %v1757, 0.6931472
        %v1759 = vlog2.pop %v1621
        %v1760 = vmul.f32 %v1759, 0.6931472
        %v1761 = vlog2.pop %v1622
        %v1762 = vmul.f32 %v1761, 0.6931472
        %v1763 = vlog2.pop %v1623
        %v1764 = vmul.f32 %v1763, 0.6931472
        %v1765 = vlog2.pop %v1624
        %v1766 = vmul.f32 %v1765, 0.6931472
        %v1767 = vlog2.pop %v1625
        %v1768 = vmul.f32 %v1767, 0.6931472
        %v1769 = vlog2.pop %v1626
        %v1770 = vmul.f32 %v1769, 0.6931472
        %v1771 = vlog2.pop %v1627
        %v1772 = vmul.f32 %v1771, 0.6931472
        %v1773 = vlog2.pop %v1628
        %v1774 = vmul.f32 %v1773, 0.6931472
        %v1775 = vlog2.pop %v1629
        %v1776 = vmul.f32 %v1775, 0.6931472
        %v1777 = vlog2.pop %v1630
        %v1778 = vmul.f32 %v1777, 0.6931472
        %v1779 = vlog2.pop %v1631
        %v1780 = vmul.f32 %v1779, 0.6931472
        %v1781 = vlog2.pop %v1632
        %v1782 = vmul.f32 %v1781, 0.6931472
        %v1783 = vlog2.pop %v1633
        %v1784 = vmul.f32 %v1783, 0.6931472
        %v1785 = vlog2.pop %v1634
        %v1786 = vmul.f32 %v1785, 0.6931472
        %v1787 = vlog2.pop %v1635
        %v1788 = vmul.f32 %v1787, 0.6931472
        %v1789 = vlog2.pop %v1636
        %v1790 = vmul.f32 %v1789, 0.6931472
        %v1791 = vlog2.pop %v1637
        %v1792 = vmul.f32 %v1791, 0.6931472
        %v1793 = vlog2.pop %v1638
        %v1794 = vmul.f32 %v1793, 0.6931472
        %v1795 = vlog2.pop %v1639
        %v1796 = vmul.f32 %v1795, 0.6931472
        %v1797 = vlog2.pop %v1640
        %v1798 = vmul.f32 %v1797, 0.6931472
        %v1799 = vlog2.pop %v1641
        %v1800 = vmul.f32 %v1799, 0.6931472
        %v1801 = vlog2.pop %v1642
        %v1802 = vmul.f32 %v1801, 0.6931472
        %v1803 = vlog2.pop %v1643
        %v1804 = vmul.f32 %v1803, 0.6931472
        %v1805 = vlog2.pop %v1644
        %v1806 = vmul.f32 %v1805, 0.6931472
        %v1807 = vlog2.pop %v1645
        %v1808 = vmul.f32 %v1807, 0.6931472
        %v1809 = vlog2.pop %v1646
        %v1810 = vmul.f32 %v1809, 0.6931472
        %v1811 = vlog2.pop %v1647
        %v1812 = vmul.f32 %v1811, 0.6931472
        %v1813 = vlog2.pop %v1648
        %v1814 = vmul.f32 %v1813, 0.6931472
        %v1815 = vlog2.pop %v1649
        %v1816 = vmul.f32 %v1815, 0.6931472
        %v1817 = vlog2.pop %v1650
        %v1818 = vmul.f32 %v1817, 0.6931472
        %v1819 = vlog2.pop %v1651
        %v1820 = vmul.f32 %v1819, 0.6931472
        %v1821 = vlog2.pop %v1652
        %v1822 = vmul.f32 %v1821, 0.6931472
        %v1823 = vlog2.pop %v1653
        %v1824 = vmul.f32 %v1823, 0.6931472
        %v1825 = vlog2.pop %v1654
        %v1826 = vmul.f32 %v1825, 0.6931472
        %v1827 = vlog2.pop %v1655
        %v1828 = vmul.f32 %v1827, 0.6931472
        %v1829 = vlog2.pop %v1656
        %v1830 = vmul.f32 %v1829, 0.6931472
        %v1831 = vlog2.pop %v1657
        %v1832 = vmul.f32 %v1831, 0.6931472
        %v1833 = vlog2.pop %v1658
        %v1834 = vmul.f32 %v1833, 0.6931472
        %v1835 = vlog2.pop %v1659
        %v1836 = vmul.f32 %v1835, 0.6931472
        %v1837 = vlog2.pop %v1660
        %v1838 = vmul.f32 %v1837, 0.6931472
        %v1839 = vlog2.pop %v1661
        %v1840 = vmul.f32 %v1839, 0.6931472
        %v1841 = vlog2.pop %v1662
        %v1842 = vmul.f32 %v1841, 0.6931472
        %v1843 = vlog2.pop %v1663
        %v1844 = vmul.f32 %v1843, 0.6931472
        %v1845 = vlog2.pop %v1664
        %v1846 = vmul.f32 %v1845, 0.6931472
        %v1847 = vlog2.pop %v1665
        %v1848 = vmul.f32 %v1847, 0.6931472
        %v1849 = vlog2.pop %v1666
        %v1850 = vmul.f32 %v1849, 0.6931472
        %v1851 = vlog2.pop %v1667
        %v1852 = vmul.f32 %v1851, 0.6931472
        %v1853 = vlog2.pop %v1668
        %v1854 = vmul.f32 %v1853, 0.6931472
        %v1855 = vlog2.pop %v1669
        %v1856 = vmul.f32 %v1855, 0.6931472
        %v1857 = vlog2.pop %v1670
        %v1858 = vmul.f32 %v1857, 0.6931472
        %v1859 = vlog2.pop %v1671
        %v1860 = vmul.f32 %v1859, 0.6931472
        %v1861 = vlog2.pop %v1672
        %v1862 = vmul.f32 %v1861, 0.6931472
        %v1863 = vlog2.pop %v1673
        %v1864 = vmul.f32 %v1863, 0.6931472
        %v1865 = vlog2.pop %v1674
        %v1866 = vmul.f32 %v1865, 0.6931472
        %v1867 = vlog2.pop %v1675
        %v1868 = vmul.f32 %v1867, 0.6931472
        %v1869 = vlog2.pop %v1676
        %v1870 = vmul.f32 %v1869, 0.6931472
        %v1871 = vlog2.pop %v1677
        %v1872 = vmul.f32 %v1871, 0.6931472
        %v1873 = vlog2.pop %v1678
        %v1874 = vmul.f32 %v1873, 0.6931472
        %v1875 = vlog2.pop %v1679
        %v1876 = vmul.f32 %v1875, 0.6931472
        %v1877 = vlog2.pop %v1680
        %v1878 = vmul.f32 %v1877, 0.6931472
        %v1879 = vlog2.pop %v1681
        %v1880 = vmul.f32 %v1879, 0.6931472
        %v1881 = vlog2.pop %v1682
        %v1882 = vmul.f32 %v1881, 0.6931472
        %v1883 = vlog2.pop %v1683
        %v1884 = vmul.f32 %v1883, 0.6931472
        %v1885 = vlog2.pop %v1684
        %v1886 = vmul.f32 %v1885, 0.6931472
        %v1887 = vlog2.pop %v1685
        %v1888 = vmul.f32 %v1887, 0.6931472
        %v1889 = vlog2.pop %v1686
        %v1890 = vmul.f32 %v1889, 0.6931472
        %v1891 = vlog2.pop %v1687
        %v1892 = vmul.f32 %v1891, 0.6931472
        %v1893 = vlog2.pop %v1688
        %v1894 = vmul.f32 %v1893, 0.6931472
        %v1895 = vlog2.pop %v1689
        %v1896 = vmul.f32 %v1895, 0.6931472
        %v1897 = vlog2.pop %v1690
        %v1898 = vmul.f32 %v1897, 0.6931472
        %v1899 = vlog2.pop %v1691
        %v1900 = vmul.f32 %v1899, 0.6931472
        %v1901 = vlog2.pop %v1692
        %v1902 = vmul.f32 %v1901, 0.6931472
        %v1903 = vlog2.pop %v1693
        %v1904 = vmul.f32 %v1903, 0.6931472
        %v1905 = vlog2.pop %v1694
        %v1906 = vmul.f32 %v1905, 0.6931472
        %v1907 = vlog2.pop %v1695
        %v1908 = vmul.f32 %v1907, 0.6931472
        %v1909 = vlog2.pop %v1696
        %v1910 = vmul.f32 %v1909, 0.6931472
        %v1911 = vlog2.pop %v1697
        %v1912 = vmul.f32 %v1911, 0.6931472
        %v1913 = vlog2.pop %v1698
        %v1914 = vmul.f32 %v1913, 0.6931472
        %v1915 = vlog2.pop %v1699
        %v1916 = vmul.f32 %v1915, 0.6931472
        %v1917 = vlog2.pop %v1700
        %v1918 = vmul.f32 %v1917, 0.6931472
        %v1919 = vlog2.pop %v1701
        %v1920 = vmul.f32 %v1919, 0.6931472
        %v1921 = vlog2.pop %v1702
        %v1922 = vmul.f32 %v1921, 0.6931472
        %v1923 = vlog2.pop %v1703
        %v1924 = vmul.f32 %v1923, 0.6931472
        %v1925 = vlog2.pop %v1704
        %v1926 = vmul.f32 %v1925, 0.6931472
        %v1927 = vlog2.pop %v1705
        %v1928 = vmul.f32 %v1927, 0.6931472
        %v1929 = vlog2.pop %v1706
        %v1930 = vmul.f32 %v1929, 0.6931472
        %v1931 = vlog2.pop %v1707
        %v1932 = vmul.f32 %v1931, 0.6931472
        %v1933 = vlog2.pop %v1708
        %v1934 = vmul.f32 %v1933, 0.6931472
        %v1935 = vlog2.pop %v1709
        %v1936 = vmul.f32 %v1935, 0.6931472
        %v1937 = vlog2.pop %v1710
        %v1938 = vmul.f32 %v1937, 0.6931472
        %v1939 = vlog2.pop %v1711
        %v1940 = vmul.f32 %v1939, 0.6931472
        %v1941 = vlog2.pop %v1712
        %v1942 = vmul.f32 %v1941, 0.6931472
        %v1943 = vlog2.pop %v1713
        %v1944 = vmul.f32 %v1943, 0.6931472
        %v1945 = vlog2.pop %v1714
        %v1946 = vmul.f32 %v1945, 0.6931472
        %v1947 = vlog2.pop %v1715
        %v1948 = vmul.f32 %v1947, 0.6931472
        %v1949 = vlog2.pop %v1716
        %v1950 = vmul.f32 %v1949, 0.6931472
        %v1951 = vlog2.pop %v1717
        %v1952 = vmul.f32 %v1951, 0.6931472
        %v1953 = vlog2.pop %v1718
        %v1954 = vmul.f32 %v1953, 0.6931472
        %v1955 = vlog2.pop %v1719
        %v1956 = vmul.f32 %v1955, 0.6931472
        %v1957 = vlog2.pop %v1720
        %v1958 = vmul.f32 %v1957, 0.6931472
        %v1959 = vlog2.pop %v1721
        %v1960 = vmul.f32 %v1959, 0.6931472
        %v1961 = vlog2.pop %v1722
        %v1962 = vmul.f32 %v1961, 0.6931472
        %v1963 = vlog2.pop %v1723
        %v1964 = vmul.f32 %v1963, 0.6931472
        %v1965 = vlog2.pop %v1724
        %v1966 = vmul.f32 %v1965, 0.6931472
        %v1967 = vlog2.pop %v1725
        %v1968 = vmul.f32 %v1967, 0.6931472
        %v1969 = vlog2.pop %v1726
        %v1970 = vmul.f32 %v1969, 0.6931472
        %v1971 = vlog2.pop %v1727
        %v1972 = vmul.f32 %v1971, 0.6931472
        %v1973 = vlog2.pop %v1728
        %v1974 = vmul.f32 %v1973, 0.6931472
        %v1975 = vlog2.pop %v1729
        %v1976 = vmul.f32 %v1975, 0.6931472
        %v1977 = vlog2.pop %v1730
        %v1978 = vmul.f32 %v1977, 0.6931472
        %v1979 = vlog2.pop %v1731
        %v1980 = vmul.f32 %v1979, 0.6931472
        %v1981 = vlog2.pop %v1732
        %v1982 = vmul.f32 %v1981, 0.6931472
        %v1983 = vlog2.pop %v1733
        %v1984 = vmul.f32 %v1983, 0.6931472
        %v1985 = vlog2.pop %v1734
        %v1986 = vmul.f32 %v1985, 0.6931472
        %v1987 = vlog2.pop %v1735
        %v1988 = vmul.f32 %v1987, 0.6931472
        %v1989 = vlog2.pop %v1736
        %v1990 = vmul.f32 %v1989, 0.6931472
        %v1991 = vlog2.pop %v1737
        %v1992 = vmul.f32 %v1991, 0.6931472
        %v1993 = vlog2.pop %v1738
        %v1994 = vmul.f32 %v1993, 0.6931472
        %v1995 = vstv %s199
        %v1996 = vmul.f32 %v1995, %v1740
        %v1997 = vmul.f32 %v1995, %v1742
        %v1998 = vmul.f32 %v1995, %v1744
        %v1999 = vmul.f32 %v1995, %v1746
        %v2000 = vmul.f32 %v1995, %v1748
        %v2001 = vmul.f32 %v1995, %v1750
        %v2002 = vmul.f32 %v1995, %v1752
        %v2003 = vmul.f32 %v1995, %v1754
        %v2004 = vmul.f32 %v1995, %v1756
        %v2005 = vmul.f32 %v1995, %v1758
        %v2006 = vmul.f32 %v1995, %v1760
        %v2007 = vmul.f32 %v1995, %v1762
        %v2008 = vmul.f32 %v1995, %v1764
        %v2009 = vmul.f32 %v1995, %v1766
        %v2010 = vmul.f32 %v1995, %v1768
        %v2011 = vmul.f32 %v1995, %v1770
        %v2012 = vmul.f32 %v1995, %v1772
        %v2013 = vmul.f32 %v1995, %v1774
        %v2014 = vmul.f32 %v1995, %v1776
        %v2015 = vmul.f32 %v1995, %v1778
        %v2016 = vmul.f32 %v1995, %v1780
        %v2017 = vmul.f32 %v1995, %v1782
        %v2018 = vmul.f32 %v1995, %v1784
        %v2019 = vmul.f32 %v1995, %v1786
        %v2020 = vmul.f32 %v1995, %v1788
        %v2021 = vmul.f32 %v1995, %v1790
        %v2022 = vmul.f32 %v1995, %v1792
        %v2023 = vmul.f32 %v1995, %v1794
        %v2024 = vmul.f32 %v1995, %v1796
        %v2025 = vmul.f32 %v1995, %v1798
        %v2026 = vmul.f32 %v1995, %v1800
        %v2027 = vmul.f32 %v1995, %v1802
        %v2028 = vmul.f32 %v1995, %v1804
        %v2029 = vmul.f32 %v1995, %v1806
        %v2030 = vmul.f32 %v1995, %v1808
        %v2031 = vmul.f32 %v1995, %v1810
        %v2032 = vmul.f32 %v1995, %v1812
        %v2033 = vmul.f32 %v1995, %v1814
        %v2034 = vmul.f32 %v1995, %v1816
        %v2035 = vmul.f32 %v1995, %v1818
        %v2036 = vmul.f32 %v1995, %v1820
        %v2037 = vmul.f32 %v1995, %v1822
        %v2038 = vmul.f32 %v1995, %v1824
        %v2039 = vmul.f32 %v1995, %v1826
        %v2040 = vmul.f32 %v1995, %v1828
        %v2041 = vmul.f32 %v1995, %v1830
        %v2042 = vmul.f32 %v1995, %v1832
        %v2043 = vmul.f32 %v1995, %v1834
        %v2044 = vmul.f32 %v1995, %v1836
        %v2045 = vmul.f32 %v1995, %v1838
        %v2046 = vmul.f32 %v1995, %v1840
        %v2047 = vmul.f32 %v1995, %v1842
        %v2048 = vmul.f32 %v1995, %v1844
        %v2049 = vmul.f32 %v1995, %v1846
        %v2050 = vmul.f32 %v1995, %v1848
        %v2051 = vmul.f32 %v1995, %v1850
        %v2052 = vmul.f32 %v1995, %v1852
        %v2053 = vmul.f32 %v1995, %v1854
        %v2054 = vmul.f32 %v1995, %v1856
        %v2055 = vmul.f32 %v1995, %v1858
        %v2056 = vmul.f32 %v1995, %v1860
        %v2057 = vmul.f32 %v1995, %v1862
        %v2058 = vmul.f32 %v1995, %v1864
        %v2059 = vmul.f32 %v1995, %v1866
        %v2060 = vmul.f32 %v1995, %v1868
        %v2061 = vmul.f32 %v1995, %v1870
        %v2062 = vmul.f32 %v1995, %v1872
        %v2063 = vmul.f32 %v1995, %v1874
        %v2064 = vmul.f32 %v1995, %v1876
        %v2065 = vmul.f32 %v1995, %v1878
        %v2066 = vmul.f32 %v1995, %v1880
        %v2067 = vmul.f32 %v1995, %v1882
        %v2068 = vmul.f32 %v1995, %v1884
        %v2069 = vmul.f32 %v1995, %v1886
        %v2070 = vmul.f32 %v1995, %v1888
        %v2071 = vmul.f32 %v1995, %v1890
        %v2072 = vmul.f32 %v1995, %v1892
        %v2073 = vmul.f32 %v1995, %v1894
        %v2074 = vmul.f32 %v1995, %v1896
        %v2075 = vmul.f32 %v1995, %v1898
        %v2076 = vmul.f32 %v1995, %v1900
        %v2077 = vmul.f32 %v1995, %v1902
        %v2078 = vmul.f32 %v1995, %v1904
        %v2079 = vmul.f32 %v1995, %v1906
        %v2080 = vmul.f32 %v1995, %v1908
        %v2081 = vmul.f32 %v1995, %v1910
        %v2082 = vmul.f32 %v1995, %v1912
        %v2083 = vmul.f32 %v1995, %v1914
        %v2084 = vmul.f32 %v1995, %v1916
        %v2085 = vmul.f32 %v1995, %v1918
        %v2086 = vmul.f32 %v1995, %v1920
        %v2087 = vmul.f32 %v1995, %v1922
        %v2088 = vmul.f32 %v1995, %v1924
        %v2089 = vmul.f32 %v1995, %v1926
        %v2090 = vmul.f32 %v1995, %v1928
        %v2091 = vmul.f32 %v1995, %v1930
        %v2092 = vmul.f32 %v1995, %v1932
        %v2093 = vmul.f32 %v1995, %v1934
        %v2094 = vmul.f32 %v1995, %v1936
        %v2095 = vmul.f32 %v1995, %v1938
        %v2096 = vmul.f32 %v1995, %v1940
        %v2097 = vmul.f32 %v1995, %v1942
        %v2098 = vmul.f32 %v1995, %v1944
        %v2099 = vmul.f32 %v1995, %v1946
        %v2100 = vmul.f32 %v1995, %v1948
        %v2101 = vmul.f32 %v1995, %v1950
        %v2102 = vmul.f32 %v1995, %v1952
        %v2103 = vmul.f32 %v1995, %v1954
        %v2104 = vmul.f32 %v1995, %v1956
        %v2105 = vmul.f32 %v1995, %v1958
        %v2106 = vmul.f32 %v1995, %v1960
        %v2107 = vmul.f32 %v1995, %v1962
        %v2108 = vmul.f32 %v1995, %v1964
        %v2109 = vmul.f32 %v1995, %v1966
        %v2110 = vmul.f32 %v1995, %v1968
        %v2111 = vmul.f32 %v1995, %v1970
        %v2112 = vmul.f32 %v1995, %v1972
        %v2113 = vmul.f32 %v1995, %v1974
        %v2114 = vmul.f32 %v1995, %v1976
        %v2115 = vmul.f32 %v1995, %v1978
        %v2116 = vmul.f32 %v1995, %v1980
        %v2117 = vmul.f32 %v1995, %v1982
        %v2118 = vmul.f32 %v1995, %v1984
        %v2119 = vmul.f32 %v1995, %v1986
        %v2120 = vmul.f32 %v1995, %v1988
        %v2121 = vmul.f32 %v1995, %v1990
        %v2122 = vmul.f32 %v1995, %v1992
        %v2123 = vmul.f32 %v1995, %v1994
        %v2124 = vmul.f32 %v1996, 1.442695
        %v2125 = vpow.pop %v2124
        %v2126 = vmul.f32 %v1997, 1.442695
        %v2127 = vpow.pop %v2126
        %v2128 = vmul.f32 %v1998, 1.442695
        %v2129 = vpow.pop %v2128
        %v2130 = vmul.f32 %v1999, 1.442695
        %v2131 = vpow.pop %v2130
        %v2132 = vmul.f32 %v2000, 1.442695
        %v2133 = vpow.pop %v2132
        %v2134 = vmul.f32 %v2001, 1.442695
        %v2135 = vpow.pop %v2134
        %v2136 = vmul.f32 %v2002, 1.442695
        %v2137 = vpow.pop %v2136
        %v2138 = vmul.f32 %v2003, 1.442695
        %v2139 = vpow.pop %v2138
        %v2140 = vmul.f32 %v2004, 1.442695
        %v2141 = vpow.pop %v2140
        %v2142 = vmul.f32 %v2005, 1.442695
        %v2143 = vpow.pop %v2142
        %v2144 = vmul.f32 %v2006, 1.442695
        %v2145 = vpow.pop %v2144
        %v2146 = vmul.f32 %v2007, 1.442695
        %v2147 = vpow.pop %v2146
        %v2148 = vmul.f32 %v2008, 1.442695
        %v2149 = vpow.pop %v2148
        %v2150 = vmul.f32 %v2009, 1.442695
        %v2151 = vpow.pop %v2150
        %v2152 = vmul.f32 %v2010, 1.442695
        %v2153 = vpow.pop %v2152
        %v2154 = vmul.f32 %v2011, 1.442695
        %v2155 = vpow.pop %v2154
        %v2156 = vmul.f32 %v2012, 1.442695
        %v2157 = vpow.pop %v2156
        %v2158 = vmul.f32 %v2013, 1.442695
        %v2159 = vpow.pop %v2158
        %v2160 = vmul.f32 %v2014, 1.442695
        %v2161 = vpow.pop %v2160
        %v2162 = vmul.f32 %v2015, 1.442695
        %v2163 = vpow.pop %v2162
        %v2164 = vmul.f32 %v2016, 1.442695
        %v2165 = vpow.pop %v2164
        %v2166 = vmul.f32 %v2017, 1.442695
        %v2167 = vpow.pop %v2166
        %v2168 = vmul.f32 %v2018, 1.442695
        %v2169 = vpow.pop %v2168
        %v2170 = vmul.f32 %v2019, 1.442695
        %v2171 = vpow.pop %v2170
        %v2172 = vmul.f32 %v2020, 1.442695
        %v2173 = vpow.pop %v2172
        %v2174 = vmul.f32 %v2021, 1.442695
        %v2175 = vpow.pop %v2174
        %v2176 = vmul.f32 %v2022, 1.442695
        %v2177 = vpow.pop %v2176
        %v2178 = vmul.f32 %v2023, 1.442695
        %v2179 = vpow.pop %v2178
        %v2180 = vmul.f32 %v2024, 1.442695
        %v2181 = vpow.pop %v2180
        %v2182 = vmul.f32 %v2025, 1.442695
        %v2183 = vpow.pop %v2182
        %v2184 = vmul.f32 %v2026, 1.442695
        %v2185 = vpow.pop %v2184
        %v2186 = vmul.f32 %v2027, 1.442695
        %v2187 = vpow.pop %v2186
        %v2188 = vmul.f32 %v2028, 1.442695
        %v2189 = vpow.pop %v2188
        %v2190 = vmul.f32 %v2029, 1.442695
        %v2191 = vpow.pop %v2190
        %v2192 = vmul.f32 %v2030, 1.442695
        %v2193 = vpow.pop %v2192
        %v2194 = vmul.f32 %v2031, 1.442695
        %v2195 = vpow.pop %v2194
        %v2196 = vmul.f32 %v2032, 1.442695
        %v2197 = vpow.pop %v2196
        %v2198 = vmul.f32 %v2033, 1.442695
        %v2199 = vpow.pop %v2198
        %v2200 = vmul.f32 %v2034, 1.442695
        %v2201 = vpow.pop %v2200
        %v2202 = vmul.f32 %v2035, 1.442695
        %v2203 = vpow.pop %v2202
        %v2204 = vmul.f32 %v2036, 1.442695
        %v2205 = vpow.pop %v2204
        %v2206 = vmul.f32 %v2037, 1.442695
        %v2207 = vpow.pop %v2206
        %v2208 = vmul.f32 %v2038, 1.442695
        %v2209 = vpow.pop %v2208
        %v2210 = vmul.f32 %v2039, 1.442695
        %v2211 = vpow.pop %v2210
        %v2212 = vmul.f32 %v2040, 1.442695
        %v2213 = vpow.pop %v2212
        %v2214 = vmul.f32 %v2041, 1.442695
        %v2215 = vpow.pop %v2214
        %v2216 = vmul.f32 %v2042, 1.442695
        %v2217 = vpow.pop %v2216
        %v2218 = vmul.f32 %v2043, 1.442695
        %v2219 = vpow.pop %v2218
        %v2220 = vmul.f32 %v2044, 1.442695
        %v2221 = vpow.pop %v2220
        %v2222 = vmul.f32 %v2045, 1.442695
        %v2223 = vpow.pop %v2222
        %v2224 = vmul.f32 %v2046, 1.442695
        %v2225 = vpow.pop %v2224
        %v2226 = vmul.f32 %v2047, 1.442695
        %v2227 = vpow.pop %v2226
        %v2228 = vmul.f32 %v2048, 1.442695
        %v2229 = vpow.pop %v2228
        %v2230 = vmul.f32 %v2049, 1.442695
        %v2231 = vpow.pop %v2230
        %v2232 = vmul.f32 %v2050, 1.442695
        %v2233 = vpow.pop %v2232
        %v2234 = vmul.f32 %v2051, 1.442695
        %v2235 = vpow.pop %v2234
        %v2236 = vmul.f32 %v2052, 1.442695
        %v2237 = vpow.pop %v2236
        %v2238 = vmul.f32 %v2053, 1.442695
        %v2239 = vpow.pop %v2238
        %v2240 = vmul.f32 %v2054, 1.442695
        %v2241 = vpow.pop %v2240
        %v2242 = vmul.f32 %v2055, 1.442695
        %v2243 = vpow.pop %v2242
        %v2244 = vmul.f32 %v2056, 1.442695
        %v2245 = vpow.pop %v2244
        %v2246 = vmul.f32 %v2057, 1.442695
        %v2247 = vpow.pop %v2246
        %v2248 = vmul.f32 %v2058, 1.442695
        %v2249 = vpow.pop %v2248
        %v2250 = vmul.f32 %v2059, 1.442695
        %v2251 = vpow.pop %v2250
        %v2252 = vmul.f32 %v2060, 1.442695
        %v2253 = vpow.pop %v2252
        %v2254 = vmul.f32 %v2061, 1.442695
        %v2255 = vpow.pop %v2254
        %v2256 = vmul.f32 %v2062, 1.442695
        %v2257 = vpow.pop %v2256
        %v2258 = vmul.f32 %v2063, 1.442695
        %v2259 = vpow.pop %v2258
        %v2260 = vmul.f32 %v2064, 1.442695
        %v2261 = vpow.pop %v2260
        %v2262 = vmul.f32 %v2065, 1.442695
        %v2263 = vpow.pop %v2262
        %v2264 = vmul.f32 %v2066, 1.442695
        %v2265 = vpow.pop %v2264
        %v2266 = vmul.f32 %v2067, 1.442695
        %v2267 = vpow.pop %v2266
        %v2268 = vmul.f32 %v2068, 1.442695
        %v2269 = vpow.pop %v2268
        %v2270 = vmul.f32 %v2069, 1.442695
        %v2271 = vpow.pop %v2270
        %v2272 = vmul.f32 %v2070, 1.442695
        %v2273 = vpow.pop %v2272
        %v2274 = vmul.f32 %v2071, 1.442695
        %v2275 = vpow.pop %v2274
        %v2276 = vmul.f32 %v2072, 1.442695
        %v2277 = vpow.pop %v2276
        %v2278 = vmul.f32 %v2073, 1.442695
        %v2279 = vpow.pop %v2278
        %v2280 = vmul.f32 %v2074, 1.442695
        %v2281 = vpow.pop %v2280
        %v2282 = vmul.f32 %v2075, 1.442695
        %v2283 = vpow.pop %v2282
        %v2284 = vmul.f32 %v2076, 1.442695
        %v2285 = vpow.pop %v2284
        %v2286 = vmul.f32 %v2077, 1.442695
        %v2287 = vpow.pop %v2286
        %v2288 = vmul.f32 %v2078, 1.442695
        %v2289 = vpow.pop %v2288
        %v2290 = vmul.f32 %v2079, 1.442695
        %v2291 = vpow.pop %v2290
        %v2292 = vmul.f32 %v2080, 1.442695
        %v2293 = vpow.pop %v2292
        %v2294 = vmul.f32 %v2081, 1.442695
        %v2295 = vpow.pop %v2294
        %v2296 = vmul.f32 %v2082, 1.442695
        %v2297 = vpow.pop %v2296
        %v2298 = vmul.f32 %v2083, 1.442695
        %v2299 = vpow.pop %v2298
        %v2300 = vmul.f32 %v2084, 1.442695
        %v2301 = vpow.pop %v2300
        %v2302 = vmul.f32 %v2085, 1.442695
        %v2303 = vpow.pop %v2302
        %v2304 = vmul.f32 %v2086, 1.442695
        %v2305 = vpow.pop %v2304
        %v2306 = vmul.f32 %v2087, 1.442695
        %v2307 = vpow.pop %v2306
        %v2308 = vmul.f32 %v2088, 1.442695
        %v2309 = vpow.pop %v2308
        %v2310 = vmul.f32 %v2089, 1.442695
        %v2311 = vpow.pop %v2310
        %v2312 = vmul.f32 %v2090, 1.442695
        %v2313 = vpow.pop %v2312
        %v2314 = vmul.f32 %v2091, 1.442695
        %v2315 = vpow.pop %v2314
        %v2316 = vmul.f32 %v2092, 1.442695
        %v2317 = vpow.pop %v2316
        %v2318 = vmul.f32 %v2093, 1.442695
        %v2319 = vpow.pop %v2318
        %v2320 = vmul.f32 %v2094, 1.442695
        %v2321 = vpow.pop %v2320
        %v2322 = vmul.f32 %v2095, 1.442695
        %v2323 = vpow.pop %v2322
        %v2324 = vmul.f32 %v2096, 1.442695
        %v2325 = vpow.pop %v2324
        %v2326 = vmul.f32 %v2097, 1.442695
        %v2327 = vpow.pop %v2326
        %v2328 = vmul.f32 %v2098, 1.442695
        %v2329 = vpow.pop %v2328
        %v2330 = vmul.f32 %v2099, 1.442695
        %v2331 = vpow.pop %v2330
        %v2332 = vmul.f32 %v2100, 1.442695
        %v2333 = vpow.pop %v2332
        %v2334 = vmul.f32 %v2101, 1.442695
        %v2335 = vpow.pop %v2334
        %v2336 = vmul.f32 %v2102, 1.442695
        %v2337 = vpow.pop %v2336
        %v2338 = vmul.f32 %v2103, 1.442695
        %v2339 = vpow.pop %v2338
        %v2340 = vmul.f32 %v2104, 1.442695
        %v2341 = vpow.pop %v2340
        %v2342 = vmul.f32 %v2105, 1.442695
        %v2343 = vpow.pop %v2342
        %v2344 = vmul.f32 %v2106, 1.442695
        %v2345 = vpow.pop %v2344
        %v2346 = vmul.f32 %v2107, 1.442695
        %v2347 = vpow.pop %v2346
        %v2348 = vmul.f32 %v2108, 1.442695
        %v2349 = vpow.pop %v2348
        %v2350 = vmul.f32 %v2109, 1.442695
        %v2351 = vpow.pop %v2350
        %v2352 = vmul.f32 %v2110, 1.442695
        %v2353 = vpow.pop %v2352
        %v2354 = vmul.f32 %v2111, 1.442695
        %v2355 = vpow.pop %v2354
        %v2356 = vmul.f32 %v2112, 1.442695
        %v2357 = vpow.pop %v2356
        %v2358 = vmul.f32 %v2113, 1.442695
        %v2359 = vpow.pop %v2358
        %v2360 = vmul.f32 %v2114, 1.442695
        %v2361 = vpow.pop %v2360
        %v2362 = vmul.f32 %v2115, 1.442695
        %v2363 = vpow.pop %v2362
        %v2364 = vmul.f32 %v2116, 1.442695
        %v2365 = vpow.pop %v2364
        %v2366 = vmul.f32 %v2117, 1.442695
        %v2367 = vpow.pop %v2366
        %v2368 = vmul.f32 %v2118, 1.442695
        %v2369 = vpow.pop %v2368
        %v2370 = vmul.f32 %v2119, 1.442695
        %v2371 = vpow.pop %v2370
        %v2372 = vmul.f32 %v2120, 1.442695
        %v2373 = vpow.pop %v2372
        %v2374 = vmul.f32 %v2121, 1.442695
        %v2375 = vpow.pop %v2374
        %v2376 = vmul.f32 %v2122, 1.442695
        %v2377 = vpow.pop %v2376
        %v2378 = vmul.f32 %v2123, 1.442695
        %v2379 = vpow.pop %v2378
        %v2380 = vld [vmem:[%s2] sm:$0xff]
        %v2381 = vld [vmem:[%s2 + $0x8] sm:$0xff]
        %v2382 = vld [vmem:[%s2 + $0x10] sm:$0xff]
        %v2383 = vld [vmem:[%s2 + $0x18] sm:$0xff]
        %v2384 = vld [vmem:[%s2 + $0x20] sm:$0xff]
        %v2385 = vld [vmem:[%s2 + $0x28] sm:$0xff]
        %v2386 = vld [vmem:[%s2 + $0x30] sm:$0xff]
        %v2387 = vld [vmem:[%s2 + $0x38] sm:$0xff]
        %v2388 = vld [vmem:[%s2 + $0x40] sm:$0xff]
        %v2389 = vld [vmem:[%s2 + $0x48] sm:$0xff]
        %v2390 = vld [vmem:[%s2 + $0x50] sm:$0xff]
        %v2391 = vld [vmem:[%s2 + $0x58] sm:$0xff]
        %v2392 = vld [vmem:[%s2 + $0x60] sm:$0xff]
        %v2393 = vld [vmem:[%s2 + $0x68] sm:$0xff]
        %v2394 = vld [vmem:[%s2 + $0x70] sm:$0xff]
        %v2395 = vld [vmem:[%s2 + $0x78] sm:$0xff]
        %v2396 = vld [vmem:[%s2 + $0x80] sm:$0xff]
        %v2397 = vld [vmem:[%s2 + $0x88] sm:$0xff]
        %v2398 = vld [vmem:[%s2 + $0x90] sm:$0xff]
        %v2399 = vld [vmem:[%s2 + $0x98] sm:$0xff]
        %v2400 = vld [vmem:[%s2 + $0xa0] sm:$0xff]
        %v2401 = vld [vmem:[%s2 + $0xa8] sm:$0xff]
        %v2402 = vld [vmem:[%s2 + $0xb0] sm:$0xff]
        %v2403 = vld [vmem:[%s2 + $0xb8] sm:$0xff]
        %v2404 = vld [vmem:[%s2 + $0xc0] sm:$0xff]
        %v2405 = vld [vmem:[%s2 + $0xc8] sm:$0xff]
        %v2406 = vld [vmem:[%s2 + $0xd0] sm:$0xff]
        %v2407 = vld [vmem:[%s2 + $0xd8] sm:$0xff]
        %v2408 = vld [vmem:[%s2 + $0xe0] sm:$0xff]
        %v2409 = vld [vmem:[%s2 + $0xe8] sm:$0xff]
        %v2410 = vld [vmem:[%s2 + $0xf0] sm:$0xff]
        %v2411 = vld [vmem:[%s2 + $0xf8] sm:$0xff]
        %v2412 = vld [vmem:[%s2 + $0x100] sm:$0xff]
        %v2413 = vld [vmem:[%s2 + $0x108] sm:$0xff]
        %v2414 = vld [vmem:[%s2 + $0x110] sm:$0xff]
        %v2415 = vld [vmem:[%s2 + $0x118] sm:$0xff]
        %v2416 = vld [vmem:[%s2 + $0x120] sm:$0xff]
        %v2417 = vld [vmem:[%s2 + $0x128] sm:$0xff]
        %v2418 = vld [vmem:[%s2 + $0x130] sm:$0xff]
        %v2419 = vld [vmem:[%s2 + $0x138] sm:$0xff]
        %v2420 = vld [vmem:[%s2 + $0x140] sm:$0xff]
        %v2421 = vld [vmem:[%s2 + $0x148] sm:$0xff]
        %v2422 = vld [vmem:[%s2 + $0x150] sm:$0xff]
        %v2423 = vld [vmem:[%s2 + $0x158] sm:$0xff]
        %v2424 = vld [vmem:[%s2 + $0x160] sm:$0xff]
        %v2425 = vld [vmem:[%s2 + $0x168] sm:$0xff]
        %v2426 = vld [vmem:[%s2 + $0x170] sm:$0xff]
        %v2427 = vld [vmem:[%s2 + $0x178] sm:$0xff]
        %v2428 = vld [vmem:[%s2 + $0x180] sm:$0xff]
        %v2429 = vld [vmem:[%s2 + $0x188] sm:$0xff]
        %v2430 = vld [vmem:[%s2 + $0x190] sm:$0xff]
        %v2431 = vld [vmem:[%s2 + $0x198] sm:$0xff]
        %v2432 = vld [vmem:[%s2 + $0x1a0] sm:$0xff]
        %v2433 = vld [vmem:[%s2 + $0x1a8] sm:$0xff]
        %v2434 = vld [vmem:[%s2 + $0x1b0] sm:$0xff]
        %v2435 = vld [vmem:[%s2 + $0x1b8] sm:$0xff]
        %v2436 = vld [vmem:[%s2 + $0x1c0] sm:$0xff]
        %v2437 = vld [vmem:[%s2 + $0x1c8] sm:$0xff]
        %v2438 = vld [vmem:[%s2 + $0x1d0] sm:$0xff]
        %v2439 = vld [vmem:[%s2 + $0x1d8] sm:$0xff]
        %v2440 = vld [vmem:[%s2 + $0x1e0] sm:$0xff]
        %v2441 = vld [vmem:[%s2 + $0x1e8] sm:$0xff]
        %v2442 = vld [vmem:[%s2 + $0x1f0] sm:$0xff]
        %v2443 = vld [vmem:[%s2 + $0x1f8] sm:$0xff]
        %v2444 = vld [vmem:[%s2 + $0x200] sm:$0xff]
        %v2445 = vld [vmem:[%s2 + $0x208] sm:$0xff]
        %v2446 = vld [vmem:[%s2 + $0x210] sm:$0xff]
        %v2447 = vld [vmem:[%s2 + $0x218] sm:$0xff]
        %v2448 = vld [vmem:[%s2 + $0x220] sm:$0xff]
        %v2449 = vld [vmem:[%s2 + $0x228] sm:$0xff]
        %v2450 = vld [vmem:[%s2 + $0x230] sm:$0xff]
        %v2451 = vld [vmem:[%s2 + $0x238] sm:$0xff]
        %v2452 = vld [vmem:[%s2 + $0x240] sm:$0xff]
        %v2453 = vld [vmem:[%s2 + $0x248] sm:$0xff]
        %v2454 = vld [vmem:[%s2 + $0x250] sm:$0xff]
        %v2455 = vld [vmem:[%s2 + $0x258] sm:$0xff]
        %v2456 = vld [vmem:[%s2 + $0x260] sm:$0xff]
        %v2457 = vld [vmem:[%s2 + $0x268] sm:$0xff]
        %v2458 = vld [vmem:[%s2 + $0x270] sm:$0xff]
        %v2459 = vld [vmem:[%s2 + $0x278] sm:$0xff]
        %v2460 = vld [vmem:[%s2 + $0x280] sm:$0xff]
        %v2461 = vld [vmem:[%s2 + $0x288] sm:$0xff]
        %v2462 = vld [vmem:[%s2 + $0x290] sm:$0xff]
        %v2463 = vld [vmem:[%s2 + $0x298] sm:$0xff]
        %v2464 = vld [vmem:[%s2 + $0x2a0] sm:$0xff]
        %v2465 = vld [vmem:[%s2 + $0x2a8] sm:$0xff]
        %v2466 = vld [vmem:[%s2 + $0x2b0] sm:$0xff]
        %v2467 = vld [vmem:[%s2 + $0x2b8] sm:$0xff]
        %v2468 = vld [vmem:[%s2 + $0x2c0] sm:$0xff]
        %v2469 = vld [vmem:[%s2 + $0x2c8] sm:$0xff]
        %v2470 = vld [vmem:[%s2 + $0x2d0] sm:$0xff]
        %v2471 = vld [vmem:[%s2 + $0x2d8] sm:$0xff]
        %v2472 = vld [vmem:[%s2 + $0x2e0] sm:$0xff]
        %v2473 = vld [vmem:[%s2 + $0x2e8] sm:$0xff]
        %v2474 = vld [vmem:[%s2 + $0x2f0] sm:$0xff]
        %v2475 = vld [vmem:[%s2 + $0x2f8] sm:$0xff]
        %v2476 = vld [vmem:[%s2 + $0x300] sm:$0xff]
        %v2477 = vld [vmem:[%s2 + $0x308] sm:$0xff]
        %v2478 = vld [vmem:[%s2 + $0x310] sm:$0xff]
        %v2479 = vld [vmem:[%s2 + $0x318] sm:$0xff]
        %v2480 = vld [vmem:[%s2 + $0x320] sm:$0xff]
        %v2481 = vld [vmem:[%s2 + $0x328] sm:$0xff]
        %v2482 = vld [vmem:[%s2 + $0x330] sm:$0xff]
        %v2483 = vld [vmem:[%s2 + $0x338] sm:$0xff]
        %v2484 = vld [vmem:[%s2 + $0x340] sm:$0xff]
        %v2485 = vld [vmem:[%s2 + $0x348] sm:$0xff]
        %v2486 = vld [vmem:[%s2 + $0x350] sm:$0xff]
        %v2487 = vld [vmem:[%s2 + $0x358] sm:$0xff]
        %v2488 = vld [vmem:[%s2 + $0x360] sm:$0xff]
        %v2489 = vld [vmem:[%s2 + $0x368] sm:$0xff]
        %v2490 = vld [vmem:[%s2 + $0x370] sm:$0xff]
        %v2491 = vld [vmem:[%s2 + $0x378] sm:$0xff]
        %v2492 = vld [vmem:[%s2 + $0x380] sm:$0xff]
        %v2493 = vld [vmem:[%s2 + $0x388] sm:$0xff]
        %v2494 = vld [vmem:[%s2 + $0x390] sm:$0xff]
        %v2495 = vld [vmem:[%s2 + $0x398] sm:$0xff]
        %v2496 = vld [vmem:[%s2 + $0x3a0] sm:$0xff]
        %v2497 = vld [vmem:[%s2 + $0x3a8] sm:$0xff]
        %v2498 = vld [vmem:[%s2 + $0x3b0] sm:$0xff]
        %v2499 = vld [vmem:[%s2 + $0x3b8] sm:$0xff]
        %v2500 = vld [vmem:[%s2 + $0x3c0] sm:$0xff]
        %v2501 = vld [vmem:[%s2 + $0x3c8] sm:$0xff]
        %v2502 = vld [vmem:[%s2 + $0x3d0] sm:$0xff]
        %v2503 = vld [vmem:[%s2 + $0x3d8] sm:$0xff]
        %v2504 = vld [vmem:[%s2 + $0x3e0] sm:$0xff]
        %v2505 = vld [vmem:[%s2 + $0x3e8] sm:$0xff]
        %v2506 = vld [vmem:[%s2 + $0x3f0] sm:$0xff]
        %v2507 = vld [vmem:[%s2 + $0x3f8] sm:$0xff]
        %v2508 = vunpack.c.l.bf16 %v2380
        %v2509 = vunpack.c.h.bf16 %v2380
        %v2510 = vunpack.c.l.bf16 %v2381
        %v2511 = vunpack.c.h.bf16 %v2381
        %v2512 = vunpack.c.l.bf16 %v2382
        %v2513 = vunpack.c.h.bf16 %v2382
        %v2514 = vunpack.c.l.bf16 %v2383
        %v2515 = vunpack.c.h.bf16 %v2383
        %v2516 = vunpack.c.l.bf16 %v2384
        %v2517 = vunpack.c.h.bf16 %v2384
        %v2518 = vunpack.c.l.bf16 %v2385
        %v2519 = vunpack.c.h.bf16 %v2385
        %v2520 = vunpack.c.l.bf16 %v2386
        %v2521 = vunpack.c.h.bf16 %v2386
        %v2522 = vunpack.c.l.bf16 %v2387
        %v2523 = vunpack.c.h.bf16 %v2387
        %v2524 = vunpack.c.l.bf16 %v2388
        %v2525 = vunpack.c.h.bf16 %v2388
        %v2526 = vunpack.c.l.bf16 %v2389
        %v2527 = vunpack.c.h.bf16 %v2389
        %v2528 = vunpack.c.l.bf16 %v2390
        %v2529 = vunpack.c.h.bf16 %v2390
        %v2530 = vunpack.c.l.bf16 %v2391
        %v2531 = vunpack.c.h.bf16 %v2391
        %v2532 = vunpack.c.l.bf16 %v2392
        %v2533 = vunpack.c.h.bf16 %v2392
        %v2534 = vunpack.c.l.bf16 %v2393
        %v2535 = vunpack.c.h.bf16 %v2393
        %v2536 = vunpack.c.l.bf16 %v2394
        %v2537 = vunpack.c.h.bf16 %v2394
        %v2538 = vunpack.c.l.bf16 %v2395
        %v2539 = vunpack.c.h.bf16 %v2395
        %v2540 = vunpack.c.l.bf16 %v2396
        %v2541 = vunpack.c.h.bf16 %v2396
        %v2542 = vunpack.c.l.bf16 %v2397
        %v2543 = vunpack.c.h.bf16 %v2397
        %v2544 = vunpack.c.l.bf16 %v2398
        %v2545 = vunpack.c.h.bf16 %v2398
        %v2546 = vunpack.c.l.bf16 %v2399
        %v2547 = vunpack.c.h.bf16 %v2399
        %v2548 = vunpack.c.l.bf16 %v2400
        %v2549 = vunpack.c.h.bf16 %v2400
        %v2550 = vunpack.c.l.bf16 %v2401
        %v2551 = vunpack.c.h.bf16 %v2401
        %v2552 = vunpack.c.l.bf16 %v2402
        %v2553 = vunpack.c.h.bf16 %v2402
        %v2554 = vunpack.c.l.bf16 %v2403
        %v2555 = vunpack.c.h.bf16 %v2403
        %v2556 = vunpack.c.l.bf16 %v2404
        %v2557 = vunpack.c.h.bf16 %v2404
        %v2558 = vunpack.c.l.bf16 %v2405
        %v2559 = vunpack.c.h.bf16 %v2405
        %v2560 = vunpack.c.l.bf16 %v2406
        %v2561 = vunpack.c.h.bf16 %v2406
        %v2562 = vunpack.c.l.bf16 %v2407
        %v2563 = vunpack.c.h.bf16 %v2407
        %v2564 = vunpack.c.l.bf16 %v2408
        %v2565 = vunpack.c.h.bf16 %v2408
        %v2566 = vunpack.c.l.bf16 %v2409
        %v2567 = vunpack.c.h.bf16 %v2409
        %v2568 = vunpack.c.l.bf16 %v2410
        %v2569 = vunpack.c.h.bf16 %v2410
        %v2570 = vunpack.c.l.bf16 %v2411
        %v2571 = vunpack.c.h.bf16 %v2411
        %v2572 = vunpack.c.l.bf16 %v2412
        %v2573 = vunpack.c.h.bf16 %v2412
        %v2574 = vunpack.c.l.bf16 %v2413
        %v2575 = vunpack.c.h.bf16 %v2413
        %v2576 = vunpack.c.l.bf16 %v2414
        %v2577 = vunpack.c.h.bf16 %v2414
        %v2578 = vunpack.c.l.bf16 %v2415
        %v2579 = vunpack.c.h.bf16 %v2415
        %v2580 = vunpack.c.l.bf16 %v2416
        %v2581 = vunpack.c.h.bf16 %v2416
        %v2582 = vunpack.c.l.bf16 %v2417
        %v2583 = vunpack.c.h.bf16 %v2417
        %v2584 = vunpack.c.l.bf16 %v2418
        %v2585 = vunpack.c.h.bf16 %v2418
        %v2586 = vunpack.c.l.bf16 %v2419
        %v2587 = vunpack.c.h.bf16 %v2419
        %v2588 = vunpack.c.l.bf16 %v2420
        %v2589 = vunpack.c.h.bf16 %v2420
        %v2590 = vunpack.c.l.bf16 %v2421
        %v2591 = vunpack.c.h.bf16 %v2421
        %v2592 = vunpack.c.l.bf16 %v2422
        %v2593 = vunpack.c.h.bf16 %v2422
        %v2594 = vunpack.c.l.bf16 %v2423
        %v2595 = vunpack.c.h.bf16 %v2423
        %v2596 = vunpack.c.l.bf16 %v2424
        %v2597 = vunpack.c.h.bf16 %v2424
        %v2598 = vunpack.c.l.bf16 %v2425
        %v2599 = vunpack.c.h.bf16 %v2425
        %v2600 = vunpack.c.l.bf16 %v2426
        %v2601 = vunpack.c.h.bf16 %v2426
        %v2602 = vunpack.c.l.bf16 %v2427
        %v2603 = vunpack.c.h.bf16 %v2427
        %v2604 = vunpack.c.l.bf16 %v2428
        %v2605 = vunpack.c.h.bf16 %v2428
        %v2606 = vunpack.c.l.bf16 %v2429
        %v2607 = vunpack.c.h.bf16 %v2429
        %v2608 = vunpack.c.l.bf16 %v2430
        %v2609 = vunpack.c.h.bf16 %v2430
        %v2610 = vunpack.c.l.bf16 %v2431
        %v2611 = vunpack.c.h.bf16 %v2431
        %v2612 = vunpack.c.l.bf16 %v2432
        %v2613 = vunpack.c.h.bf16 %v2432
        %v2614 = vunpack.c.l.bf16 %v2433
        %v2615 = vunpack.c.h.bf16 %v2433
        %v2616 = vunpack.c.l.bf16 %v2434
        %v2617 = vunpack.c.h.bf16 %v2434
        %v2618 = vunpack.c.l.bf16 %v2435
        %v2619 = vunpack.c.h.bf16 %v2435
        %v2620 = vunpack.c.l.bf16 %v2436
        %v2621 = vunpack.c.h.bf16 %v2436
        %v2622 = vunpack.c.l.bf16 %v2437
        %v2623 = vunpack.c.h.bf16 %v2437
        %v2624 = vunpack.c.l.bf16 %v2438
        %v2625 = vunpack.c.h.bf16 %v2438
        %v2626 = vunpack.c.l.bf16 %v2439
        %v2627 = vunpack.c.h.bf16 %v2439
        %v2628 = vunpack.c.l.bf16 %v2440
        %v2629 = vunpack.c.h.bf16 %v2440
        %v2630 = vunpack.c.l.bf16 %v2441
        %v2631 = vunpack.c.h.bf16 %v2441
        %v2632 = vunpack.c.l.bf16 %v2442
        %v2633 = vunpack.c.h.bf16 %v2442
        %v2634 = vunpack.c.l.bf16 %v2443
        %v2635 = vunpack.c.h.bf16 %v2443
        %v2636 = vunpack.c.l.bf16 %v2444
        %v2637 = vunpack.c.h.bf16 %v2444
        %v2638 = vunpack.c.l.bf16 %v2445
        %v2639 = vunpack.c.h.bf16 %v2445
        %v2640 = vunpack.c.l.bf16 %v2446
        %v2641 = vunpack.c.h.bf16 %v2446
        %v2642 = vunpack.c.l.bf16 %v2447
        %v2643 = vunpack.c.h.bf16 %v2447
        %v2644 = vunpack.c.l.bf16 %v2448
        %v2645 = vunpack.c.h.bf16 %v2448
        %v2646 = vunpack.c.l.bf16 %v2449
        %v2647 = vunpack.c.h.bf16 %v2449
        %v2648 = vunpack.c.l.bf16 %v2450
        %v2649 = vunpack.c.h.bf16 %v2450
        %v2650 = vunpack.c.l.bf16 %v2451
        %v2651 = vunpack.c.h.bf16 %v2451
        %v2652 = vunpack.c.l.bf16 %v2452
        %v2653 = vunpack.c.h.bf16 %v2452
        %v2654 = vunpack.c.l.bf16 %v2453
        %v2655 = vunpack.c.h.bf16 %v2453
        %v2656 = vunpack.c.l.bf16 %v2454
        %v2657 = vunpack.c.h.bf16 %v2454
        %v2658 = vunpack.c.l.bf16 %v2455
        %v2659 = vunpack.c.h.bf16 %v2455
        %v2660 = vunpack.c.l.bf16 %v2456
        %v2661 = vunpack.c.h.bf16 %v2456
        %v2662 = vunpack.c.l.bf16 %v2457
        %v2663 = vunpack.c.h.bf16 %v2457
        %v2664 = vunpack.c.l.bf16 %v2458
        %v2665 = vunpack.c.h.bf16 %v2458
        %v2666 = vunpack.c.l.bf16 %v2459
        %v2667 = vunpack.c.h.bf16 %v2459
        %v2668 = vunpack.c.l.bf16 %v2460
        %v2669 = vunpack.c.h.bf16 %v2460
        %v2670 = vunpack.c.l.bf16 %v2461
        %v2671 = vunpack.c.h.bf16 %v2461
        %v2672 = vunpack.c.l.bf16 %v2462
        %v2673 = vunpack.c.h.bf16 %v2462
        %v2674 = vunpack.c.l.bf16 %v2463
        %v2675 = vunpack.c.h.bf16 %v2463
        %v2676 = vunpack.c.l.bf16 %v2464
        %v2677 = vunpack.c.h.bf16 %v2464
        %v2678 = vunpack.c.l.bf16 %v2465
        %v2679 = vunpack.c.h.bf16 %v2465
        %v2680 = vunpack.c.l.bf16 %v2466
        %v2681 = vunpack.c.h.bf16 %v2466
        %v2682 = vunpack.c.l.bf16 %v2467
        %v2683 = vunpack.c.h.bf16 %v2467
        %v2684 = vunpack.c.l.bf16 %v2468
        %v2685 = vunpack.c.h.bf16 %v2468
        %v2686 = vunpack.c.l.bf16 %v2469
        %v2687 = vunpack.c.h.bf16 %v2469
        %v2688 = vunpack.c.l.bf16 %v2470
        %v2689 = vunpack.c.h.bf16 %v2470
        %v2690 = vunpack.c.l.bf16 %v2471
        %v2691 = vunpack.c.h.bf16 %v2471
        %v2692 = vunpack.c.l.bf16 %v2472
        %v2693 = vunpack.c.h.bf16 %v2472
        %v2694 = vunpack.c.l.bf16 %v2473
        %v2695 = vunpack.c.h.bf16 %v2473
        %v2696 = vunpack.c.l.bf16 %v2474
        %v2697 = vunpack.c.h.bf16 %v2474
        %v2698 = vunpack.c.l.bf16 %v2475
        %v2699 = vunpack.c.h.bf16 %v2475
        %v2700 = vunpack.c.l.bf16 %v2476
        %v2701 = vunpack.c.h.bf16 %v2476
        %v2702 = vunpack.c.l.bf16 %v2477
        %v2703 = vunpack.c.h.bf16 %v2477
        %v2704 = vunpack.c.l.bf16 %v2478
        %v2705 = vunpack.c.h.bf16 %v2478
        %v2706 = vunpack.c.l.bf16 %v2479
        %v2707 = vunpack.c.h.bf16 %v2479
        %v2708 = vunpack.c.l.bf16 %v2480
        %v2709 = vunpack.c.h.bf16 %v2480
        %v2710 = vunpack.c.l.bf16 %v2481
        %v2711 = vunpack.c.h.bf16 %v2481
        %v2712 = vunpack.c.l.bf16 %v2482
        %v2713 = vunpack.c.h.bf16 %v2482
        %v2714 = vunpack.c.l.bf16 %v2483
        %v2715 = vunpack.c.h.bf16 %v2483
        %v2716 = vunpack.c.l.bf16 %v2484
        %v2717 = vunpack.c.h.bf16 %v2484
        %v2718 = vunpack.c.l.bf16 %v2485
        %v2719 = vunpack.c.h.bf16 %v2485
        %v2720 = vunpack.c.l.bf16 %v2486
        %v2721 = vunpack.c.h.bf16 %v2486
        %v2722 = vunpack.c.l.bf16 %v2487
        %v2723 = vunpack.c.h.bf16 %v2487
        %v2724 = vunpack.c.l.bf16 %v2488
        %v2725 = vunpack.c.h.bf16 %v2488
        %v2726 = vunpack.c.l.bf16 %v2489
        %v2727 = vunpack.c.h.bf16 %v2489
        %v2728 = vunpack.c.l.bf16 %v2490
        %v2729 = vunpack.c.h.bf16 %v2490
        %v2730 = vunpack.c.l.bf16 %v2491
        %v2731 = vunpack.c.h.bf16 %v2491
        %v2732 = vunpack.c.l.bf16 %v2492
        %v2733 = vunpack.c.h.bf16 %v2492
        %v2734 = vunpack.c.l.bf16 %v2493
        %v2735 = vunpack.c.h.bf16 %v2493
        %v2736 = vunpack.c.l.bf16 %v2494
        %v2737 = vunpack.c.h.bf16 %v2494
        %v2738 = vunpack.c.l.bf16 %v2495
        %v2739 = vunpack.c.h.bf16 %v2495
        %v2740 = vunpack.c.l.bf16 %v2496
        %v2741 = vunpack.c.h.bf16 %v2496
        %v2742 = vunpack.c.l.bf16 %v2497
        %v2743 = vunpack.c.h.bf16 %v2497
        %v2744 = vunpack.c.l.bf16 %v2498
        %v2745 = vunpack.c.h.bf16 %v2498
        %v2746 = vunpack.c.l.bf16 %v2499
        %v2747 = vunpack.c.h.bf16 %v2499
        %v2748 = vunpack.c.l.bf16 %v2500
        %v2749 = vunpack.c.h.bf16 %v2500
        %v2750 = vunpack.c.l.bf16 %v2501
        %v2751 = vunpack.c.h.bf16 %v2501
        %v2752 = vunpack.c.l.bf16 %v2502
        %v2753 = vunpack.c.h.bf16 %v2502
        %v2754 = vunpack.c.l.bf16 %v2503
        %v2755 = vunpack.c.h.bf16 %v2503
        %v2756 = vunpack.c.l.bf16 %v2504
        %v2757 = vunpack.c.h.bf16 %v2504
        %v2758 = vunpack.c.l.bf16 %v2505
        %v2759 = vunpack.c.h.bf16 %v2505
        %v2760 = vunpack.c.l.bf16 %v2506
        %v2761 = vunpack.c.h.bf16 %v2506
        %v2762 = vunpack.c.l.bf16 %v2507
        %v2763 = vunpack.c.h.bf16 %v2507
        %v2764 = vld [vmem:[%s3] sm:$0xf]
        %v2765 = vld [vmem:[%s3 + $0x4] sm:$0xf]
        %v2766 = vld [vmem:[%s3 + $0x8] sm:$0xf]
        %v2767 = vld [vmem:[%s3 + $0xc] sm:$0xf]
        %v2768 = vld [vmem:[%s3 + $0x10] sm:$0xf]
        %v2769 = vld [vmem:[%s3 + $0x14] sm:$0xf]
        %v2770 = vld [vmem:[%s3 + $0x18] sm:$0xf]
        %v2771 = vld [vmem:[%s3 + $0x1c] sm:$0xf]
        %v2772 = vld [vmem:[%s3 + $0x20] sm:$0xf]
        %v2773 = vld [vmem:[%s3 + $0x24] sm:$0xf]
        %v2774 = vld [vmem:[%s3 + $0x28] sm:$0xf]
        %v2775 = vld [vmem:[%s3 + $0x2c] sm:$0xf]
        %v2776 = vld [vmem:[%s3 + $0x30] sm:$0xf]
        %v2777 = vld [vmem:[%s3 + $0x34] sm:$0xf]
        %v2778 = vld [vmem:[%s3 + $0x38] sm:$0xf]
        %v2779 = vld [vmem:[%s3 + $0x3c] sm:$0xf]
        %v2780 = vld [vmem:[%s3 + $0x40] sm:$0xf]
        %v2781 = vld [vmem:[%s3 + $0x44] sm:$0xf]
        %v2782 = vld [vmem:[%s3 + $0x48] sm:$0xf]
        %v2783 = vld [vmem:[%s3 + $0x4c] sm:$0xf]
        %v2784 = vld [vmem:[%s3 + $0x50] sm:$0xf]
        %v2785 = vld [vmem:[%s3 + $0x54] sm:$0xf]
        %v2786 = vld [vmem:[%s3 + $0x58] sm:$0xf]
        %v2787 = vld [vmem:[%s3 + $0x5c] sm:$0xf]
        %v2788 = vld [vmem:[%s3 + $0x60] sm:$0xf]
        %v2789 = vld [vmem:[%s3 + $0x64] sm:$0xf]
        %v2790 = vld [vmem:[%s3 + $0x68] sm:$0xf]
        %v2791 = vld [vmem:[%s3 + $0x6c] sm:$0xf]
        %v2792 = vld [vmem:[%s3 + $0x70] sm:$0xf]
        %v2793 = vld [vmem:[%s3 + $0x74] sm:$0xf]
        %v2794 = vld [vmem:[%s3 + $0x78] sm:$0xf]
        %v2795 = vld [vmem:[%s3 + $0x7c] sm:$0xf]
        %v2796 = vunpack.c.l.bf16 %v2764
        %v2797 = vunpack.c.l.bf16 %v2765
        %v2798 = vunpack.c.l.bf16 %v2766
        %v2799 = vunpack.c.l.bf16 %v2767
        %v2800 = vunpack.c.l.bf16 %v2768
        %v2801 = vunpack.c.l.bf16 %v2769
        %v2802 = vunpack.c.l.bf16 %v2770
        %v2803 = vunpack.c.l.bf16 %v2771
        %v2804 = vunpack.c.l.bf16 %v2772
        %v2805 = vunpack.c.l.bf16 %v2773
        %v2806 = vunpack.c.l.bf16 %v2774
        %v2807 = vunpack.c.l.bf16 %v2775
        %v2808 = vunpack.c.l.bf16 %v2776
        %v2809 = vunpack.c.l.bf16 %v2777
        %v2810 = vunpack.c.l.bf16 %v2778
        %v2811 = vunpack.c.l.bf16 %v2779
        %v2812 = vunpack.c.l.bf16 %v2780
        %v2813 = vunpack.c.l.bf16 %v2781
        %v2814 = vunpack.c.l.bf16 %v2782
        %v2815 = vunpack.c.l.bf16 %v2783
        %v2816 = vunpack.c.l.bf16 %v2784
        %v2817 = vunpack.c.l.bf16 %v2785
        %v2818 = vunpack.c.l.bf16 %v2786
        %v2819 = vunpack.c.l.bf16 %v2787
        %v2820 = vunpack.c.l.bf16 %v2788
        %v2821 = vunpack.c.l.bf16 %v2789
        %v2822 = vunpack.c.l.bf16 %v2790
        %v2823 = vunpack.c.l.bf16 %v2791
        %v2824 = vunpack.c.l.bf16 %v2792
        %v2825 = vunpack.c.l.bf16 %v2793
        %v2826 = vunpack.c.l.bf16 %v2794
        %v2827 = vunpack.c.l.bf16 %v2795
        %v2956 = vlaneseq
        %v2957 = vand.u32 %v2956, 127
        %v2958 = vlaneseq
        %v2959 = vshrl.u32 %v2958, 7
        %v2960 = vsub.s32 %v2957, %v2959
        %v2961 = vrot.slane %v2125, %v2960
        %v2962 = vadd.s32 %v2957, 4294967288
        %v2963 = vlaneseq
        %v2964 = vshrl.u32 %v2963, 7
        %v2965 = vsub.s32 %v2962, %v2964
        %v2966 = vrot.slane %v2127, %v2965
        %vm2967 = vcmask 130112
        %v2968 = vsel %vm2967, %v2966, %v2961
        %v2969 = vadd.s32 %v2957, 4294967280
        %v2970 = vlaneseq
        %v2971 = vshrl.u32 %v2970, 7
        %v2972 = vsub.s32 %v2969, %v2971
        %v2973 = vrot.slane %v2129, %v2972
        %vm2974 = vcmask 195712
        %v2975 = vsel %vm2974, %v2973, %v2968
        %v2976 = vadd.s32 %v2957, 4294967272
        %v2977 = vlaneseq
        %v2978 = vshrl.u32 %v2977, 7
        %v2979 = vsub.s32 %v2976, %v2978
        %v2980 = vrot.slane %v2131, %v2979
        %vm2981 = vcmask 261312
        %v2982 = vsel %vm2981, %v2980, %v2975
        %v2983 = vadd.s32 %v2957, 4294967264
        %v2984 = vlaneseq
        %v2985 = vshrl.u32 %v2984, 7
        %v2986 = vsub.s32 %v2983, %v2985
        %v2987 = vrot.slane %v2133, %v2986
        %vm2988 = vcmask 326912
        %v2989 = vsel %vm2988, %v2987, %v2982
        %v2990 = vadd.s32 %v2957, 4294967256
        %v2991 = vlaneseq
        %v2992 = vshrl.u32 %v2991, 7
        %v2993 = vsub.s32 %v2990, %v2992
        %v2994 = vrot.slane %v2135, %v2993
        %vm2995 = vcmask 392512
        %v2996 = vsel %vm2995, %v2994, %v2989
        %v2997 = vadd.s32 %v2957, 4294967248
        %v2998 = vlaneseq
        %v2999 = vshrl.u32 %v2998, 7
        %v3000 = vsub.s32 %v2997, %v2999
        %v3001 = vrot.slane %v2137, %v3000
        %vm3002 = vcmask 458112
        %v3003 = vsel %vm3002, %v3001, %v2996
        %v3004 = vadd.s32 %v2957, 4294967240
        %v3005 = vlaneseq
        %v3006 = vshrl.u32 %v3005, 7
        %v3007 = vsub.s32 %v3004, %v3006
        %v3008 = vrot.slane %v2139, %v3007
        %vm3009 = vcmask 523712
        %v3010 = vsel %vm3009, %v3008, %v3003
        %v3011 = vadd.s32 %v2957, 4294967232
        %v3012 = vlaneseq
        %v3013 = vshrl.u32 %v3012, 7
        %v3014 = vsub.s32 %v3011, %v3013
        %v3015 = vrot.slane %v2141, %v3014
        %vm3016 = vcmask 589312
        %v3017 = vsel %vm3016, %v3015, %v3010
        %v3018 = vadd.s32 %v2957, 4294967224
        %v3019 = vlaneseq
        %v3020 = vshrl.u32 %v3019, 7
        %v3021 = vsub.s32 %v3018, %v3020
        %v3022 = vrot.slane %v2143, %v3021
        %vm3023 = vcmask 654912
        %v3024 = vsel %vm3023, %v3022, %v3017
        %v3025 = vadd.s32 %v2957, 4294967216
        %v3026 = vlaneseq
        %v3027 = vshrl.u32 %v3026, 7
        %v3028 = vsub.s32 %v3025, %v3027
        %v3029 = vrot.slane %v2145, %v3028
        %vm3030 = vcmask 720512
        %v3031 = vsel %vm3030, %v3029, %v3024
        %v3032 = vadd.s32 %v2957, 4294967208
        %v3033 = vlaneseq
        %v3034 = vshrl.u32 %v3033, 7
        %v3035 = vsub.s32 %v3032, %v3034
        %v3036 = vrot.slane %v2147, %v3035
        %vm3037 = vcmask 786112
        %v3038 = vsel %vm3037, %v3036, %v3031
        %v3039 = vadd.s32 %v2957, 4294967200
        %v3040 = vlaneseq
        %v3041 = vshrl.u32 %v3040, 7
        %v3042 = vsub.s32 %v3039, %v3041
        %v3043 = vrot.slane %v2149, %v3042
        %vm3044 = vcmask 851712
        %v3045 = vsel %vm3044, %v3043, %v3038
        %v3046 = vadd.s32 %v2957, 4294967192
        %v3047 = vlaneseq
        %v3048 = vshrl.u32 %v3047, 7
        %v3049 = vsub.s32 %v3046, %v3048
        %v3050 = vrot.slane %v2151, %v3049
        %vm3051 = vcmask 917312
        %v3052 = vsel %vm3051, %v3050, %v3045
        %v3053 = vadd.s32 %v2957, 4294967184
        %v3054 = vlaneseq
        %v3055 = vshrl.u32 %v3054, 7
        %v3056 = vsub.s32 %v3053, %v3055
        %v3057 = vrot.slane %v2153, %v3056
        %vm3058 = vcmask 982912
        %v3059 = vsel %vm3058, %v3057, %v3052
        %v3060 = vadd.s32 %v2957, 4294967176
        %v3061 = vlaneseq
        %v3062 = vshrl.u32 %v3061, 7
        %v3063 = vsub.s32 %v3060, %v3062
        %v3064 = vrot.slane %v2155, %v3063
        %vm3065 = vcmask 1048512
        %v3066 = vsel %vm3065, %v3064, %v3059
        %v3067 = vlaneseq
        %v3068 = vshrl.u32 %v3067, 7
        %v3069 = vsub.s32 %v2957, %v3068
        %v3070 = vrot.slane %v2157, %v3069
        %v3071 = vlaneseq
        %v3072 = vshrl.u32 %v3071, 7
        %v3073 = vsub.s32 %v2962, %v3072
        %v3074 = vrot.slane %v2159, %v3073
        %v3075 = vsel %vm2967, %v3074, %v3070
        %v3076 = vlaneseq
        %v3077 = vshrl.u32 %v3076, 7
        %v3078 = vsub.s32 %v2969, %v3077
        %v3079 = vrot.slane %v2161, %v3078
        %v3080 = vsel %vm2974, %v3079, %v3075
        %v3081 = vlaneseq
        %v3082 = vshrl.u32 %v3081, 7
        %v3083 = vsub.s32 %v2976, %v3082
        %v3084 = vrot.slane %v2163, %v3083
        %v3085 = vsel %vm2981, %v3084, %v3080
        %v3086 = vlaneseq
        %v3087 = vshrl.u32 %v3086, 7
        %v3088 = vsub.s32 %v2983, %v3087
        %v3089 = vrot.slane %v2165, %v3088
        %v3090 = vsel %vm2988, %v3089, %v3085
        %v3091 = vlaneseq
        %v3092 = vshrl.u32 %v3091, 7
        %v3093 = vsub.s32 %v2990, %v3092
        %v3094 = vrot.slane %v2167, %v3093
        %v3095 = vsel %vm2995, %v3094, %v3090
        %v3096 = vlaneseq
        %v3097 = vshrl.u32 %v3096, 7
        %v3098 = vsub.s32 %v2997, %v3097
        %v3099 = vrot.slane %v2169, %v3098
        %v3100 = vsel %vm3002, %v3099, %v3095
        %v3101 = vlaneseq
        %v3102 = vshrl.u32 %v3101, 7
        %v3103 = vsub.s32 %v3004, %v3102
        %v3104 = vrot.slane %v2171, %v3103
        %v3105 = vsel %vm3009, %v3104, %v3100
        %v3106 = vlaneseq
        %v3107 = vshrl.u32 %v3106, 7
        %v3108 = vsub.s32 %v3011, %v3107
        %v3109 = vrot.slane %v2173, %v3108
        %v3110 = vsel %vm3016, %v3109, %v3105
        %v3111 = vlaneseq
        %v3112 = vshrl.u32 %v3111, 7
        %v3113 = vsub.s32 %v3018, %v3112
        %v3114 = vrot.slane %v2175, %v3113
        %v3115 = vsel %vm3023, %v3114, %v3110
        %v3116 = vlaneseq
        %v3117 = vshrl.u32 %v3116, 7
        %v3118 = vsub.s32 %v3025, %v3117
        %v3119 = vrot.slane %v2177, %v3118
        %v3120 = vsel %vm3030, %v3119, %v3115
        %v3121 = vlaneseq
        %v3122 = vshrl.u32 %v3121, 7
        %v3123 = vsub.s32 %v3032, %v3122
        %v3124 = vrot.slane %v2179, %v3123
        %v3125 = vsel %vm3037, %v3124, %v3120
        %v3126 = vlaneseq
        %v3127 = vshrl.u32 %v3126, 7
        %v3128 = vsub.s32 %v3039, %v3127
        %v3129 = vrot.slane %v2181, %v3128
        %v3130 = vsel %vm3044, %v3129, %v3125
        %v3131 = vlaneseq
        %v3132 = vshrl.u32 %v3131, 7
        %v3133 = vsub.s32 %v3046, %v3132
        %v3134 = vrot.slane %v2183, %v3133
        %v3135 = vsel %vm3051, %v3134, %v3130
        %v3136 = vlaneseq
        %v3137 = vshrl.u32 %v3136, 7
        %v3138 = vsub.s32 %v3053, %v3137
        %v3139 = vrot.slane %v2185, %v3138
        %v3140 = vsel %vm3058, %v3139, %v3135
        %v3141 = vlaneseq
        %v3142 = vshrl.u32 %v3141, 7
        %v3143 = vsub.s32 %v3060, %v3142
        %v3144 = vrot.slane %v2187, %v3143
        %v3145 = vsel %vm3065, %v3144, %v3140
        %v3146 = vlaneseq
        %v3147 = vshrl.u32 %v3146, 7
        %v3148 = vsub.s32 %v2957, %v3147
        %v3149 = vrot.slane %v2189, %v3148
        %v3150 = vlaneseq
        %v3151 = vshrl.u32 %v3150, 7
        %v3152 = vsub.s32 %v2962, %v3151
        %v3153 = vrot.slane %v2191, %v3152
        %v3154 = vsel %vm2967, %v3153, %v3149
        %v3155 = vlaneseq
        %v3156 = vshrl.u32 %v3155, 7
        %v3157 = vsub.s32 %v2969, %v3156
        %v3158 = vrot.slane %v2193, %v3157
        %v3159 = vsel %vm2974, %v3158, %v3154
        %v3160 = vlaneseq
        %v3161 = vshrl.u32 %v3160, 7
        %v3162 = vsub.s32 %v2976, %v3161
        %v3163 = vrot.slane %v2195, %v3162
        %v3164 = vsel %vm2981, %v3163, %v3159
        %v3165 = vlaneseq
        %v3166 = vshrl.u32 %v3165, 7
        %v3167 = vsub.s32 %v2983, %v3166
        %v3168 = vrot.slane %v2197, %v3167
        %v3169 = vsel %vm2988, %v3168, %v3164
        %v3170 = vlaneseq
        %v3171 = vshrl.u32 %v3170, 7
        %v3172 = vsub.s32 %v2990, %v3171
        %v3173 = vrot.slane %v2199, %v3172
        %v3174 = vsel %vm2995, %v3173, %v3169
        %v3175 = vlaneseq
        %v3176 = vshrl.u32 %v3175, 7
        %v3177 = vsub.s32 %v2997, %v3176
        %v3178 = vrot.slane %v2201, %v3177
        %v3179 = vsel %vm3002, %v3178, %v3174
        %v3180 = vlaneseq
        %v3181 = vshrl.u32 %v3180, 7
        %v3182 = vsub.s32 %v3004, %v3181
        %v3183 = vrot.slane %v2203, %v3182
        %v3184 = vsel %vm3009, %v3183, %v3179
        %v3185 = vlaneseq
        %v3186 = vshrl.u32 %v3185, 7
        %v3187 = vsub.s32 %v3011, %v3186
        %v3188 = vrot.slane %v2205, %v3187
        %v3189 = vsel %vm3016, %v3188, %v3184
        %v3190 = vlaneseq
        %v3191 = vshrl.u32 %v3190, 7
        %v3192 = vsub.s32 %v3018, %v3191
        %v3193 = vrot.slane %v2207, %v3192
        %v3194 = vsel %vm3023, %v3193, %v3189
        %v3195 = vlaneseq
        %v3196 = vshrl.u32 %v3195, 7
        %v3197 = vsub.s32 %v3025, %v3196
        %v3198 = vrot.slane %v2209, %v3197
        %v3199 = vsel %vm3030, %v3198, %v3194
        %v3200 = vlaneseq
        %v3201 = vshrl.u32 %v3200, 7
        %v3202 = vsub.s32 %v3032, %v3201
        %v3203 = vrot.slane %v2211, %v3202
        %v3204 = vsel %vm3037, %v3203, %v3199
        %v3205 = vlaneseq
        %v3206 = vshrl.u32 %v3205, 7
        %v3207 = vsub.s32 %v3039, %v3206
        %v3208 = vrot.slane %v2213, %v3207
        %v3209 = vsel %vm3044, %v3208, %v3204
        %v3210 = vlaneseq
        %v3211 = vshrl.u32 %v3210, 7
        %v3212 = vsub.s32 %v3046, %v3211
        %v3213 = vrot.slane %v2215, %v3212
        %v3214 = vsel %vm3051, %v3213, %v3209
        %v3215 = vlaneseq
        %v3216 = vshrl.u32 %v3215, 7
        %v3217 = vsub.s32 %v3053, %v3216
        %v3218 = vrot.slane %v2217, %v3217
        %v3219 = vsel %vm3058, %v3218, %v3214
        %v3220 = vlaneseq
        %v3221 = vshrl.u32 %v3220, 7
        %v3222 = vsub.s32 %v3060, %v3221
        %v3223 = vrot.slane %v2219, %v3222
        %v3224 = vsel %vm3065, %v3223, %v3219
        %v3225 = vlaneseq
        %v3226 = vshrl.u32 %v3225, 7
        %v3227 = vsub.s32 %v2957, %v3226
        %v3228 = vrot.slane %v2221, %v3227
        %v3229 = vlaneseq
        %v3230 = vshrl.u32 %v3229, 7
        %v3231 = vsub.s32 %v2962, %v3230
        %v3232 = vrot.slane %v2223, %v3231
        %v3233 = vsel %vm2967, %v3232, %v3228
        %v3234 = vlaneseq
        %v3235 = vshrl.u32 %v3234, 7
        %v3236 = vsub.s32 %v2969, %v3235
        %v3237 = vrot.slane %v2225, %v3236
        %v3238 = vsel %vm2974, %v3237, %v3233
        %v3239 = vlaneseq
        %v3240 = vshrl.u32 %v3239, 7
        %v3241 = vsub.s32 %v2976, %v3240
        %v3242 = vrot.slane %v2227, %v3241
        %v3243 = vsel %vm2981, %v3242, %v3238
        %v3244 = vlaneseq
        %v3245 = vshrl.u32 %v3244, 7
        %v3246 = vsub.s32 %v2983, %v3245
        %v3247 = vrot.slane %v2229, %v3246
        %v3248 = vsel %vm2988, %v3247, %v3243
        %v3249 = vlaneseq
        %v3250 = vshrl.u32 %v3249, 7
        %v3251 = vsub.s32 %v2990, %v3250
        %v3252 = vrot.slane %v2231, %v3251
        %v3253 = vsel %vm2995, %v3252, %v3248
        %v3254 = vlaneseq
        %v3255 = vshrl.u32 %v3254, 7
        %v3256 = vsub.s32 %v2997, %v3255
        %v3257 = vrot.slane %v2233, %v3256
        %v3258 = vsel %vm3002, %v3257, %v3253
        %v3259 = vlaneseq
        %v3260 = vshrl.u32 %v3259, 7
        %v3261 = vsub.s32 %v3004, %v3260
        %v3262 = vrot.slane %v2235, %v3261
        %v3263 = vsel %vm3009, %v3262, %v3258
        %v3264 = vlaneseq
        %v3265 = vshrl.u32 %v3264, 7
        %v3266 = vsub.s32 %v3011, %v3265
        %v3267 = vrot.slane %v2237, %v3266
        %v3268 = vsel %vm3016, %v3267, %v3263
        %v3269 = vlaneseq
        %v3270 = vshrl.u32 %v3269, 7
        %v3271 = vsub.s32 %v3018, %v3270
        %v3272 = vrot.slane %v2239, %v3271
        %v3273 = vsel %vm3023, %v3272, %v3268
        %v3274 = vlaneseq
        %v3275 = vshrl.u32 %v3274, 7
        %v3276 = vsub.s32 %v3025, %v3275
        %v3277 = vrot.slane %v2241, %v3276
        %v3278 = vsel %vm3030, %v3277, %v3273
        %v3279 = vlaneseq
        %v3280 = vshrl.u32 %v3279, 7
        %v3281 = vsub.s32 %v3032, %v3280
        %v3282 = vrot.slane %v2243, %v3281
        %v3283 = vsel %vm3037, %v3282, %v3278
        %v3284 = vlaneseq
        %v3285 = vshrl.u32 %v3284, 7
        %v3286 = vsub.s32 %v3039, %v3285
        %v3287 = vrot.slane %v2245, %v3286
        %v3288 = vsel %vm3044, %v3287, %v3283
        %v3289 = vlaneseq
        %v3290 = vshrl.u32 %v3289, 7
        %v3291 = vsub.s32 %v3046, %v3290
        %v3292 = vrot.slane %v2247, %v3291
        %v3293 = vsel %vm3051, %v3292, %v3288
        %v3294 = vlaneseq
        %v3295 = vshrl.u32 %v3294, 7
        %v3296 = vsub.s32 %v3053, %v3295
        %v3297 = vrot.slane %v2249, %v3296
        %v3298 = vsel %vm3058, %v3297, %v3293
        %v3299 = vlaneseq
        %v3300 = vshrl.u32 %v3299, 7
        %v3301 = vsub.s32 %v3060, %v3300
        %v3302 = vrot.slane %v2251, %v3301
        %v3303 = vsel %vm3065, %v3302, %v3298
        %v3304 = vlaneseq
        %v3305 = vshrl.u32 %v3304, 7
        %v3306 = vsub.s32 %v2957, %v3305
        %v3307 = vrot.slane %v2253, %v3306
        %v3308 = vlaneseq
        %v3309 = vshrl.u32 %v3308, 7
        %v3310 = vsub.s32 %v2962, %v3309
        %v3311 = vrot.slane %v2255, %v3310
        %v3312 = vsel %vm2967, %v3311, %v3307
        %v3313 = vlaneseq
        %v3314 = vshrl.u32 %v3313, 7
        %v3315 = vsub.s32 %v2969, %v3314
        %v3316 = vrot.slane %v2257, %v3315
        %v3317 = vsel %vm2974, %v3316, %v3312
        %v3318 = vlaneseq
        %v3319 = vshrl.u32 %v3318, 7
        %v3320 = vsub.s32 %v2976, %v3319
        %v3321 = vrot.slane %v2259, %v3320
        %v3322 = vsel %vm2981, %v3321, %v3317
        %v3323 = vlaneseq
        %v3324 = vshrl.u32 %v3323, 7
        %v3325 = vsub.s32 %v2983, %v3324
        %v3326 = vrot.slane %v2261, %v3325
        %v3327 = vsel %vm2988, %v3326, %v3322
        %v3328 = vlaneseq
        %v3329 = vshrl.u32 %v3328, 7
        %v3330 = vsub.s32 %v2990, %v3329
        %v3331 = vrot.slane %v2263, %v3330
        %v3332 = vsel %vm2995, %v3331, %v3327
        %v3333 = vlaneseq
        %v3334 = vshrl.u32 %v3333, 7
        %v3335 = vsub.s32 %v2997, %v3334
        %v3336 = vrot.slane %v2265, %v3335
        %v3337 = vsel %vm3002, %v3336, %v3332
        %v3338 = vlaneseq
        %v3339 = vshrl.u32 %v3338, 7
        %v3340 = vsub.s32 %v3004, %v3339
        %v3341 = vrot.slane %v2267, %v3340
        %v3342 = vsel %vm3009, %v3341, %v3337
        %v3343 = vlaneseq
        %v3344 = vshrl.u32 %v3343, 7
        %v3345 = vsub.s32 %v3011, %v3344
        %v3346 = vrot.slane %v2269, %v3345
        %v3347 = vsel %vm3016, %v3346, %v3342
        %v3348 = vlaneseq
        %v3349 = vshrl.u32 %v3348, 7
        %v3350 = vsub.s32 %v3018, %v3349
        %v3351 = vrot.slane %v2271, %v3350
        %v3352 = vsel %vm3023, %v3351, %v3347
        %v3353 = vlaneseq
        %v3354 = vshrl.u32 %v3353, 7
        %v3355 = vsub.s32 %v3025, %v3354
        %v3356 = vrot.slane %v2273, %v3355
        %v3357 = vsel %vm3030, %v3356, %v3352
        %v3358 = vlaneseq
        %v3359 = vshrl.u32 %v3358, 7
        %v3360 = vsub.s32 %v3032, %v3359
        %v3361 = vrot.slane %v2275, %v3360
        %v3362 = vsel %vm3037, %v3361, %v3357
        %v3363 = vlaneseq
        %v3364 = vshrl.u32 %v3363, 7
        %v3365 = vsub.s32 %v3039, %v3364
        %v3366 = vrot.slane %v2277, %v3365
        %v3367 = vsel %vm3044, %v3366, %v3362
        %v3368 = vlaneseq
        %v3369 = vshrl.u32 %v3368, 7
        %v3370 = vsub.s32 %v3046, %v3369
        %v3371 = vrot.slane %v2279, %v3370
        %v3372 = vsel %vm3051, %v3371, %v3367
        %v3373 = vlaneseq
        %v3374 = vshrl.u32 %v3373, 7
        %v3375 = vsub.s32 %v3053, %v3374
        %v3376 = vrot.slane %v2281, %v3375
        %v3377 = vsel %vm3058, %v3376, %v3372
        %v3378 = vlaneseq
        %v3379 = vshrl.u32 %v3378, 7
        %v3380 = vsub.s32 %v3060, %v3379
        %v3381 = vrot.slane %v2283, %v3380
        %v3382 = vsel %vm3065, %v3381, %v3377
        %v3383 = vlaneseq
        %v3384 = vshrl.u32 %v3383, 7
        %v3385 = vsub.s32 %v2957, %v3384
        %v3386 = vrot.slane %v2285, %v3385
        %v3387 = vlaneseq
        %v3388 = vshrl.u32 %v3387, 7
        %v3389 = vsub.s32 %v2962, %v3388
        %v3390 = vrot.slane %v2287, %v3389
        %v3391 = vsel %vm2967, %v3390, %v3386
        %v3392 = vlaneseq
        %v3393 = vshrl.u32 %v3392, 7
        %v3394 = vsub.s32 %v2969, %v3393
        %v3395 = vrot.slane %v2289, %v3394
        %v3396 = vsel %vm2974, %v3395, %v3391
        %v3397 = vlaneseq
        %v3398 = vshrl.u32 %v3397, 7
        %v3399 = vsub.s32 %v2976, %v3398
        %v3400 = vrot.slane %v2291, %v3399
        %v3401 = vsel %vm2981, %v3400, %v3396
        %v3402 = vlaneseq
        %v3403 = vshrl.u32 %v3402, 7
        %v3404 = vsub.s32 %v2983, %v3403
        %v3405 = vrot.slane %v2293, %v3404
        %v3406 = vsel %vm2988, %v3405, %v3401
        %v3407 = vlaneseq
        %v3408 = vshrl.u32 %v3407, 7
        %v3409 = vsub.s32 %v2990, %v3408
        %v3410 = vrot.slane %v2295, %v3409
        %v3411 = vsel %vm2995, %v3410, %v3406
        %v3412 = vlaneseq
        %v3413 = vshrl.u32 %v3412, 7
        %v3414 = vsub.s32 %v2997, %v3413
        %v3415 = vrot.slane %v2297, %v3414
        %v3416 = vsel %vm3002, %v3415, %v3411
        %v3417 = vlaneseq
        %v3418 = vshrl.u32 %v3417, 7
        %v3419 = vsub.s32 %v3004, %v3418
        %v3420 = vrot.slane %v2299, %v3419
        %v3421 = vsel %vm3009, %v3420, %v3416
        %v3422 = vlaneseq
        %v3423 = vshrl.u32 %v3422, 7
        %v3424 = vsub.s32 %v3011, %v3423
        %v3425 = vrot.slane %v2301, %v3424
        %v3426 = vsel %vm3016, %v3425, %v3421
        %v3427 = vlaneseq
        %v3428 = vshrl.u32 %v3427, 7
        %v3429 = vsub.s32 %v3018, %v3428
        %v3430 = vrot.slane %v2303, %v3429
        %v3431 = vsel %vm3023, %v3430, %v3426
        %v3432 = vlaneseq
        %v3433 = vshrl.u32 %v3432, 7
        %v3434 = vsub.s32 %v3025, %v3433
        %v3435 = vrot.slane %v2305, %v3434
        %v3436 = vsel %vm3030, %v3435, %v3431
        %v3437 = vlaneseq
        %v3438 = vshrl.u32 %v3437, 7
        %v3439 = vsub.s32 %v3032, %v3438
        %v3440 = vrot.slane %v2307, %v3439
        %v3441 = vsel %vm3037, %v3440, %v3436
        %v3442 = vlaneseq
        %v3443 = vshrl.u32 %v3442, 7
        %v3444 = vsub.s32 %v3039, %v3443
        %v3445 = vrot.slane %v2309, %v3444
        %v3446 = vsel %vm3044, %v3445, %v3441
        %v3447 = vlaneseq
        %v3448 = vshrl.u32 %v3447, 7
        %v3449 = vsub.s32 %v3046, %v3448
        %v3450 = vrot.slane %v2311, %v3449
        %v3451 = vsel %vm3051, %v3450, %v3446
        %v3452 = vlaneseq
        %v3453 = vshrl.u32 %v3452, 7
        %v3454 = vsub.s32 %v3053, %v3453
        %v3455 = vrot.slane %v2313, %v3454
        %v3456 = vsel %vm3058, %v3455, %v3451
        %v3457 = vlaneseq
        %v3458 = vshrl.u32 %v3457, 7
        %v3459 = vsub.s32 %v3060, %v3458
        %v3460 = vrot.slane %v2315, %v3459
        %v3461 = vsel %vm3065, %v3460, %v3456
        %v3462 = vlaneseq
        %v3463 = vshrl.u32 %v3462, 7
        %v3464 = vsub.s32 %v2957, %v3463
        %v3465 = vrot.slane %v2317, %v3464
        %v3466 = vlaneseq
        %v3467 = vshrl.u32 %v3466, 7
        %v3468 = vsub.s32 %v2962, %v3467
        %v3469 = vrot.slane %v2319, %v3468
        %v3470 = vsel %vm2967, %v3469, %v3465
        %v3471 = vlaneseq
        %v3472 = vshrl.u32 %v3471, 7
        %v3473 = vsub.s32 %v2969, %v3472
        %v3474 = vrot.slane %v2321, %v3473
        %v3475 = vsel %vm2974, %v3474, %v3470
        %v3476 = vlaneseq
        %v3477 = vshrl.u32 %v3476, 7
        %v3478 = vsub.s32 %v2976, %v3477
        %v3479 = vrot.slane %v2323, %v3478
        %v3480 = vsel %vm2981, %v3479, %v3475
        %v3481 = vlaneseq
        %v3482 = vshrl.u32 %v3481, 7
        %v3483 = vsub.s32 %v2983, %v3482
        %v3484 = vrot.slane %v2325, %v3483
        %v3485 = vsel %vm2988, %v3484, %v3480
        %v3486 = vlaneseq
        %v3487 = vshrl.u32 %v3486, 7
        %v3488 = vsub.s32 %v2990, %v3487
        %v3489 = vrot.slane %v2327, %v3488
        %v3490 = vsel %vm2995, %v3489, %v3485
        %v3491 = vlaneseq
        %v3492 = vshrl.u32 %v3491, 7
        %v3493 = vsub.s32 %v2997, %v3492
        %v3494 = vrot.slane %v2329, %v3493
        %v3495 = vsel %vm3002, %v3494, %v3490
        %v3496 = vlaneseq
        %v3497 = vshrl.u32 %v3496, 7
        %v3498 = vsub.s32 %v3004, %v3497
        %v3499 = vrot.slane %v2331, %v3498
        %v3500 = vsel %vm3009, %v3499, %v3495
        %v3501 = vlaneseq
        %v3502 = vshrl.u32 %v3501, 7
        %v3503 = vsub.s32 %v3011, %v3502
        %v3504 = vrot.slane %v2333, %v3503
        %v3505 = vsel %vm3016, %v3504, %v3500
        %v3506 = vlaneseq
        %v3507 = vshrl.u32 %v3506, 7
        %v3508 = vsub.s32 %v3018, %v3507
        %v3509 = vrot.slane %v2335, %v3508
        %v3510 = vsel %vm3023, %v3509, %v3505
        %v3511 = vlaneseq
        %v3512 = vshrl.u32 %v3511, 7
        %v3513 = vsub.s32 %v3025, %v3512
        %v3514 = vrot.slane %v2337, %v3513
        %v3515 = vsel %vm3030, %v3514, %v3510
        %v3516 = vlaneseq
        %v3517 = vshrl.u32 %v3516, 7
        %v3518 = vsub.s32 %v3032, %v3517
        %v3519 = vrot.slane %v2339, %v3518
        %v3520 = vsel %vm3037, %v3519, %v3515
        %v3521 = vlaneseq
        %v3522 = vshrl.u32 %v3521, 7
        %v3523 = vsub.s32 %v3039, %v3522
        %v3524 = vrot.slane %v2341, %v3523
        %v3525 = vsel %vm3044, %v3524, %v3520
        %v3526 = vlaneseq
        %v3527 = vshrl.u32 %v3526, 7
        %v3528 = vsub.s32 %v3046, %v3527
        %v3529 = vrot.slane %v2343, %v3528
        %v3530 = vsel %vm3051, %v3529, %v3525
        %v3531 = vlaneseq
        %v3532 = vshrl.u32 %v3531, 7
        %v3533 = vsub.s32 %v3053, %v3532
        %v3534 = vrot.slane %v2345, %v3533
        %v3535 = vsel %vm3058, %v3534, %v3530
        %v3536 = vlaneseq
        %v3537 = vshrl.u32 %v3536, 7
        %v3538 = vsub.s32 %v3060, %v3537
        %v3539 = vrot.slane %v2347, %v3538
        %v3540 = vsel %vm3065, %v3539, %v3535
        %v3541 = vlaneseq
        %v3542 = vshrl.u32 %v3541, 7
        %v3543 = vsub.s32 %v2957, %v3542
        %v3544 = vrot.slane %v2349, %v3543
        %v3545 = vlaneseq
        %v3546 = vshrl.u32 %v3545, 7
        %v3547 = vsub.s32 %v2962, %v3546
        %v3548 = vrot.slane %v2351, %v3547
        %v3549 = vsel %vm2967, %v3548, %v3544
        %v3550 = vlaneseq
        %v3551 = vshrl.u32 %v3550, 7
        %v3552 = vsub.s32 %v2969, %v3551
        %v3553 = vrot.slane %v2353, %v3552
        %v3554 = vsel %vm2974, %v3553, %v3549
        %v3555 = vlaneseq
        %v3556 = vshrl.u32 %v3555, 7
        %v3557 = vsub.s32 %v2976, %v3556
        %v3558 = vrot.slane %v2355, %v3557
        %v3559 = vsel %vm2981, %v3558, %v3554
        %v3560 = vlaneseq
        %v3561 = vshrl.u32 %v3560, 7
        %v3562 = vsub.s32 %v2983, %v3561
        %v3563 = vrot.slane %v2357, %v3562
        %v3564 = vsel %vm2988, %v3563, %v3559
        %v3565 = vlaneseq
        %v3566 = vshrl.u32 %v3565, 7
        %v3567 = vsub.s32 %v2990, %v3566
        %v3568 = vrot.slane %v2359, %v3567
        %v3569 = vsel %vm2995, %v3568, %v3564
        %v3570 = vlaneseq
        %v3571 = vshrl.u32 %v3570, 7
        %v3572 = vsub.s32 %v2997, %v3571
        %v3573 = vrot.slane %v2361, %v3572
        %v3574 = vsel %vm3002, %v3573, %v3569
        %v3575 = vlaneseq
        %v3576 = vshrl.u32 %v3575, 7
        %v3577 = vsub.s32 %v3004, %v3576
        %v3578 = vrot.slane %v2363, %v3577
        %v3579 = vsel %vm3009, %v3578, %v3574
        %v3580 = vlaneseq
        %v3581 = vshrl.u32 %v3580, 7
        %v3582 = vsub.s32 %v3011, %v3581
        %v3583 = vrot.slane %v2365, %v3582
        %v3584 = vsel %vm3016, %v3583, %v3579
        %v3585 = vlaneseq
        %v3586 = vshrl.u32 %v3585, 7
        %v3587 = vsub.s32 %v3018, %v3586
        %v3588 = vrot.slane %v2367, %v3587
        %v3589 = vsel %vm3023, %v3588, %v3584
        %v3590 = vlaneseq
        %v3591 = vshrl.u32 %v3590, 7
        %v3592 = vsub.s32 %v3025, %v3591
        %v3593 = vrot.slane %v2369, %v3592
        %v3594 = vsel %vm3030, %v3593, %v3589
        %v3595 = vlaneseq
        %v3596 = vshrl.u32 %v3595, 7
        %v3597 = vsub.s32 %v3032, %v3596
        %v3598 = vrot.slane %v2371, %v3597
        %v3599 = vsel %vm3037, %v3598, %v3594
        %v3600 = vlaneseq
        %v3601 = vshrl.u32 %v3600, 7
        %v3602 = vsub.s32 %v3039, %v3601
        %v3603 = vrot.slane %v2373, %v3602
        %v3604 = vsel %vm3044, %v3603, %v3599
        %v3605 = vlaneseq
        %v3606 = vshrl.u32 %v3605, 7
        %v3607 = vsub.s32 %v3046, %v3606
        %v3608 = vrot.slane %v2375, %v3607
        %v3609 = vsel %vm3051, %v3608, %v3604
        %v3610 = vlaneseq
        %v3611 = vshrl.u32 %v3610, 7
        %v3612 = vsub.s32 %v3053, %v3611
        %v3613 = vrot.slane %v2377, %v3612
        %v3614 = vsel %vm3058, %v3613, %v3609
        %v3615 = vlaneseq
        %v3616 = vshrl.u32 %v3615, 7
        %v3617 = vsub.s32 %v3060, %v3616
        %v3618 = vrot.slane %v2379, %v3617
        %v3619 = vsel %vm3065, %v3618, %v3614
        %3628 = vmatprep.subr.mxu0 %v2509
        %3629 = vmatpush1.msra.mxu0 %v2508
        %3630 = vmatprep.subr.mxu0 %v2511
        %3631 = vmatpush1.msra.mxu0 %v2510
        %3632 = vmatprep.subr.mxu0 %v2513
        %3633 = vmatpush1.msra.mxu0 %v2512
        %3634 = vmatprep.subr.mxu0 %v2515
        %3635 = vmatpush1.msra.mxu0 %v2514
        %3636 = vmatprep.subr.mxu0 %v2517
        %3637 = vmatpush1.msra.mxu0 %v2516
        %3638 = vmatprep.subr.mxu0 %v2519
        %3639 = vmatpush1.msra.mxu0 %v2518
        %3640 = vmatprep.subr.mxu0 %v2521
        %3641 = vmatpush1.msra.mxu0 %v2520
        %3642 = vmatprep.subr.mxu0 %v2523
        %3643 = vmatpush1.msra.mxu0 %v2522
        %3644 = vmatprep.subr.mxu0 %v2525
        %3645 = vmatpush1.msra.mxu0 %v2524
        %3646 = vmatprep.subr.mxu0 %v2527
        %3647 = vmatpush1.msra.mxu0 %v2526
        %3648 = vmatprep.subr.mxu0 %v2529
        %3649 = vmatpush1.msra.mxu0 %v2528
        %3650 = vmatprep.subr.mxu0 %v2531
        %3651 = vmatpush1.msra.mxu0 %v2530
        %3652 = vmatprep.subr.mxu0 %v2533
        %3653 = vmatpush1.msra.mxu0 %v2532
        %3654 = vmatprep.subr.mxu0 %v2535
        %3655 = vmatpush1.msra.mxu0 %v2534
        %3656 = vmatprep.subr.mxu0 %v2537
        %3657 = vmatpush1.msra.mxu0 %v2536
        %3658 = vmatprep.subr.mxu0 %v2539
        %3659 = vmatpush1.msra.mxu0 %v2538
        %3660 = vmatprep.subr.mxu0 %v2541
        %3661 = vmatpush1.msra.mxu0 %v2540
        %3662 = vmatprep.subr.mxu0 %v2543
        %3663 = vmatpush1.msra.mxu0 %v2542
        %3664 = vmatprep.subr.mxu0 %v2545
        %3665 = vmatpush1.msra.mxu0 %v2544
        %3666 = vmatprep.subr.mxu0 %v2547
        %3667 = vmatpush1.msra.mxu0 %v2546
        %3668 = vmatprep.subr.mxu0 %v2549
        %3669 = vmatpush1.msra.mxu0 %v2548
        %3670 = vmatprep.subr.mxu0 %v2551
        %3671 = vmatpush1.msra.mxu0 %v2550
        %3672 = vmatprep.subr.mxu0 %v2553
        %3673 = vmatpush1.msra.mxu0 %v2552
        %3674 = vmatprep.subr.mxu0 %v2555
        %3675 = vmatpush1.msra.mxu0 %v2554
        %3676 = vmatprep.subr.mxu0 %v2557
        %3677 = vmatpush1.msra.mxu0 %v2556
        %3678 = vmatprep.subr.mxu0 %v2559
        %3679 = vmatpush1.msra.mxu0 %v2558
        %3680 = vmatprep.subr.mxu0 %v2561
        %3681 = vmatpush1.msra.mxu0 %v2560
        %3682 = vmatprep.subr.mxu0 %v2563
        %3683 = vmatpush1.msra.mxu0 %v2562
        %3684 = vmatprep.subr.mxu0 %v2565
        %3685 = vmatpush1.msra.mxu0 %v2564
        %3686 = vmatprep.subr.mxu0 %v2567
        %3687 = vmatpush1.msra.mxu0 %v2566
        %3688 = vmatprep.subr.mxu0 %v2569
        %3689 = vmatpush1.msra.mxu0 %v2568
        %3690 = vmatprep.subr.mxu0 %v2571
        %3691 = vmatpush1.msra.mxu0 %v2570
        %3692 = vmatprep.mubr.f32.mxu0 %v3145
        %3693 = vmatmul.mubr.f32.gmra.mrb[0].mxu0 %v3066
        %v3694 = vpop.f32.mrb[0].mxu0
        %v3695 = vadd.f32 0.0, %v3694
        %v3696 = vpop.f32.mrb[0].mxu0
        %v3697 = vadd.f32 0.0, %v3696
        %3698 = vdwg.mxu0
        %3699 = vmatprep.subr.mxu0 %v2573
        %3700 = vmatpush1.msra.mxu0 %v2572
        %3701 = vmatprep.subr.mxu0 %v2575
        %3702 = vmatpush1.msra.mxu0 %v2574
        %3703 = vmatprep.subr.mxu0 %v2577
        %3704 = vmatpush1.msra.mxu0 %v2576
        %3705 = vmatprep.subr.mxu0 %v2579
        %3706 = vmatpush1.msra.mxu0 %v2578
        %3707 = vmatprep.subr.mxu0 %v2581
        %3708 = vmatpush1.msra.mxu0 %v2580
        %3709 = vmatprep.subr.mxu0 %v2583
        %3710 = vmatpush1.msra.mxu0 %v2582
        %3711 = vmatprep.subr.mxu0 %v2585
        %3712 = vmatpush1.msra.mxu0 %v2584
        %3713 = vmatprep.subr.mxu0 %v2587
        %3714 = vmatpush1.msra.mxu0 %v2586
        %3715 = vmatprep.subr.mxu0 %v2589
        %3716 = vmatpush1.msra.mxu0 %v2588
        %3717 = vmatprep.subr.mxu0 %v2591
        %3718 = vmatpush1.msra.mxu0 %v2590
        %3719 = vmatprep.subr.mxu0 %v2593
        %3720 = vmatpush1.msra.mxu0 %v2592
        %3721 = vmatprep.subr.mxu0 %v2595
        %3722 = vmatpush1.msra.mxu0 %v2594
        %3723 = vmatprep.subr.mxu0 %v2597
        %3724 = vmatpush1.msra.mxu0 %v2596
        %3725 = vmatprep.subr.mxu0 %v2599
        %3726 = vmatpush1.msra.mxu0 %v2598
        %3727 = vmatprep.subr.mxu0 %v2601
        %3728 = vmatpush1.msra.mxu0 %v2600
        %3729 = vmatprep.subr.mxu0 %v2603
        %3730 = vmatpush1.msra.mxu0 %v2602
        %3731 = vmatprep.subr.mxu0 %v2605
        %3732 = vmatpush1.msra.mxu0 %v2604
        %3733 = vmatprep.subr.mxu0 %v2607
        %3734 = vmatpush1.msra.mxu0 %v2606
        %3735 = vmatprep.subr.mxu0 %v2609
        %3736 = vmatpush1.msra.mxu0 %v2608
        %3737 = vmatprep.subr.mxu0 %v2611
        %3738 = vmatpush1.msra.mxu0 %v2610
        %3739 = vmatprep.subr.mxu0 %v2613
        %3740 = vmatpush1.msra.mxu0 %v2612
        %3741 = vmatprep.subr.mxu0 %v2615
        %3742 = vmatpush1.msra.mxu0 %v2614
        %3743 = vmatprep.subr.mxu0 %v2617
        %3744 = vmatpush1.msra.mxu0 %v2616
        %3745 = vmatprep.subr.mxu0 %v2619
        %3746 = vmatpush1.msra.mxu0 %v2618
        %3747 = vmatprep.subr.mxu0 %v2621
        %3748 = vmatpush1.msra.mxu0 %v2620
        %3749 = vmatprep.subr.mxu0 %v2623
        %3750 = vmatpush1.msra.mxu0 %v2622
        %3751 = vmatprep.subr.mxu0 %v2625
        %3752 = vmatpush1.msra.mxu0 %v2624
        %3753 = vmatprep.subr.mxu0 %v2627
        %3754 = vmatpush1.msra.mxu0 %v2626
        %3755 = vmatprep.subr.mxu0 %v2629
        %3756 = vmatpush1.msra.mxu0 %v2628
        %3757 = vmatprep.subr.mxu0 %v2631
        %3758 = vmatpush1.msra.mxu0 %v2630
        %3759 = vmatprep.subr.mxu0 %v2633
        %3760 = vmatpush1.msra.mxu0 %v2632
        %3761 = vmatprep.subr.mxu0 %v2635
        %3762 = vmatpush1.msra.mxu0 %v2634
        %3763 = vmatprep.mubr.f32.mxu0 %v3303
        %3764 = vmatmul.mubr.f32.gmra.mrb[0].mxu0 %v3224
        %v3765 = vpop.f32.mrb[0].mxu0
        %v3766 = vadd.f32 %v3695, %v3765
        %v3767 = vpop.f32.mrb[0].mxu0
        %v3768 = vadd.f32 %v3697, %v3767
        %3769 = vdwg.mxu0
        %3770 = vmatprep.subr.mxu0 %v2637
        %3771 = vmatpush1.msra.mxu0 %v2636
        %3772 = vmatprep.subr.mxu0 %v2639
        %3773 = vmatpush1.msra.mxu0 %v2638
        %3774 = vmatprep.subr.mxu0 %v2641
        %3775 = vmatpush1.msra.mxu0 %v2640
        %3776 = vmatprep.subr.mxu0 %v2643
        %3777 = vmatpush1.msra.mxu0 %v2642
        %3778 = vmatprep.subr.mxu0 %v2645
        %3779 = vmatpush1.msra.mxu0 %v2644
        %3780 = vmatprep.subr.mxu0 %v2647
        %3781 = vmatpush1.msra.mxu0 %v2646
        %3782 = vmatprep.subr.mxu0 %v2649
        %3783 = vmatpush1.msra.mxu0 %v2648
        %3784 = vmatprep.subr.mxu0 %v2651
        %3785 = vmatpush1.msra.mxu0 %v2650
        %3786 = vmatprep.subr.mxu0 %v2653
        %3787 = vmatpush1.msra.mxu0 %v2652
        %3788 = vmatprep.subr.mxu0 %v2655
        %3789 = vmatpush1.msra.mxu0 %v2654
        %3790 = vmatprep.subr.mxu0 %v2657
        %3791 = vmatpush1.msra.mxu0 %v2656
        %3792 = vmatprep.subr.mxu0 %v2659
        %3793 = vmatpush1.msra.mxu0 %v2658
        %3794 = vmatprep.subr.mxu0 %v2661
        %3795 = vmatpush1.msra.mxu0 %v2660
        %3796 = vmatprep.subr.mxu0 %v2663
        %3797 = vmatpush1.msra.mxu0 %v2662
        %3798 = vmatprep.subr.mxu0 %v2665
        %3799 = vmatpush1.msra.mxu0 %v2664
        %3800 = vmatprep.subr.mxu0 %v2667
        %3801 = vmatpush1.msra.mxu0 %v2666
        %3802 = vmatprep.subr.mxu0 %v2669
        %3803 = vmatpush1.msra.mxu0 %v2668
        %3804 = vmatprep.subr.mxu0 %v2671
        %3805 = vmatpush1.msra.mxu0 %v2670
        %3806 = vmatprep.subr.mxu0 %v2673
        %3807 = vmatpush1.msra.mxu0 %v2672
        %3808 = vmatprep.subr.mxu0 %v2675
        %3809 = vmatpush1.msra.mxu0 %v2674
        %3810 = vmatprep.subr.mxu0 %v2677
        %3811 = vmatpush1.msra.mxu0 %v2676
        %3812 = vmatprep.subr.mxu0 %v2679
        %3813 = vmatpush1.msra.mxu0 %v2678
        %3814 = vmatprep.subr.mxu0 %v2681
        %3815 = vmatpush1.msra.mxu0 %v2680
        %3816 = vmatprep.subr.mxu0 %v2683
        %3817 = vmatpush1.msra.mxu0 %v2682
        %3818 = vmatprep.subr.mxu0 %v2685
        %3819 = vmatpush1.msra.mxu0 %v2684
        %3820 = vmatprep.subr.mxu0 %v2687
        %3821 = vmatpush1.msra.mxu0 %v2686
        %3822 = vmatprep.subr.mxu0 %v2689
        %3823 = vmatpush1.msra.mxu0 %v2688
        %3824 = vmatprep.subr.mxu0 %v2691
        %3825 = vmatpush1.msra.mxu0 %v2690
        %3826 = vmatprep.subr.mxu0 %v2693
        %3827 = vmatpush1.msra.mxu0 %v2692
        %3828 = vmatprep.subr.mxu0 %v2695
        %3829 = vmatpush1.msra.mxu0 %v2694
        %3830 = vmatprep.subr.mxu0 %v2697
        %3831 = vmatpush1.msra.mxu0 %v2696
        %3832 = vmatprep.subr.mxu0 %v2699
        %3833 = vmatpush1.msra.mxu0 %v2698
        %3834 = vmatprep.mubr.f32.mxu0 %v3461
        %3835 = vmatmul.mubr.f32.gmra.mrb[0].mxu0 %v3382
        %v3836 = vpop.f32.mrb[0].mxu0
        %v3837 = vadd.f32 %v3766, %v3836
        %v3838 = vpop.f32.mrb[0].mxu0
        %v3839 = vadd.f32 %v3768, %v3838
        %3840 = vdwg.mxu0
        %3841 = vmatprep.subr.mxu0 %v2701
        %3842 = vmatpush1.msra.mxu0 %v2700
        %3843 = vmatprep.subr.mxu0 %v2703
        %3844 = vmatpush1.msra.mxu0 %v2702
        %3845 = vmatprep.subr.mxu0 %v2705
        %3846 = vmatpush1.msra.mxu0 %v2704
        %3847 = vmatprep.subr.mxu0 %v2707
        %3848 = vmatpush1.msra.mxu0 %v2706
        %3849 = vmatprep.subr.mxu0 %v2709
        %3850 = vmatpush1.msra.mxu0 %v2708
        %3851 = vmatprep.subr.mxu0 %v2711
        %3852 = vmatpush1.msra.mxu0 %v2710
        %3853 = vmatprep.subr.mxu0 %v2713
        %3854 = vmatpush1.msra.mxu0 %v2712
        %3855 = vmatprep.subr.mxu0 %v2715
        %3856 = vmatpush1.msra.mxu0 %v2714
        %3857 = vmatprep.subr.mxu0 %v2717
        %3858 = vmatpush1.msra.mxu0 %v2716
        %3859 = vmatprep.subr.mxu0 %v2719
        %3860 = vmatpush1.msra.mxu0 %v2718
        %3861 = vmatprep.subr.mxu0 %v2721
        %3862 = vmatpush1.msra.mxu0 %v2720
        %3863 = vmatprep.subr.mxu0 %v2723
        %3864 = vmatpush1.msra.mxu0 %v2722
        %3865 = vmatprep.subr.mxu0 %v2725
        %3866 = vmatpush1.msra.mxu0 %v2724
        %3867 = vmatprep.subr.mxu0 %v2727
        %3868 = vmatpush1.msra.mxu0 %v2726
        %3869 = vmatprep.subr.mxu0 %v2729
        %3870 = vmatpush1.msra.mxu0 %v2728
        %3871 = vmatprep.subr.mxu0 %v2731
        %3872 = vmatpush1.msra.mxu0 %v2730
        %3873 = vmatprep.subr.mxu0 %v2733
        %3874 = vmatpush1.msra.mxu0 %v2732
        %3875 = vmatprep.subr.mxu0 %v2735
        %3876 = vmatpush1.msra.mxu0 %v2734
        %3877 = vmatprep.subr.mxu0 %v2737
        %3878 = vmatpush1.msra.mxu0 %v2736
        %3879 = vmatprep.subr.mxu0 %v2739
        %3880 = vmatpush1.msra.mxu0 %v2738
        %3881 = vmatprep.subr.mxu0 %v2741
        %3882 = vmatpush1.msra.mxu0 %v2740
        %3883 = vmatprep.subr.mxu0 %v2743
        %3884 = vmatpush1.msra.mxu0 %v2742
        %3885 = vmatprep.subr.mxu0 %v2745
        %3886 = vmatpush1.msra.mxu0 %v2744
        %3887 = vmatprep.subr.mxu0 %v2747
        %3888 = vmatpush1.msra.mxu0 %v2746
        %3889 = vmatprep.subr.mxu0 %v2749
        %3890 = vmatpush1.msra.mxu0 %v2748
        %3891 = vmatprep.subr.mxu0 %v2751
        %3892 = vmatpush1.msra.mxu0 %v2750
        %3893 = vmatprep.subr.mxu0 %v2753
        %3894 = vmatpush1.msra.mxu0 %v2752
        %3895 = vmatprep.subr.mxu0 %v2755
        %3896 = vmatpush1.msra.mxu0 %v2754
        %3897 = vmatprep.subr.mxu0 %v2757
        %3898 = vmatpush1.msra.mxu0 %v2756
        %3899 = vmatprep.subr.mxu0 %v2759
        %3900 = vmatpush1.msra.mxu0 %v2758
        %3901 = vmatprep.subr.mxu0 %v2761
        %3902 = vmatpush1.msra.mxu0 %v2760
        %3903 = vmatprep.subr.mxu0 %v2763
        %3904 = vmatpush1.msra.mxu0 %v2762
        %3905 = vmatprep.mubr.f32.mxu0 %v3619
        %3906 = vmatmul.mubr.f32.gmra.mrb[0].mxu0 %v3540
        %v3907 = vpop.f32.mrb[0].mxu0
        %v3908 = vadd.f32 %v3837, %v3907
        %v3909 = vpop.f32.mrb[0].mxu0
        %v3910 = vadd.f32 %v3839, %v3909
        %3911 = vdwg.mxu0
        %vm3912 = vcmp.gt.f32.partialorder %v3908, 0.0
        %vm3913 = vcmp.gt.f32.partialorder %v3910, 0.0
        %v3914 = vmul.f32 %v3908, 0.1
        %v3915 = vmul.f32 %v3910, 0.1
        %v3916 = vsel %vm3912, %v3908, %v3914
        %v3917 = vsel %vm3913, %v3910, %v3915
        %3918 = vmatprep.subr.mxu0 0.0
        %3919 = vmatpush1.msra.mxu0 %v2796
        %3920 = vmatprep.subr.mxu0 0.0
        %3921 = vmatpush1.msra.mxu0 %v2797
        %3922 = vmatprep.subr.mxu0 0.0
        %3923 = vmatpush1.msra.mxu0 %v2798
        %3924 = vmatprep.subr.mxu0 0.0
        %3925 = vmatpush1.msra.mxu0 %v2799
        %3926 = vmatprep.subr.mxu0 0.0
        %3927 = vmatpush1.msra.mxu0 %v2800
        %3928 = vmatprep.subr.mxu0 0.0
        %3929 = vmatpush1.msra.mxu0 %v2801
        %3930 = vmatprep.subr.mxu0 0.0
        %3931 = vmatpush1.msra.mxu0 %v2802
        %3932 = vmatprep.subr.mxu0 0.0
        %3933 = vmatpush1.msra.mxu0 %v2803
        %3934 = vmatprep.subr.mxu0 0.0
        %3935 = vmatpush1.msra.mxu0 %v2804
        %3936 = vmatprep.subr.mxu0 0.0
        %3937 = vmatpush1.msra.mxu0 %v2805
        %3938 = vmatprep.subr.mxu0 0.0
        %3939 = vmatpush1.msra.mxu0 %v2806
        %3940 = vmatprep.subr.mxu0 0.0
        %3941 = vmatpush1.msra.mxu0 %v2807
        %3942 = vmatprep.subr.mxu0 0.0
        %3943 = vmatpush1.msra.mxu0 %v2808
        %3944 = vmatprep.subr.mxu0 0.0
        %3945 = vmatpush1.msra.mxu0 %v2809
        %3946 = vmatprep.subr.mxu0 0.0
        %3947 = vmatpush1.msra.mxu0 %v2810
        %3948 = vmatprep.subr.mxu0 0.0
        %3949 = vmatpush1.msra.mxu0 %v2811
        %3950 = vmatprep.subr.mxu0 0.0
        %3951 = vmatpush1.msra.mxu0 %v2812
        %3952 = vmatprep.subr.mxu0 0.0
        %3953 = vmatpush1.msra.mxu0 %v2813
        %3954 = vmatprep.subr.mxu0 0.0
        %3955 = vmatpush1.msra.mxu0 %v2814
        %3956 = vmatprep.subr.mxu0 0.0
        %3957 = vmatpush1.msra.mxu0 %v2815
        %3958 = vmatprep.subr.mxu0 0.0
        %3959 = vmatpush1.msra.mxu0 %v2816
        %3960 = vmatprep.subr.mxu0 0.0
        %3961 = vmatpush1.msra.mxu0 %v2817
        %3962 = vmatprep.subr.mxu0 0.0
        %3963 = vmatpush1.msra.mxu0 %v2818
        %3964 = vmatprep.subr.mxu0 0.0
        %3965 = vmatpush1.msra.mxu0 %v2819
        %3966 = vmatprep.subr.mxu0 0.0
        %3967 = vmatpush1.msra.mxu0 %v2820
        %3968 = vmatprep.subr.mxu0 0.0
        %3969 = vmatpush1.msra.mxu0 %v2821
        %3970 = vmatprep.subr.mxu0 0.0
        %3971 = vmatpush1.msra.mxu0 %v2822
        %3972 = vmatprep.subr.mxu0 0.0
        %3973 = vmatpush1.msra.mxu0 %v2823
        %3974 = vmatprep.subr.mxu0 0.0
        %3975 = vmatpush1.msra.mxu0 %v2824
        %3976 = vmatprep.subr.mxu0 0.0
        %3977 = vmatpush1.msra.mxu0 %v2825
        %3978 = vmatprep.subr.mxu0 0.0
        %3979 = vmatpush1.msra.mxu0 %v2826
        %3980 = vmatprep.subr.mxu0 0.0
        %3981 = vmatpush1.msra.mxu0 %v2827
        %3982 = vmatprep.mubr.f32.mxu0 %v3917
        %3983 = vmatmul.mubr.f32.gmra.mrb[0].mxu0 %v3916
        %v3984 = vpop.f32.mrb[0].mxu0
        %v3985 = vadd.f32 0.0, %v3984
        %v3986 = vpop.f32.mrb[0].mxu0
        %3987 = vdwg.mxu0
        %v3988 = vmul.f32 %v3985, %v3985
        %vm3989 = vcmask 1040384
        %v3990 = vsel %vm3989, %v3988, 0.0
        %3991 = vadd.xlane.f32.xlu0 %v3990
        %v3992 = vpop.xlane.xlu0 %3991
        %v3993 = vmax.f32 %v3992, 1e-24
        %v3994 = vrsqrt.pop %v3993
        %v3995 = vmul.f32 %v3985, %v3994
        %3996 = vst [vmem:[%s190] sm:$0x1] %v3995
        %s3997 = sand.u32 %s116, 1
        %s3998 = scalar_lea.sflag [#allocation4], %s3997
        %s3999 = sand.u32 %s116, 1
        %s4000 = scalar_lea.vmem [#allocation3], %s3999
        // Predicated region
        $region37: #{tpu_custom_call.1} parent=35 // pred_check
          %p4001 = pneg %p126
        $region38: #{tpu_custom_call.1} parent=35 // pred_check_branch
          %4003 = sbr.rel (%p4001) target = $region40
        $region39: #{tpu_custom_call.1} parent=35 // pred_region
          %s4005 = ssub.s32 16, 16
          %4006 = vsyncadd %s3998, %s4005
          %s4007 = smul.addr %s19, 16
          %s4008 = scalar_lea.hbm %s4, %s4007
          %s4010 = sshll.u32 %s4000, 4
          %s4011 = int_to_ptr.vmem [resolvable:$true] %s4010
          %4013 = dma.vmem_to_hbm [thread:$0]  %s4011, 16, %s4008, %s3998
        $region40: #{tpu_custom_call.1} parent=35 // pred_fallthru
          _
      $region36: #{tpu_custom_call.1} parent=5 // pred_fallthru
        _
      %p4014 = scmp.le.s32.totalorder 2, %s14
      // Predicated region
      $region41: #{tpu_custom_call.1} parent=5 // pred_check
        %p4015 = pneg %p4014
      $region42: #{tpu_custom_call.1} parent=5 // pred_check_branch
        %4017 = sbr.rel (%p4015) target = $region44
      $region43: #{tpu_custom_call.1} parent=5 // pred_region
        %s4018 = ssub.s32 %s14, 2
        // Predicated region
        $region45: #{tpu_custom_call.1} parent=43 // pred_check
          %p4019 = pneg %p132
        $region46: #{tpu_custom_call.1} parent=43 // pred_check_branch
          %4021 = sbr.rel (%p4019) target = $region48
        $region47: #{tpu_custom_call.1} parent=43 // pred_region
          %s4022 = sand.u32 %s117, 1
          %s4023 = scalar_lea.sflag [#allocation4], %s4022
          %s4024 = sand.u32 %s117, 1
          %s4025 = scalar_lea.vmem [#allocation3], %s4024
          %4026 = dma.done %s4023, 16
        $region48: #{tpu_custom_call.1} parent=43 // pred_fallthru
          _
      $region44: #{tpu_custom_call.1} parent=5 // pred_fallthru
        _
    $region6: #{tpu_custom_call.1} parent=1 // loop_footer
      %s18 = sadd.s32 1, %s14
    $region7: #{tpu_custom_call.1} parent=1 // loop_footer_branch
      %13 = sbr.rel target = $region3
    $region8: #{tpu_custom_call.1} parent=1 // loop_exit
      _
    %4027 = vsyncpa [#allocation4], 1
    %s4028 = scalar_lea.sflag [#allocation4], 1
    %4029 = vsyncpa %s4028, 1

</llo_original>
